<compile_context>
chip_gen: v7x
topology: tpu7x:2x2x1
jax: 0.10.0
libtpu: 0.0.40
codegen_flags: <defaults>
</compile_context>

<pallas_src>
import functools

import jax
import jax.numpy as jnp
from jax.experimental import pallas as pl
from jax.experimental.pallas import tpu as pltpu

_LANES = 128


def _round_up(n, m):
    return ((n + m - 1) // m) * m


def _pad_last(a, target):
    pad = target - a.shape[-1]
    if pad == 0:
        return a
    return jnp.pad(a, [(0, 0)] * (a.ndim - 1) + [(0, pad)])


def _sigmoid(x):
    # Explicit form; lowers to EUP exp + VPU add/div inside the kernel.
    return 1.0 / (1.0 + jnp.exp(-x))


# -----------------------------------------------------------------------------
# Fused kernel.  Grid = (num_batch_tiles,), "parallel".
#
# Refs (inputs, then outputs, then scratch):
#   x_ref     : (1, T*Bt, Dp)        layer-0 input, time-major rows (t*Bt + b)
#   h0_ref    : (1, L, Bt, Hp)       initial hidden state per layer
#   per layer l (4 refs):
#     wih_ref : (Din_p, 3*Hp)        input->gates, gates [r|z|n] along lanes
#     whh_ref : (Hp, 3*Hp)           hidden->gates
#     bi_ref  : (1, 3*Hp)            b_ih with b_hh_r / b_hh_z folded in
#     bhn_ref : (1, Hp)              b_hh_n (stays inside the reset product)
#   wfc_ref   : (Hp, Op)             FC head weight (pre-transposed, padded)
#   bfc_ref   : (1, Op)
#   pred_ref  : (1, T*Bt, Op)
#   hlast_ref : (1, L, Bt, Hp)       (aliased with h0's HBM buffer)
#   y_sc      : VMEM (T*Bt, Hp)      current layer's outputs over time
# -----------------------------------------------------------------------------
def _fused_gru_kernel(*refs, n_layers, seq_len, batch_tile, hp):
    x_ref = refs[0]
    h0_ref = refs[1]
    layer_refs = refs[2:2 + 4 * n_layers]
    wfc_ref = refs[2 + 4 * n_layers]
    bfc_ref = refs[3 + 4 * n_layers]
    pred_ref = refs[4 + 4 * n_layers]
    hlast_ref = refs[5 + 4 * n_layers]
    y_sc = refs[6 + 4 * n_layers]

    act = x_ref[0].astype(jnp.float32)            # (T*Bt, Dp) layer-0 input

    for layer in range(n_layers):
        wih_ref, whh_ref, bi_ref, bhn_ref = layer_refs[4 * layer:4 * layer + 4]

        # Hoisted input projection: ONE fused matmul for all timesteps & gates.
        gi = jnp.dot(act, wih_ref[...],
                     preferred_element_type=jnp.float32) + bi_ref[...]

        w_hh = whh_ref[...]                       # (Hp, 3*Hp), loaded once
        b_hn = bhn_ref[...]                       # (1, Hp)
        h = h0_ref[0, layer].astype(jnp.float32)  # (Bt, Hp)

        # Serial recurrence: one fused (Bt, Hp) @ (Hp, 3*Hp) matmul per step.
        # T is small & static here -> unrolled Python loop.
        # TODO(synk): lax.fori_loop(..., unroll=k) + pl.ds(gi) for large T.
        for t in range(seq_len):
            gh = jnp.dot(h, w_hh, preferred_element_type=jnp.float32)
            lo = t * batch_tile
            gi_t = gi[lo:lo + batch_tile, :]
            r = _sigmoid(gi_t[:, 0:hp] + gh[:, 0:hp])
            z = _sigmoid(gi_t[:, hp:2 * hp] + gh[:, hp:2 * hp])
            n = jnp.tanh(gi_t[:, 2 * hp:3 * hp] + r * (gh[:, 2 * hp:3 * hp] + b_hn))
            h = (1.0 - z) * n + z * h
            y_sc[lo:lo + batch_tile, :] = h

        hlast_ref[0, layer] = h.astype(hlast_ref.dtype)
        act = y_sc[...]                           # (T*Bt, Hp) -> next layer

    # Fused FC head: single lane-dense (T*Bt, Op) store.
    pred = jnp.dot(act, wfc_ref[...],
                   preferred_element_type=jnp.float32) + bfc_ref[...]
    pred_ref[0] = pred.astype(pred_ref.dtype)


# -----------------------------------------------------------------------------
# Per-layer weight packing (wrapper-side layout plumbing, exact math).
#   w_ih : (in_rows, 3*Hp)   gates [r|z|n] along lanes, each padded to Hp
#   w_hh : (Hp, 3*Hp)
#   b_i  : (1, 3*Hp)         b_ih with b_hh_r / b_hh_z folded in
#   b_hn : (1, Hp)
# -----------------------------------------------------------------------------
def _pack_layer(p, hp, in_rows):
    d_in = p["w_ih"].shape[1]
    h = p["w_hh"].shape[-1]

    w_ih_g = _pad_last(p["w_ih"], hp)                                  # (3, d_in, hp)
    w_ih_g = jnp.pad(w_ih_g, ((0, 0), (0, in_rows - d_in), (0, 0)))    # zero K rows
    w_ih = jnp.concatenate([w_ih_g[0], w_ih_g[1], w_ih_g[2]], axis=-1)

    w_hh_g = _pad_last(p["w_hh"], hp)                                  # (3, h, hp)
    w_hh_g = jnp.pad(w_hh_g, ((0, 0), (0, hp - h), (0, 0)))
    w_hh = jnp.concatenate([w_hh_g[0], w_hh_g[1], w_hh_g[2]], axis=-1)

    b_r = _pad_last(p["b_ih"][0] + p["b_hh"][0], hp)   # fold b_hh_r (exact)
    b_z = _pad_last(p["b_ih"][1] + p["b_hh"][1], hp)   # fold b_hh_z (exact)
    b_n = _pad_last(p["b_ih"][2], hp)
    b_i = jnp.concatenate([b_r, b_z, b_n], axis=-1)
    b_hn = _pad_last(p["b_hh"][2], hp)
    return w_ih, w_hh, b_i, b_hn


# -----------------------------------------------------------------------------
# Wrapper: matches AuxiliaryGRU.forward semantics.
#   x      : (batch, seq, observation_dim)
#   hidden : (n_layers, batch, hidden_dim)
# returns (prediction (batch, seq, output_dim),
#          last_hidden (n_layers, batch, hidden_dim))
# -----------------------------------------------------------------------------
def auxiliary_gru_forward(params, x, hidden, *, batch_tile=None):
    B, T, D = x.shape
    n_layers = len(params["gru"])
    H = params["gru"][0]["w_hh"].shape[-1]
    O = params["fc"]["w_t"].shape[-1]

    Dp = _round_up(D, _LANES)
    Hp = _round_up(H, _LANES)
    Op = _round_up(O, _LANES)

    # One grid step with the whole batch by default (best for single-TC
    # v5e/v6e).  On v7x pass batch_tile = B // 2 so both TensorCores get a
    # "parallel" shard.
    if batch_tile is None:
        batch_tile = B
    assert B % batch_tile == 0, "batch must be divisible by batch_tile"
    n_tiles = B // batch_tile

    # ---- layout plumbing (wrapper-side only) --------------------------------
    # x: (B, T, D) -> (n_tiles, T*Bt, Dp), rows time-major within a tile.
    x_t = x.reshape(n_tiles, batch_tile, T, D).transpose(0, 2, 1, 3)
    x_t = _pad_last(x_t.reshape(n_tiles, T * batch_tile, D), Dp)

    # hidden: (L, B, H) -> (n_tiles, L, Bt, Hp)
    h0 = _pad_last(hidden, Hp).reshape(n_layers, n_tiles, batch_tile, Hp)
    h0 = h0.transpose(1, 0, 2, 3)

    inputs = [x_t, h0]
    in_specs = [
        pl.BlockSpec((1, T * batch_tile, Dp), lambda g: (g, 0, 0)),
        pl.BlockSpec((1, n_layers, batch_tile, Hp), lambda g: (g, 0, 0, 0)),
    ]
    for layer, p in enumerate(params["gru"]):
        in_rows = Dp if layer == 0 else Hp
        w_ih, w_hh, b_i, b_hn = _pack_layer(p, Hp, in_rows)
        inputs += [w_ih, w_hh, b_i, b_hn]
        in_specs += [
            # Grid-invariant weights (constant index_map -> DMA'd once).
            pl.BlockSpec((in_rows, 3 * Hp), lambda g: (0, 0)),
            pl.BlockSpec((Hp, 3 * Hp), lambda g: (0, 0)),
            pl.BlockSpec((1, 3 * Hp), lambda g: (0, 0)),
            pl.BlockSpec((1, Hp), lambda g: (0, 0)),
        ]
    w_fc = jnp.pad(params["fc"]["w_t"], ((0, Hp - H), (0, Op - O)))
    b_fc = _pad_last(params["fc"]["b"], Op)
    inputs += [w_fc, b_fc]
    in_specs += [
        pl.BlockSpec((Hp, Op), lambda g: (0, 0)),
        pl.BlockSpec((1, Op), lambda g: (0, 0)),
    ]

    out_shape = (
        jax.ShapeDtypeStruct((n_tiles, T * batch_tile, Op), jnp.float32),
        jax.ShapeDtypeStruct((n_tiles, n_layers, batch_tile, Hp), jnp.float32),
    )
    out_specs = (
        pl.BlockSpec((1, T * batch_tile, Op), lambda g: (g, 0, 0)),
        pl.BlockSpec((1, n_layers, batch_tile, Hp), lambda g: (g, 0, 0, 0)),
    )

    # Explicit VMEM budget: double-buffered blocks + scratch + gi temp + slack.
    est = 2 * sum(int(a.size) for a in inputs) * 4
    est += 2 * (T * batch_tile * Op + n_layers * batch_tile * Hp) * 4
    est += (T * batch_tile * Hp + T * batch_tile * 3 * Hp) * 4
    vmem_limit = int(max(32 * 1024 * 1024, est))

    kernel = functools.partial(
        _fused_gru_kernel, n_layers=n_layers, seq_len=T,
        batch_tile=batch_tile, hp=Hp)

    pred_t, hlast_t = pl.pallas_call(
        kernel,
        out_shape=out_shape,
        grid=(n_tiles,),
        in_specs=in_specs,
        out_specs=out_specs,
        scratch_shapes=[pltpu.VMEM((T * batch_tile, Hp), jnp.float32)],
        input_output_aliases={1: 1},   # write last hidden in place of h0
        compiler_params=pltpu.CompilerParams(
            dimension_semantics=("parallel",),
            vmem_limit_bytes=vmem_limit),
    )(*inputs)

    # ---- un-pad / un-tile ----------------------------------------------------
    pred = pred_t.reshape(n_tiles, T, batch_tile, Op).transpose(0, 2, 1, 3)
    pred = pred.reshape(B, T, Op)[:, :, :O]
    last_hidden = hlast_t.transpose(1, 0, 2, 3).reshape(n_layers, B, Hp)[:, :, :H]
    return pred, last_hidden


# -----------------------------------------------------------------------------
# Parameter init (deterministic, PyTorch-like uniform(-1/sqrt(H), 1/sqrt(H))).
# Weights stored per-gate (gate order r, z, n), pre-transposed so that
# activation @ w gives the gate pre-activation.
# -----------------------------------------------------------------------------
def init_params(key, observation_dim, hidden_dim, output_dim, n_layers):
    params = {"gru": [], "fc": {}}
    k = 1.0 / jnp.sqrt(jnp.float32(hidden_dim))
    keys = jax.random.split(key, 4 * n_layers + 2)
    for layer in range(n_layers):
        d_in = observation_dim if layer == 0 else hidden_dim
        kw0, kw1, kb0, kb1 = keys[4 * layer: 4 * layer + 4]
        params["gru"].append({
            "w_ih": jax.random.uniform(kw0, (3, d_in, hidden_dim),
                                       jnp.float32, -k, k),
            "w_hh": jax.random.uniform(kw1, (3, hidden_dim, hidden_dim),
                                       jnp.float32, -k, k),
            "b_ih": jax.random.uniform(kb0, (3, 1, hidden_dim),
                                       jnp.float32, -k, k),
            "b_hh": jax.random.uniform(kb1, (3, 1, hidden_dim),
                                       jnp.float32, -k, k),
        })
    params["fc"]["w_t"] = jax.random.uniform(keys[-2], (hidden_dim, output_dim),
                                             jnp.float32, -k, k)
    params["fc"]["b"] = jax.random.uniform(keys[-1], (1, output_dim),
                                           jnp.float32, -k, k)
    return params


# -----------------------------------------------------------------------------
# Pure-JAX reference (full f32 precision) for verification.
# -----------------------------------------------------------------------------
def reference_forward(params, x, hidden):
    mm = functools.partial(jnp.matmul, precision=jax.lax.Precision.HIGHEST)
    B, T, _ = x.shape
    layer_in = x
    last_hidden = []
    for layer, p in enumerate(params["gru"]):
        h = hidden[layer]                         # (B, H)
        outs = []
        for t in range(T):
            x_t = layer_in[:, t, :]
            i_r = mm(x_t, p["w_ih"][0]) + p["b_ih"][0]
            i_z = mm(x_t, p["w_ih"][1]) + p["b_ih"][1]
            i_n = mm(x_t, p["w_ih"][2]) + p["b_ih"][2]
            h_r = mm(h, p["w_hh"][0]) + p["b_hh"][0]
            h_z = mm(h, p["w_hh"][1]) + p["b_hh"][1]
            h_n = mm(h, p["w_hh"][2]) + p["b_hh"][2]
            r = _sigmoid(i_r + h_r)
            z = _sigmoid(i_z + h_z)
            n = jnp.tanh(i_n + r * h_n)
            h = (1.0 - z) * n + z * h
            outs.append(h)
        layer_in = jnp.stack(outs, axis=1)
        last_hidden.append(h)
    pred = mm(layer_in, params["fc"]["w_t"]) + params["fc"]["b"]
    return pred, jnp.stack(last_hidden, axis=0)


if __name__ == "__main__":
    observation_dim, hidden_dim, output_dim, n_layers = 4, 32, 6, 2
    batch, seq = 2, 8

    key = jax.random.PRNGKey(0)
    kp, kx, kh = jax.random.split(key, 3)
    params = init_params(kp, observation_dim, hidden_dim, output_dim, n_layers)
    x = jax.random.normal(kx, (batch, seq, observation_dim), jnp.float32)
    hidden = 0.1 * jax.random.normal(kh, (n_layers, batch, hidden_dim), jnp.float32)

    fwd = jax.jit(auxiliary_gru_forward)
    pred, h_last = fwd(params, x, hidden)
    pred = jax.block_until_ready(pred)
    h_last = jax.block_until_ready(h_last)

    pred_ref, h_ref = reference_forward(params, x, hidden)

    assert pred.shape == (batch, seq, output_dim)
    assert h_last.shape == (n_layers, batch, hidden_dim)
    # Kernel math is full f32 (exact zero-padding / bias-fold reordering only);
    # tolerance covers EUP-vs-XLA transcendental implementation differences.
    assert jnp.allclose(pred, pred_ref, atol=1e-4, rtol=1e-4)
    assert jnp.allclose(h_last, h_ref, atol=1e-4, rtol=1e-4)

    print("KERNEL_OK")
</pallas_src>

<mosaic_0001>
module attributes {stable_mosaic.version = 11 : i64} {
  func.func @_fused_gru_kernel(%arg0: i32, %arg1: memref<1x16x128xf32, #tpu.memory_space<vmem>>, %arg2: memref<1x2x2x128xf32, #tpu.memory_space<vmem>>, %arg3: memref<128x384xf32, #tpu.memory_space<vmem>>, %arg4: memref<128x384xf32, #tpu.memory_space<vmem>>, %arg5: memref<1x384xf32, #tpu.memory_space<vmem>>, %arg6: memref<1x128xf32, #tpu.memory_space<vmem>>, %arg7: memref<128x384xf32, #tpu.memory_space<vmem>>, %arg8: memref<128x384xf32, #tpu.memory_space<vmem>>, %arg9: memref<1x384xf32, #tpu.memory_space<vmem>>, %arg10: memref<1x128xf32, #tpu.memory_space<vmem>>, %arg11: memref<128x128xf32, #tpu.memory_space<vmem>>, %arg12: memref<1x128xf32, #tpu.memory_space<vmem>>, %arg13: memref<1x16x128xf32, #tpu.memory_space<vmem>>, %arg14: memref<1x2x2x128xf32, #tpu.memory_space<vmem>>, %arg15: memref<16x128xf32, #tpu.memory_space<vmem>>) attributes {dimension_semantics = [#tpu.dimension_semantics<parallel>], iteration_bounds = array<i64: 1>, scalar_prefetch = 0 : i64, scratch_operands = 1 : i64, tpu.core_type = #tpu.core_type<tc>, window_params = [{transform_indices = @transform_0, window_bounds = array<i64: 1, 16, 128>}, {transform_indices = @transform_1, window_bounds = array<i64: 1, 2, 2, 128>}, {pipeline_mode = #tpu.pipeline_mode<synchronous>, transform_indices = @transform_2, window_bounds = array<i64: 128, 384>}, {pipeline_mode = #tpu.pipeline_mode<synchronous>, transform_indices = @transform_3, window_bounds = array<i64: 128, 384>}, {pipeline_mode = #tpu.pipeline_mode<synchronous>, transform_indices = @transform_4, window_bounds = array<i64: 1, 384>}, {pipeline_mode = #tpu.pipeline_mode<synchronous>, transform_indices = @transform_5, window_bounds = array<i64: 1, 128>}, {pipeline_mode = #tpu.pipeline_mode<synchronous>, transform_indices = @transform_6, window_bounds = array<i64: 128, 384>}, {pipeline_mode = #tpu.pipeline_mode<synchronous>, transform_indices = @transform_7, window_bounds = array<i64: 128, 384>}, {pipeline_mode = #tpu.pipeline_mode<synchronous>, transform_indices = @transform_8, window_bounds = array<i64: 1, 384>}, {pipeline_mode = #tpu.pipeline_mode<synchronous>, transform_indices = @transform_9, window_bounds = array<i64: 1, 128>}, {pipeline_mode = #tpu.pipeline_mode<synchronous>, transform_indices = @transform_10, window_bounds = array<i64: 128, 128>}, {pipeline_mode = #tpu.pipeline_mode<synchronous>, transform_indices = @transform_11, window_bounds = array<i64: 1, 128>}, {transform_indices = @transform_12, window_bounds = array<i64: 1, 16, 128>}, {transform_indices = @transform_13, window_bounds = array<i64: 1, 2, 2, 128>}]} {
    %c0 = arith.constant 0 : index
    %c0_0 = arith.constant 0 : index
    %c0_1 = arith.constant 0 : index
    %0 = vector.load %arg1[%c0, %c0_0, %c0_1] : memref<1x16x128xf32, #tpu.memory_space<vmem>>, vector<1x16x128xf32>
    %1 = vector.shape_cast %0 : vector<1x16x128xf32> to vector<16x128xf32>
    %c0_2 = arith.constant 0 : index
    %c0_3 = arith.constant 0 : index
    %2 = vector.load %arg3[%c0_2, %c0_3] : memref<128x384xf32, #tpu.memory_space<vmem>>, vector<128x384xf32>
    %cst = arith.constant dense<0.000000e+00> : vector<16x384xf32>
    %3 = tpu.matmul %1, %2, %cst {dimension_numbers = #tpu.dot_dimension_numbers<[1], [0], [0], [1], [0, 0, 1, 1], [], []>} : vector<16x128xf32>, vector<128x384xf32>, vector<16x384xf32> -> vector<16x384xf32>
    %c0_4 = arith.constant 0 : index
    %c0_5 = arith.constant 0 : index
    %4 = vector.load %arg5[%c0_4, %c0_5] : memref<1x384xf32, #tpu.memory_space<vmem>>, vector<1x384xf32>
    %5 = vector.broadcast %4 : vector<1x384xf32> to vector<16x384xf32>
    %6 = arith.addf %3, %5 : vector<16x384xf32>
    %c0_6 = arith.constant 0 : index
    %c0_7 = arith.constant 0 : index
    %7 = vector.load %arg4[%c0_6, %c0_7] : memref<128x384xf32, #tpu.memory_space<vmem>>, vector<128x384xf32>
    %c0_8 = arith.constant 0 : index
    %c0_9 = arith.constant 0 : index
    %8 = vector.load %arg6[%c0_8, %c0_9] : memref<1x128xf32, #tpu.memory_space<vmem>>, vector<1x128xf32>
    %c0_10 = arith.constant 0 : index
    %c0_11 = arith.constant 0 : index
    %c0_12 = arith.constant 0 : index
    %c0_13 = arith.constant 0 : index
    %9 = vector.load %arg2[%c0_10, %c0_11, %c0_12, %c0_13] : memref<1x2x2x128xf32, #tpu.memory_space<vmem>>, vector<1x1x2x128xf32>
    %10 = vector.shape_cast %9 : vector<1x1x2x128xf32> to vector<2x128xf32>
    %cst_14 = arith.constant dense<0.000000e+00> : vector<2x384xf32>
    %11 = tpu.matmul %10, %7, %cst_14 {dimension_numbers = #tpu.dot_dimension_numbers<[1], [0], [0], [1], [0, 0, 1, 1], [], []>} : vector<2x128xf32>, vector<128x384xf32>, vector<2x384xf32> -> vector<2x384xf32>
    %12 = vector.extract_strided_slice %6 {offsets = [0, 0], sizes = [2, 384], strides = [1, 1]} : vector<16x384xf32> to vector<2x384xf32>
    %13 = vector.extract_strided_slice %12 {offsets = [0, 0], sizes = [2, 128], strides = [1, 1]} : vector<2x384xf32> to vector<2x128xf32>
    %14 = vector.extract_strided_slice %11 {offsets = [0, 0], sizes = [2, 128], strides = [1, 1]} : vector<2x384xf32> to vector<2x128xf32>
    %15 = arith.addf %13, %14 : vector<2x128xf32>
    %cst_15 = arith.constant 0.000000e+00 : f32
    %16 = vector.broadcast %cst_15 : f32 to vector<2x128xf32>
    %17 = arith.subf %16, %15 : vector<2x128xf32>
    %18 = math.exp %17 : vector<2x128xf32>
    %cst_16 = arith.constant 1.000000e+00 : f32
    %19 = vector.broadcast %cst_16 : f32 to vector<2x128xf32>
    %20 = arith.addf %19, %18 : vector<2x128xf32>
    %cst_17 = arith.constant 1.000000e+00 : f32
    %21 = vector.broadcast %cst_17 : f32 to vector<2x128xf32>
    %22 = arith.divf %21, %20 : vector<2x128xf32>
    %23 = vector.extract_strided_slice %12 {offsets = [0, 128], sizes = [2, 128], strides = [1, 1]} : vector<2x384xf32> to vector<2x128xf32>
    %24 = vector.extract_strided_slice %11 {offsets = [0, 128], sizes = [2, 128], strides = [1, 1]} : vector<2x384xf32> to vector<2x128xf32>
    %25 = arith.addf %23, %24 : vector<2x128xf32>
    %cst_18 = arith.constant 0.000000e+00 : f32
    %26 = vector.broadcast %cst_18 : f32 to vector<2x128xf32>
    %27 = arith.subf %26, %25 : vector<2x128xf32>
    %28 = math.exp %27 : vector<2x128xf32>
    %cst_19 = arith.constant 1.000000e+00 : f32
    %29 = vector.broadcast %cst_19 : f32 to vector<2x128xf32>
    %30 = arith.addf %29, %28 : vector<2x128xf32>
    %cst_20 = arith.constant 1.000000e+00 : f32
    %31 = vector.broadcast %cst_20 : f32 to vector<2x128xf32>
    %32 = arith.divf %31, %30 : vector<2x128xf32>
    %33 = vector.extract_strided_slice %12 {offsets = [0, 256], sizes = [2, 128], strides = [1, 1]} : vector<2x384xf32> to vector<2x128xf32>
    %34 = vector.extract_strided_slice %11 {offsets = [0, 256], sizes = [2, 128], strides = [1, 1]} : vector<2x384xf32> to vector<2x128xf32>
    %35 = vector.broadcast %8 : vector<1x128xf32> to vector<2x128xf32>
    %36 = arith.addf %34, %35 : vector<2x128xf32>
    %37 = arith.mulf %22, %36 : vector<2x128xf32>
    %38 = arith.addf %33, %37 : vector<2x128xf32>
    %39 = math.tanh %38 : vector<2x128xf32>
    %cst_21 = arith.constant 1.000000e+00 : f32
    %40 = vector.broadcast %cst_21 : f32 to vector<2x128xf32>
    %41 = arith.subf %40, %32 : vector<2x128xf32>
    %42 = arith.mulf %41, %39 : vector<2x128xf32>
    %43 = arith.mulf %32, %10 : vector<2x128xf32>
    %44 = arith.addf %42, %43 : vector<2x128xf32>
    %c0_22 = arith.constant 0 : index
    %c0_23 = arith.constant 0 : index
    %45 = vector.load %arg15[%c0_22, %c0_23] : memref<16x128xf32, #tpu.memory_space<vmem>>, vector<2x128xf32>
    tpu.vector_store %arg15[%c0_22, %c0_23], %44 {strides = array<i32>} : memref<16x128xf32, #tpu.memory_space<vmem>>, vector<2x128xf32>,
    %cst_24 = arith.constant dense<0.000000e+00> : vector<2x384xf32>
    %46 = tpu.matmul %44, %7, %cst_24 {dimension_numbers = #tpu.dot_dimension_numbers<[1], [0], [0], [1], [0, 0, 1, 1], [], []>} : vector<2x128xf32>, vector<128x384xf32>, vector<2x384xf32> -> vector<2x384xf32>
    %47 = vector.extract_strided_slice %6 {offsets = [2, 0], sizes = [2, 384], strides = [1, 1]} : vector<16x384xf32> to vector<2x384xf32>
    %48 = vector.extract_strided_slice %47 {offsets = [0, 0], sizes = [2, 128], strides = [1, 1]} : vector<2x384xf32> to vector<2x128xf32>
    %49 = vector.extract_strided_slice %46 {offsets = [0, 0], sizes = [2, 128], strides = [1, 1]} : vector<2x384xf32> to vector<2x128xf32>
    %50 = arith.addf %48, %49 : vector<2x128xf32>
    %cst_25 = arith.constant 0.000000e+00 : f32
    %51 = vector.broadcast %cst_25 : f32 to vector<2x128xf32>
    %52 = arith.subf %51, %50 : vector<2x128xf32>
    %53 = math.exp %52 : vector<2x128xf32>
    %cst_26 = arith.constant 1.000000e+00 : f32
    %54 = vector.broadcast %cst_26 : f32 to vector<2x128xf32>
    %55 = arith.addf %54, %53 : vector<2x128xf32>
    %cst_27 = arith.constant 1.000000e+00 : f32
    %56 = vector.broadcast %cst_27 : f32 to vector<2x128xf32>
    %57 = arith.divf %56, %55 : vector<2x128xf32>
    %58 = vector.extract_strided_slice %47 {offsets = [0, 128], sizes = [2, 128], strides = [1, 1]} : vector<2x384xf32> to vector<2x128xf32>
    %59 = vector.extract_strided_slice %46 {offsets = [0, 128], sizes = [2, 128], strides = [1, 1]} : vector<2x384xf32> to vector<2x128xf32>
    %60 = arith.addf %58, %59 : vector<2x128xf32>
    %cst_28 = arith.constant 0.000000e+00 : f32
    %61 = vector.broadcast %cst_28 : f32 to vector<2x128xf32>
    %62 = arith.subf %61, %60 : vector<2x128xf32>
    %63 = math.exp %62 : vector<2x128xf32>
    %cst_29 = arith.constant 1.000000e+00 : f32
    %64 = vector.broadcast %cst_29 : f32 to vector<2x128xf32>
    %65 = arith.addf %64, %63 : vector<2x128xf32>
    %cst_30 = arith.constant 1.000000e+00 : f32
    %66 = vector.broadcast %cst_30 : f32 to vector<2x128xf32>
    %67 = arith.divf %66, %65 : vector<2x128xf32>
    %68 = vector.extract_strided_slice %47 {offsets = [0, 256], sizes = [2, 128], strides = [1, 1]} : vector<2x384xf32> to vector<2x128xf32>
    %69 = vector.extract_strided_slice %46 {offsets = [0, 256], sizes = [2, 128], strides = [1, 1]} : vector<2x384xf32> to vector<2x128xf32>
    %70 = vector.broadcast %8 : vector<1x128xf32> to vector<2x128xf32>
    %71 = arith.addf %69, %70 : vector<2x128xf32>
    %72 = arith.mulf %57, %71 : vector<2x128xf32>
    %73 = arith.addf %68, %72 : vector<2x128xf32>
    %74 = math.tanh %73 : vector<2x128xf32>
    %cst_31 = arith.constant 1.000000e+00 : f32
    %75 = vector.broadcast %cst_31 : f32 to vector<2x128xf32>
    %76 = arith.subf %75, %67 : vector<2x128xf32>
    %77 = arith.mulf %76, %74 : vector<2x128xf32>
    %78 = arith.mulf %67, %44 : vector<2x128xf32>
    %79 = arith.addf %77, %78 : vector<2x128xf32>
    %c2 = arith.constant 2 : index
    %c0_32 = arith.constant 0 : index
    %80 = vector.load %arg15[%c2, %c0_32] : memref<16x128xf32, #tpu.memory_space<vmem>>, vector<2x128xf32>
    tpu.vector_store %arg15[%c2, %c0_32], %79 {strides = array<i32>} : memref<16x128xf32, #tpu.memory_space<vmem>>, vector<2x128xf32>,
    %cst_33 = arith.constant dense<0.000000e+00> : vector<2x384xf32>
    %81 = tpu.matmul %79, %7, %cst_33 {dimension_numbers = #tpu.dot_dimension_numbers<[1], [0], [0], [1], [0, 0, 1, 1], [], []>} : vector<2x128xf32>, vector<128x384xf32>, vector<2x384xf32> -> vector<2x384xf32>
    %82 = vector.extract_strided_slice %6 {offsets = [4, 0], sizes = [2, 384], strides = [1, 1]} : vector<16x384xf32> to vector<2x384xf32>
    %83 = vector.extract_strided_slice %82 {offsets = [0, 0], sizes = [2, 128], strides = [1, 1]} : vector<2x384xf32> to vector<2x128xf32>
    %84 = vector.extract_strided_slice %81 {offsets = [0, 0], sizes = [2, 128], strides = [1, 1]} : vector<2x384xf32> to vector<2x128xf32>
    %85 = arith.addf %83, %84 : vector<2x128xf32>
    %cst_34 = arith.constant 0.000000e+00 : f32
    %86 = vector.broadcast %cst_34 : f32 to vector<2x128xf32>
    %87 = arith.subf %86, %85 : vector<2x128xf32>
    %88 = math.exp %87 : vector<2x128xf32>
    %cst_35 = arith.constant 1.000000e+00 : f32
    %89 = vector.broadcast %cst_35 : f32 to vector<2x128xf32>
    %90 = arith.addf %89, %88 : vector<2x128xf32>
    %cst_36 = arith.constant 1.000000e+00 : f32
    %91 = vector.broadcast %cst_36 : f32 to vector<2x128xf32>
    %92 = arith.divf %91, %90 : vector<2x128xf32>
    %93 = vector.extract_strided_slice %82 {offsets = [0, 128], sizes = [2, 128], strides = [1, 1]} : vector<2x384xf32> to vector<2x128xf32>
    %94 = vector.extract_strided_slice %81 {offsets = [0, 128], sizes = [2, 128], strides = [1, 1]} : vector<2x384xf32> to vector<2x128xf32>
    %95 = arith.addf %93, %94 : vector<2x128xf32>
    %cst_37 = arith.constant 0.000000e+00 : f32
    %96 = vector.broadcast %cst_37 : f32 to vector<2x128xf32>
    %97 = arith.subf %96, %95 : vector<2x128xf32>
    %98 = math.exp %97 : vector<2x128xf32>
    %cst_38 = arith.constant 1.000000e+00 : f32
    %99 = vector.broadcast %cst_38 : f32 to vector<2x128xf32>
    %100 = arith.addf %99, %98 : vector<2x128xf32>
    %cst_39 = arith.constant 1.000000e+00 : f32
    %101 = vector.broadcast %cst_39 : f32 to vector<2x128xf32>
    %102 = arith.divf %101, %100 : vector<2x128xf32>
    %103 = vector.extract_strided_slice %82 {offsets = [0, 256], sizes = [2, 128], strides = [1, 1]} : vector<2x384xf32> to vector<2x128xf32>
    %104 = vector.extract_strided_slice %81 {offsets = [0, 256], sizes = [2, 128], strides = [1, 1]} : vector<2x384xf32> to vector<2x128xf32>
    %105 = vector.broadcast %8 : vector<1x128xf32> to vector<2x128xf32>
    %106 = arith.addf %104, %105 : vector<2x128xf32>
    %107 = arith.mulf %92, %106 : vector<2x128xf32>
    %108 = arith.addf %103, %107 : vector<2x128xf32>
    %109 = math.tanh %108 : vector<2x128xf32>
    %cst_40 = arith.constant 1.000000e+00 : f32
    %110 = vector.broadcast %cst_40 : f32 to vector<2x128xf32>
    %111 = arith.subf %110, %102 : vector<2x128xf32>
    %112 = arith.mulf %111, %109 : vector<2x128xf32>
    %113 = arith.mulf %102, %79 : vector<2x128xf32>
    %114 = arith.addf %112, %113 : vector<2x128xf32>
    %c4 = arith.constant 4 : index
    %c0_41 = arith.constant 0 : index
    %115 = vector.load %arg15[%c4, %c0_41] : memref<16x128xf32, #tpu.memory_space<vmem>>, vector<2x128xf32>
    tpu.vector_store %arg15[%c4, %c0_41], %114 {strides = array<i32>} : memref<16x128xf32, #tpu.memory_space<vmem>>, vector<2x128xf32>,
    %cst_42 = arith.constant dense<0.000000e+00> : vector<2x384xf32>
    %116 = tpu.matmul %114, %7, %cst_42 {dimension_numbers = #tpu.dot_dimension_numbers<[1], [0], [0], [1], [0, 0, 1, 1], [], []>} : vector<2x128xf32>, vector<128x384xf32>, vector<2x384xf32> -> vector<2x384xf32>
    %117 = vector.extract_strided_slice %6 {offsets = [6, 0], sizes = [2, 384], strides = [1, 1]} : vector<16x384xf32> to vector<2x384xf32>
    %118 = vector.extract_strided_slice %117 {offsets = [0, 0], sizes = [2, 128], strides = [1, 1]} : vector<2x384xf32> to vector<2x128xf32>
    %119 = vector.extract_strided_slice %116 {offsets = [0, 0], sizes = [2, 128], strides = [1, 1]} : vector<2x384xf32> to vector<2x128xf32>
    %120 = arith.addf %118, %119 : vector<2x128xf32>
    %cst_43 = arith.constant 0.000000e+00 : f32
    %121 = vector.broadcast %cst_43 : f32 to vector<2x128xf32>
    %122 = arith.subf %121, %120 : vector<2x128xf32>
    %123 = math.exp %122 : vector<2x128xf32>
    %cst_44 = arith.constant 1.000000e+00 : f32
    %124 = vector.broadcast %cst_44 : f32 to vector<2x128xf32>
    %125 = arith.addf %124, %123 : vector<2x128xf32>
    %cst_45 = arith.constant 1.000000e+00 : f32
    %126 = vector.broadcast %cst_45 : f32 to vector<2x128xf32>
    %127 = arith.divf %126, %125 : vector<2x128xf32>
    %128 = vector.extract_strided_slice %117 {offsets = [0, 128], sizes = [2, 128], strides = [1, 1]} : vector<2x384xf32> to vector<2x128xf32>
    %129 = vector.extract_strided_slice %116 {offsets = [0, 128], sizes = [2, 128], strides = [1, 1]} : vector<2x384xf32> to vector<2x128xf32>
    %130 = arith.addf %128, %129 : vector<2x128xf32>
    %cst_46 = arith.constant 0.000000e+00 : f32
    %131 = vector.broadcast %cst_46 : f32 to vector<2x128xf32>
    %132 = arith.subf %131, %130 : vector<2x128xf32>
    %133 = math.exp %132 : vector<2x128xf32>
    %cst_47 = arith.constant 1.000000e+00 : f32
    %134 = vector.broadcast %cst_47 : f32 to vector<2x128xf32>
    %135 = arith.addf %134, %133 : vector<2x128xf32>
    %cst_48 = arith.constant 1.000000e+00 : f32
    %136 = vector.broadcast %cst_48 : f32 to vector<2x128xf32>
    %137 = arith.divf %136, %135 : vector<2x128xf32>
    %138 = vector.extract_strided_slice %117 {offsets = [0, 256], sizes = [2, 128], strides = [1, 1]} : vector<2x384xf32> to vector<2x128xf32>
    %139 = vector.extract_strided_slice %116 {offsets = [0, 256], sizes = [2, 128], strides = [1, 1]} : vector<2x384xf32> to vector<2x128xf32>
    %140 = vector.broadcast %8 : vector<1x128xf32> to vector<2x128xf32>
    %141 = arith.addf %139, %140 : vector<2x128xf32>
    %142 = arith.mulf %127, %141 : vector<2x128xf32>
    %143 = arith.addf %138, %142 : vector<2x128xf32>
    %144 = math.tanh %143 : vector<2x128xf32>
    %cst_49 = arith.constant 1.000000e+00 : f32
    %145 = vector.broadcast %cst_49 : f32 to vector<2x128xf32>
    %146 = arith.subf %145, %137 : vector<2x128xf32>
    %147 = arith.mulf %146, %144 : vector<2x128xf32>
    %148 = arith.mulf %137, %114 : vector<2x128xf32>
    %149 = arith.addf %147, %148 : vector<2x128xf32>
    %c6 = arith.constant 6 : index
    %c0_50 = arith.constant 0 : index
    %150 = vector.load %arg15[%c6, %c0_50] : memref<16x128xf32, #tpu.memory_space<vmem>>, vector<2x128xf32>
    tpu.vector_store %arg15[%c6, %c0_50], %149 {strides = array<i32>} : memref<16x128xf32, #tpu.memory_space<vmem>>, vector<2x128xf32>,
    %cst_51 = arith.constant dense<0.000000e+00> : vector<2x384xf32>
    %151 = tpu.matmul %149, %7, %cst_51 {dimension_numbers = #tpu.dot_dimension_numbers<[1], [0], [0], [1], [0, 0, 1, 1], [], []>} : vector<2x128xf32>, vector<128x384xf32>, vector<2x384xf32> -> vector<2x384xf32>
    %152 = vector.extract_strided_slice %6 {offsets = [8, 0], sizes = [2, 384], strides = [1, 1]} : vector<16x384xf32> to vector<2x384xf32>
    %153 = vector.extract_strided_slice %152 {offsets = [0, 0], sizes = [2, 128], strides = [1, 1]} : vector<2x384xf32> to vector<2x128xf32>
    %154 = vector.extract_strided_slice %151 {offsets = [0, 0], sizes = [2, 128], strides = [1, 1]} : vector<2x384xf32> to vector<2x128xf32>
    %155 = arith.addf %153, %154 : vector<2x128xf32>
    %cst_52 = arith.constant 0.000000e+00 : f32
    %156 = vector.broadcast %cst_52 : f32 to vector<2x128xf32>
    %157 = arith.subf %156, %155 : vector<2x128xf32>
    %158 = math.exp %157 : vector<2x128xf32>
    %cst_53 = arith.constant 1.000000e+00 : f32
    %159 = vector.broadcast %cst_53 : f32 to vector<2x128xf32>
    %160 = arith.addf %159, %158 : vector<2x128xf32>
    %cst_54 = arith.constant 1.000000e+00 : f32
    %161 = vector.broadcast %cst_54 : f32 to vector<2x128xf32>
    %162 = arith.divf %161, %160 : vector<2x128xf32>
    %163 = vector.extract_strided_slice %152 {offsets = [0, 128], sizes = [2, 128], strides = [1, 1]} : vector<2x384xf32> to vector<2x128xf32>
    %164 = vector.extract_strided_slice %151 {offsets = [0, 128], sizes = [2, 128], strides = [1, 1]} : vector<2x384xf32> to vector<2x128xf32>
    %165 = arith.addf %163, %164 : vector<2x128xf32>
    %cst_55 = arith.constant 0.000000e+00 : f32
    %166 = vector.broadcast %cst_55 : f32 to vector<2x128xf32>
    %167 = arith.subf %166, %165 : vector<2x128xf32>
    %168 = math.exp %167 : vector<2x128xf32>
    %cst_56 = arith.constant 1.000000e+00 : f32
    %169 = vector.broadcast %cst_56 : f32 to vector<2x128xf32>
    %170 = arith.addf %169, %168 : vector<2x128xf32>
    %cst_57 = arith.constant 1.000000e+00 : f32
    %171 = vector.broadcast %cst_57 : f32 to vector<2x128xf32>
    %172 = arith.divf %171, %170 : vector<2x128xf32>
    %173 = vector.extract_strided_slice %152 {offsets = [0, 256], sizes = [2, 128], strides = [1, 1]} : vector<2x384xf32> to vector<2x128xf32>
    %174 = vector.extract_strided_slice %151 {offsets = [0, 256], sizes = [2, 128], strides = [1, 1]} : vector<2x384xf32> to vector<2x128xf32>
    %175 = vector.broadcast %8 : vector<1x128xf32> to vector<2x128xf32>
    %176 = arith.addf %174, %175 : vector<2x128xf32>
    %177 = arith.mulf %162, %176 : vector<2x128xf32>
    %178 = arith.addf %173, %177 : vector<2x128xf32>
    %179 = math.tanh %178 : vector<2x128xf32>
    %cst_58 = arith.constant 1.000000e+00 : f32
    %180 = vector.broadcast %cst_58 : f32 to vector<2x128xf32>
    %181 = arith.subf %180, %172 : vector<2x128xf32>
    %182 = arith.mulf %181, %179 : vector<2x128xf32>
    %183 = arith.mulf %172, %149 : vector<2x128xf32>
    %184 = arith.addf %182, %183 : vector<2x128xf32>
    %c8 = arith.constant 8 : index
    %c0_59 = arith.constant 0 : index
    %185 = vector.load %arg15[%c8, %c0_59] : memref<16x128xf32, #tpu.memory_space<vmem>>, vector<2x128xf32>
    tpu.vector_store %arg15[%c8, %c0_59], %184 {strides = array<i32>} : memref<16x128xf32, #tpu.memory_space<vmem>>, vector<2x128xf32>,
    %cst_60 = arith.constant dense<0.000000e+00> : vector<2x384xf32>
    %186 = tpu.matmul %184, %7, %cst_60 {dimension_numbers = #tpu.dot_dimension_numbers<[1], [0], [0], [1], [0, 0, 1, 1], [], []>} : vector<2x128xf32>, vector<128x384xf32>, vector<2x384xf32> -> vector<2x384xf32>
    %187 = vector.extract_strided_slice %6 {offsets = [10, 0], sizes = [2, 384], strides = [1, 1]} : vector<16x384xf32> to vector<2x384xf32>
    %188 = vector.extract_strided_slice %187 {offsets = [0, 0], sizes = [2, 128], strides = [1, 1]} : vector<2x384xf32> to vector<2x128xf32>
    %189 = vector.extract_strided_slice %186 {offsets = [0, 0], sizes = [2, 128], strides = [1, 1]} : vector<2x384xf32> to vector<2x128xf32>
    %190 = arith.addf %188, %189 : vector<2x128xf32>
    %cst_61 = arith.constant 0.000000e+00 : f32
    %191 = vector.broadcast %cst_61 : f32 to vector<2x128xf32>
    %192 = arith.subf %191, %190 : vector<2x128xf32>
    %193 = math.exp %192 : vector<2x128xf32>
    %cst_62 = arith.constant 1.000000e+00 : f32
    %194 = vector.broadcast %cst_62 : f32 to vector<2x128xf32>
    %195 = arith.addf %194, %193 : vector<2x128xf32>
    %cst_63 = arith.constant 1.000000e+00 : f32
    %196 = vector.broadcast %cst_63 : f32 to vector<2x128xf32>
    %197 = arith.divf %196, %195 : vector<2x128xf32>
    %198 = vector.extract_strided_slice %187 {offsets = [0, 128], sizes = [2, 128], strides = [1, 1]} : vector<2x384xf32> to vector<2x128xf32>
    %199 = vector.extract_strided_slice %186 {offsets = [0, 128], sizes = [2, 128], strides = [1, 1]} : vector<2x384xf32> to vector<2x128xf32>
    %200 = arith.addf %198, %199 : vector<2x128xf32>
    %cst_64 = arith.constant 0.000000e+00 : f32
    %201 = vector.broadcast %cst_64 : f32 to vector<2x128xf32>
    %202 = arith.subf %201, %200 : vector<2x128xf32>
    %203 = math.exp %202 : vector<2x128xf32>
    %cst_65 = arith.constant 1.000000e+00 : f32
    %204 = vector.broadcast %cst_65 : f32 to vector<2x128xf32>
    %205 = arith.addf %204, %203 : vector<2x128xf32>
    %cst_66 = arith.constant 1.000000e+00 : f32
    %206 = vector.broadcast %cst_66 : f32 to vector<2x128xf32>
    %207 = arith.divf %206, %205 : vector<2x128xf32>
    %208 = vector.extract_strided_slice %187 {offsets = [0, 256], sizes = [2, 128], strides = [1, 1]} : vector<2x384xf32> to vector<2x128xf32>
    %209 = vector.extract_strided_slice %186 {offsets = [0, 256], sizes = [2, 128], strides = [1, 1]} : vector<2x384xf32> to vector<2x128xf32>
    %210 = vector.broadcast %8 : vector<1x128xf32> to vector<2x128xf32>
    %211 = arith.addf %209, %210 : vector<2x128xf32>
    %212 = arith.mulf %197, %211 : vector<2x128xf32>
    %213 = arith.addf %208, %212 : vector<2x128xf32>
    %214 = math.tanh %213 : vector<2x128xf32>
    %cst_67 = arith.constant 1.000000e+00 : f32
    %215 = vector.broadcast %cst_67 : f32 to vector<2x128xf32>
    %216 = arith.subf %215, %207 : vector<2x128xf32>
    %217 = arith.mulf %216, %214 : vector<2x128xf32>
    %218 = arith.mulf %207, %184 : vector<2x128xf32>
    %219 = arith.addf %217, %218 : vector<2x128xf32>
    %c10 = arith.constant 10 : index
    %c0_68 = arith.constant 0 : index
    %220 = vector.load %arg15[%c10, %c0_68] : memref<16x128xf32, #tpu.memory_space<vmem>>, vector<2x128xf32>
    tpu.vector_store %arg15[%c10, %c0_68], %219 {strides = array<i32>} : memref<16x128xf32, #tpu.memory_space<vmem>>, vector<2x128xf32>,
    %cst_69 = arith.constant dense<0.000000e+00> : vector<2x384xf32>
    %221 = tpu.matmul %219, %7, %cst_69 {dimension_numbers = #tpu.dot_dimension_numbers<[1], [0], [0], [1], [0, 0, 1, 1], [], []>} : vector<2x128xf32>, vector<128x384xf32>, vector<2x384xf32> -> vector<2x384xf32>
    %222 = vector.extract_strided_slice %6 {offsets = [12, 0], sizes = [2, 384], strides = [1, 1]} : vector<16x384xf32> to vector<2x384xf32>
    %223 = vector.extract_strided_slice %222 {offsets = [0, 0], sizes = [2, 128], strides = [1, 1]} : vector<2x384xf32> to vector<2x128xf32>
    %224 = vector.extract_strided_slice %221 {offsets = [0, 0], sizes = [2, 128], strides = [1, 1]} : vector<2x384xf32> to vector<2x128xf32>
    %225 = arith.addf %223, %224 : vector<2x128xf32>
    %cst_70 = arith.constant 0.000000e+00 : f32
    %226 = vector.broadcast %cst_70 : f32 to vector<2x128xf32>
    %227 = arith.subf %226, %225 : vector<2x128xf32>
    %228 = math.exp %227 : vector<2x128xf32>
    %cst_71 = arith.constant 1.000000e+00 : f32
    %229 = vector.broadcast %cst_71 : f32 to vector<2x128xf32>
    %230 = arith.addf %229, %228 : vector<2x128xf32>
    %cst_72 = arith.constant 1.000000e+00 : f32
    %231 = vector.broadcast %cst_72 : f32 to vector<2x128xf32>
    %232 = arith.divf %231, %230 : vector<2x128xf32>
    %233 = vector.extract_strided_slice %222 {offsets = [0, 128], sizes = [2, 128], strides = [1, 1]} : vector<2x384xf32> to vector<2x128xf32>
    %234 = vector.extract_strided_slice %221 {offsets = [0, 128], sizes = [2, 128], strides = [1, 1]} : vector<2x384xf32> to vector<2x128xf32>
    %235 = arith.addf %233, %234 : vector<2x128xf32>
    %cst_73 = arith.constant 0.000000e+00 : f32
    %236 = vector.broadcast %cst_73 : f32 to vector<2x128xf32>
    %237 = arith.subf %236, %235 : vector<2x128xf32>
    %238 = math.exp %237 : vector<2x128xf32>
    %cst_74 = arith.constant 1.000000e+00 : f32
    %239 = vector.broadcast %cst_74 : f32 to vector<2x128xf32>
    %240 = arith.addf %239, %238 : vector<2x128xf32>
    %cst_75 = arith.constant 1.000000e+00 : f32
    %241 = vector.broadcast %cst_75 : f32 to vector<2x128xf32>
    %242 = arith.divf %241, %240 : vector<2x128xf32>
    %243 = vector.extract_strided_slice %222 {offsets = [0, 256], sizes = [2, 128], strides = [1, 1]} : vector<2x384xf32> to vector<2x128xf32>
    %244 = vector.extract_strided_slice %221 {offsets = [0, 256], sizes = [2, 128], strides = [1, 1]} : vector<2x384xf32> to vector<2x128xf32>
    %245 = vector.broadcast %8 : vector<1x128xf32> to vector<2x128xf32>
    %246 = arith.addf %244, %245 : vector<2x128xf32>
    %247 = arith.mulf %232, %246 : vector<2x128xf32>
    %248 = arith.addf %243, %247 : vector<2x128xf32>
    %249 = math.tanh %248 : vector<2x128xf32>
    %cst_76 = arith.constant 1.000000e+00 : f32
    %250 = vector.broadcast %cst_76 : f32 to vector<2x128xf32>
    %251 = arith.subf %250, %242 : vector<2x128xf32>
    %252 = arith.mulf %251, %249 : vector<2x128xf32>
    %253 = arith.mulf %242, %219 : vector<2x128xf32>
    %254 = arith.addf %252, %253 : vector<2x128xf32>
    %c12 = arith.constant 12 : index
    %c0_77 = arith.constant 0 : index
    %255 = vector.load %arg15[%c12, %c0_77] : memref<16x128xf32, #tpu.memory_space<vmem>>, vector<2x128xf32>
    tpu.vector_store %arg15[%c12, %c0_77], %254 {strides = array<i32>} : memref<16x128xf32, #tpu.memory_space<vmem>>, vector<2x128xf32>,
    %cst_78 = arith.constant dense<0.000000e+00> : vector<2x384xf32>
    %256 = tpu.matmul %254, %7, %cst_78 {dimension_numbers = #tpu.dot_dimension_numbers<[1], [0], [0], [1], [0, 0, 1, 1], [], []>} : vector<2x128xf32>, vector<128x384xf32>, vector<2x384xf32> -> vector<2x384xf32>
    %257 = vector.extract_strided_slice %6 {offsets = [14, 0], sizes = [2, 384], strides = [1, 1]} : vector<16x384xf32> to vector<2x384xf32>
    %258 = vector.extract_strided_slice %257 {offsets = [0, 0], sizes = [2, 128], strides = [1, 1]} : vector<2x384xf32> to vector<2x128xf32>
    %259 = vector.extract_strided_slice %256 {offsets = [0, 0], sizes = [2, 128], strides = [1, 1]} : vector<2x384xf32> to vector<2x128xf32>
    %260 = arith.addf %258, %259 : vector<2x128xf32>
    %cst_79 = arith.constant 0.000000e+00 : f32
    %261 = vector.broadcast %cst_79 : f32 to vector<2x128xf32>
    %262 = arith.subf %261, %260 : vector<2x128xf32>
    %263 = math.exp %262 : vector<2x128xf32>
    %cst_80 = arith.constant 1.000000e+00 : f32
    %264 = vector.broadcast %cst_80 : f32 to vector<2x128xf32>
    %265 = arith.addf %264, %263 : vector<2x128xf32>
    %cst_81 = arith.constant 1.000000e+00 : f32
    %266 = vector.broadcast %cst_81 : f32 to vector<2x128xf32>
    %267 = arith.divf %266, %265 : vector<2x128xf32>
    %268 = vector.extract_strided_slice %257 {offsets = [0, 128], sizes = [2, 128], strides = [1, 1]} : vector<2x384xf32> to vector<2x128xf32>
    %269 = vector.extract_strided_slice %256 {offsets = [0, 128], sizes = [2, 128], strides = [1, 1]} : vector<2x384xf32> to vector<2x128xf32>
    %270 = arith.addf %268, %269 : vector<2x128xf32>
    %cst_82 = arith.constant 0.000000e+00 : f32
    %271 = vector.broadcast %cst_82 : f32 to vector<2x128xf32>
    %272 = arith.subf %271, %270 : vector<2x128xf32>
    %273 = math.exp %272 : vector<2x128xf32>
    %cst_83 = arith.constant 1.000000e+00 : f32
    %274 = vector.broadcast %cst_83 : f32 to vector<2x128xf32>
    %275 = arith.addf %274, %273 : vector<2x128xf32>
    %cst_84 = arith.constant 1.000000e+00 : f32
    %276 = vector.broadcast %cst_84 : f32 to vector<2x128xf32>
    %277 = arith.divf %276, %275 : vector<2x128xf32>
    %278 = vector.extract_strided_slice %257 {offsets = [0, 256], sizes = [2, 128], strides = [1, 1]} : vector<2x384xf32> to vector<2x128xf32>
    %279 = vector.extract_strided_slice %256 {offsets = [0, 256], sizes = [2, 128], strides = [1, 1]} : vector<2x384xf32> to vector<2x128xf32>
    %280 = vector.broadcast %8 : vector<1x128xf32> to vector<2x128xf32>
    %281 = arith.addf %279, %280 : vector<2x128xf32>
    %282 = arith.mulf %267, %281 : vector<2x128xf32>
    %283 = arith.addf %278, %282 : vector<2x128xf32>
    %284 = math.tanh %283 : vector<2x128xf32>
    %cst_85 = arith.constant 1.000000e+00 : f32
    %285 = vector.broadcast %cst_85 : f32 to vector<2x128xf32>
    %286 = arith.subf %285, %277 : vector<2x128xf32>
    %287 = arith.mulf %286, %284 : vector<2x128xf32>
    %288 = arith.mulf %277, %254 : vector<2x128xf32>
    %289 = arith.addf %287, %288 : vector<2x128xf32>
    %c14 = arith.constant 14 : index
    %c0_86 = arith.constant 0 : index
    %290 = vector.load %arg15[%c14, %c0_86] : memref<16x128xf32, #tpu.memory_space<vmem>>, vector<2x128xf32>
    tpu.vector_store %arg15[%c14, %c0_86], %289 {strides = array<i32>} : memref<16x128xf32, #tpu.memory_space<vmem>>, vector<2x128xf32>,
    %c0_87 = arith.constant 0 : index
    %c0_88 = arith.constant 0 : index
    %c0_89 = arith.constant 0 : index
    %c0_90 = arith.constant 0 : index
    %291 = vector.load %arg14[%c0_87, %c0_88, %c0_89, %c0_90] : memref<1x2x2x128xf32, #tpu.memory_space<vmem>>, vector<1x1x2x128xf32>
    %292 = vector.shape_cast %291 : vector<1x1x2x128xf32> to vector<2x128xf32>
    %293 = vector.shape_cast %289 : vector<2x128xf32> to vector<1x1x2x128xf32>
    tpu.vector_store %arg14[%c0_87, %c0_88, %c0_89, %c0_90], %293 {strides = array<i32>} : memref<1x2x2x128xf32, #tpu.memory_space<vmem>>, vector<1x1x2x128xf32>,
    %c0_91 = arith.constant 0 : index
    %c0_92 = arith.constant 0 : index
    %294 = vector.load %arg15[%c0_91, %c0_92] : memref<16x128xf32, #tpu.memory_space<vmem>>, vector<16x128xf32>
    %c0_93 = arith.constant 0 : index
    %c0_94 = arith.constant 0 : index
    %295 = vector.load %arg7[%c0_93, %c0_94] : memref<128x384xf32, #tpu.memory_space<vmem>>, vector<128x384xf32>
    %cst_95 = arith.constant dense<0.000000e+00> : vector<16x384xf32>
    %296 = tpu.matmul %294, %295, %cst_95 {dimension_numbers = #tpu.dot_dimension_numbers<[1], [0], [0], [1], [0, 0, 1, 1], [], []>} : vector<16x128xf32>, vector<128x384xf32>, vector<16x384xf32> -> vector<16x384xf32>
    %c0_96 = arith.constant 0 : index
    %c0_97 = arith.constant 0 : index
    %297 = vector.load %arg9[%c0_96, %c0_97] : memref<1x384xf32, #tpu.memory_space<vmem>>, vector<1x384xf32>
    %298 = vector.broadcast %297 : vector<1x384xf32> to vector<16x384xf32>
    %299 = arith.addf %296, %298 : vector<16x384xf32>
    %c0_98 = arith.constant 0 : index
    %c0_99 = arith.constant 0 : index
    %300 = vector.load %arg8[%c0_98, %c0_99] : memref<128x384xf32, #tpu.memory_space<vmem>>, vector<128x384xf32>
    %c0_100 = arith.constant 0 : index
    %c0_101 = arith.constant 0 : index
    %301 = vector.load %arg10[%c0_100, %c0_101] : memref<1x128xf32, #tpu.memory_space<vmem>>, vector<1x128xf32>
    %c0_102 = arith.constant 0 : index
    %c1 = arith.constant 1 : index
    %c0_103 = arith.constant 0 : index
    %c0_104 = arith.constant 0 : index
    %302 = vector.load %arg2[%c0_102, %c1, %c0_103, %c0_104] : memref<1x2x2x128xf32, #tpu.memory_space<vmem>>, vector<1x1x2x128xf32>
    %303 = vector.shape_cast %302 : vector<1x1x2x128xf32> to vector<2x128xf32>
    %cst_105 = arith.constant dense<0.000000e+00> : vector<2x384xf32>
    %304 = tpu.matmul %303, %300, %cst_105 {dimension_numbers = #tpu.dot_dimension_numbers<[1], [0], [0], [1], [0, 0, 1, 1], [], []>} : vector<2x128xf32>, vector<128x384xf32>, vector<2x384xf32> -> vector<2x384xf32>
    %305 = vector.extract_strided_slice %299 {offsets = [0, 0], sizes = [2, 384], strides = [1, 1]} : vector<16x384xf32> to vector<2x384xf32>
    %306 = vector.extract_strided_slice %305 {offsets = [0, 0], sizes = [2, 128], strides = [1, 1]} : vector<2x384xf32> to vector<2x128xf32>
    %307 = vector.extract_strided_slice %304 {offsets = [0, 0], sizes = [2, 128], strides = [1, 1]} : vector<2x384xf32> to vector<2x128xf32>
    %308 = arith.addf %306, %307 : vector<2x128xf32>
    %cst_106 = arith.constant 0.000000e+00 : f32
    %309 = vector.broadcast %cst_106 : f32 to vector<2x128xf32>
    %310 = arith.subf %309, %308 : vector<2x128xf32>
    %311 = math.exp %310 : vector<2x128xf32>
    %cst_107 = arith.constant 1.000000e+00 : f32
    %312 = vector.broadcast %cst_107 : f32 to vector<2x128xf32>
    %313 = arith.addf %312, %311 : vector<2x128xf32>
    %cst_108 = arith.constant 1.000000e+00 : f32
    %314 = vector.broadcast %cst_108 : f32 to vector<2x128xf32>
    %315 = arith.divf %314, %313 : vector<2x128xf32>
    %316 = vector.extract_strided_slice %305 {offsets = [0, 128], sizes = [2, 128], strides = [1, 1]} : vector<2x384xf32> to vector<2x128xf32>
    %317 = vector.extract_strided_slice %304 {offsets = [0, 128], sizes = [2, 128], strides = [1, 1]} : vector<2x384xf32> to vector<2x128xf32>
    %318 = arith.addf %316, %317 : vector<2x128xf32>
    %cst_109 = arith.constant 0.000000e+00 : f32
    %319 = vector.broadcast %cst_109 : f32 to vector<2x128xf32>
    %320 = arith.subf %319, %318 : vector<2x128xf32>
    %321 = math.exp %320 : vector<2x128xf32>
    %cst_110 = arith.constant 1.000000e+00 : f32
    %322 = vector.broadcast %cst_110 : f32 to vector<2x128xf32>
    %323 = arith.addf %322, %321 : vector<2x128xf32>
    %cst_111 = arith.constant 1.000000e+00 : f32
    %324 = vector.broadcast %cst_111 : f32 to vector<2x128xf32>
    %325 = arith.divf %324, %323 : vector<2x128xf32>
    %326 = vector.extract_strided_slice %305 {offsets = [0, 256], sizes = [2, 128], strides = [1, 1]} : vector<2x384xf32> to vector<2x128xf32>
    %327 = vector.extract_strided_slice %304 {offsets = [0, 256], sizes = [2, 128], strides = [1, 1]} : vector<2x384xf32> to vector<2x128xf32>
    %328 = vector.broadcast %301 : vector<1x128xf32> to vector<2x128xf32>
    %329 = arith.addf %327, %328 : vector<2x128xf32>
    %330 = arith.mulf %315, %329 : vector<2x128xf32>
    %331 = arith.addf %326, %330 : vector<2x128xf32>
    %332 = math.tanh %331 : vector<2x128xf32>
    %cst_112 = arith.constant 1.000000e+00 : f32
    %333 = vector.broadcast %cst_112 : f32 to vector<2x128xf32>
    %334 = arith.subf %333, %325 : vector<2x128xf32>
    %335 = arith.mulf %334, %332 : vector<2x128xf32>
    %336 = arith.mulf %325, %303 : vector<2x128xf32>
    %337 = arith.addf %335, %336 : vector<2x128xf32>
    %c0_113 = arith.constant 0 : index
    %c0_114 = arith.constant 0 : index
    %338 = vector.load %arg15[%c0_113, %c0_114] : memref<16x128xf32, #tpu.memory_space<vmem>>, vector<2x128xf32>
    tpu.vector_store %arg15[%c0_113, %c0_114], %337 {strides = array<i32>} : memref<16x128xf32, #tpu.memory_space<vmem>>, vector<2x128xf32>,
    %cst_115 = arith.constant dense<0.000000e+00> : vector<2x384xf32>
    %339 = tpu.matmul %337, %300, %cst_115 {dimension_numbers = #tpu.dot_dimension_numbers<[1], [0], [0], [1], [0, 0, 1, 1], [], []>} : vector<2x128xf32>, vector<128x384xf32>, vector<2x384xf32> -> vector<2x384xf32>
    %340 = vector.extract_strided_slice %299 {offsets = [2, 0], sizes = [2, 384], strides = [1, 1]} : vector<16x384xf32> to vector<2x384xf32>
    %341 = vector.extract_strided_slice %340 {offsets = [0, 0], sizes = [2, 128], strides = [1, 1]} : vector<2x384xf32> to vector<2x128xf32>
    %342 = vector.extract_strided_slice %339 {offsets = [0, 0], sizes = [2, 128], strides = [1, 1]} : vector<2x384xf32> to vector<2x128xf32>
    %343 = arith.addf %341, %342 : vector<2x128xf32>
    %cst_116 = arith.constant 0.000000e+00 : f32
    %344 = vector.broadcast %cst_116 : f32 to vector<2x128xf32>
    %345 = arith.subf %344, %343 : vector<2x128xf32>
    %346 = math.exp %345 : vector<2x128xf32>
    %cst_117 = arith.constant 1.000000e+00 : f32
    %347 = vector.broadcast %cst_117 : f32 to vector<2x128xf32>
    %348 = arith.addf %347, %346 : vector<2x128xf32>
    %cst_118 = arith.constant 1.000000e+00 : f32
    %349 = vector.broadcast %cst_118 : f32 to vector<2x128xf32>
    %350 = arith.divf %349, %348 : vector<2x128xf32>
    %351 = vector.extract_strided_slice %340 {offsets = [0, 128], sizes = [2, 128], strides = [1, 1]} : vector<2x384xf32> to vector<2x128xf32>
    %352 = vector.extract_strided_slice %339 {offsets = [0, 128], sizes = [2, 128], strides = [1, 1]} : vector<2x384xf32> to vector<2x128xf32>
    %353 = arith.addf %351, %352 : vector<2x128xf32>
    %cst_119 = arith.constant 0.000000e+00 : f32
    %354 = vector.broadcast %cst_119 : f32 to vector<2x128xf32>
    %355 = arith.subf %354, %353 : vector<2x128xf32>
    %356 = math.exp %355 : vector<2x128xf32>
    %cst_120 = arith.constant 1.000000e+00 : f32
    %357 = vector.broadcast %cst_120 : f32 to vector<2x128xf32>
    %358 = arith.addf %357, %356 : vector<2x128xf32>
    %cst_121 = arith.constant 1.000000e+00 : f32
    %359 = vector.broadcast %cst_121 : f32 to vector<2x128xf32>
    %360 = arith.divf %359, %358 : vector<2x128xf32>
    %361 = vector.extract_strided_slice %340 {offsets = [0, 256], sizes = [2, 128], strides = [1, 1]} : vector<2x384xf32> to vector<2x128xf32>
    %362 = vector.extract_strided_slice %339 {offsets = [0, 256], sizes = [2, 128], strides = [1, 1]} : vector<2x384xf32> to vector<2x128xf32>
    %363 = vector.broadcast %301 : vector<1x128xf32> to vector<2x128xf32>
    %364 = arith.addf %362, %363 : vector<2x128xf32>
    %365 = arith.mulf %350, %364 : vector<2x128xf32>
    %366 = arith.addf %361, %365 : vector<2x128xf32>
    %367 = math.tanh %366 : vector<2x128xf32>
    %cst_122 = arith.constant 1.000000e+00 : f32
    %368 = vector.broadcast %cst_122 : f32 to vector<2x128xf32>
    %369 = arith.subf %368, %360 : vector<2x128xf32>
    %370 = arith.mulf %369, %367 : vector<2x128xf32>
    %371 = arith.mulf %360, %337 : vector<2x128xf32>
    %372 = arith.addf %370, %371 : vector<2x128xf32>
    %c2_123 = arith.constant 2 : index
    %c0_124 = arith.constant 0 : index
    %373 = vector.load %arg15[%c2_123, %c0_124] : memref<16x128xf32, #tpu.memory_space<vmem>>, vector<2x128xf32>
    tpu.vector_store %arg15[%c2_123, %c0_124], %372 {strides = array<i32>} : memref<16x128xf32, #tpu.memory_space<vmem>>, vector<2x128xf32>,
    %cst_125 = arith.constant dense<0.000000e+00> : vector<2x384xf32>
    %374 = tpu.matmul %372, %300, %cst_125 {dimension_numbers = #tpu.dot_dimension_numbers<[1], [0], [0], [1], [0, 0, 1, 1], [], []>} : vector<2x128xf32>, vector<128x384xf32>, vector<2x384xf32> -> vector<2x384xf32>
    %375 = vector.extract_strided_slice %299 {offsets = [4, 0], sizes = [2, 384], strides = [1, 1]} : vector<16x384xf32> to vector<2x384xf32>
    %376 = vector.extract_strided_slice %375 {offsets = [0, 0], sizes = [2, 128], strides = [1, 1]} : vector<2x384xf32> to vector<2x128xf32>
    %377 = vector.extract_strided_slice %374 {offsets = [0, 0], sizes = [2, 128], strides = [1, 1]} : vector<2x384xf32> to vector<2x128xf32>
    %378 = arith.addf %376, %377 : vector<2x128xf32>
    %cst_126 = arith.constant 0.000000e+00 : f32
    %379 = vector.broadcast %cst_126 : f32 to vector<2x128xf32>
    %380 = arith.subf %379, %378 : vector<2x128xf32>
    %381 = math.exp %380 : vector<2x128xf32>
    %cst_127 = arith.constant 1.000000e+00 : f32
    %382 = vector.broadcast %cst_127 : f32 to vector<2x128xf32>
    %383 = arith.addf %382, %381 : vector<2x128xf32>
    %cst_128 = arith.constant 1.000000e+00 : f32
    %384 = vector.broadcast %cst_128 : f32 to vector<2x128xf32>
    %385 = arith.divf %384, %383 : vector<2x128xf32>
    %386 = vector.extract_strided_slice %375 {offsets = [0, 128], sizes = [2, 128], strides = [1, 1]} : vector<2x384xf32> to vector<2x128xf32>
    %387 = vector.extract_strided_slice %374 {offsets = [0, 128], sizes = [2, 128], strides = [1, 1]} : vector<2x384xf32> to vector<2x128xf32>
    %388 = arith.addf %386, %387 : vector<2x128xf32>
    %cst_129 = arith.constant 0.000000e+00 : f32
    %389 = vector.broadcast %cst_129 : f32 to vector<2x128xf32>
    %390 = arith.subf %389, %388 : vector<2x128xf32>
    %391 = math.exp %390 : vector<2x128xf32>
    %cst_130 = arith.constant 1.000000e+00 : f32
    %392 = vector.broadcast %cst_130 : f32 to vector<2x128xf32>
    %393 = arith.addf %392, %391 : vector<2x128xf32>
    %cst_131 = arith.constant 1.000000e+00 : f32
    %394 = vector.broadcast %cst_131 : f32 to vector<2x128xf32>
    %395 = arith.divf %394, %393 : vector<2x128xf32>
    %396 = vector.extract_strided_slice %375 {offsets = [0, 256], sizes = [2, 128], strides = [1, 1]} : vector<2x384xf32> to vector<2x128xf32>
    %397 = vector.extract_strided_slice %374 {offsets = [0, 256], sizes = [2, 128], strides = [1, 1]} : vector<2x384xf32> to vector<2x128xf32>
    %398 = vector.broadcast %301 : vector<1x128xf32> to vector<2x128xf32>
    %399 = arith.addf %397, %398 : vector<2x128xf32>
    %400 = arith.mulf %385, %399 : vector<2x128xf32>
    %401 = arith.addf %396, %400 : vector<2x128xf32>
    %402 = math.tanh %401 : vector<2x128xf32>
    %cst_132 = arith.constant 1.000000e+00 : f32
    %403 = vector.broadcast %cst_132 : f32 to vector<2x128xf32>
    %404 = arith.subf %403, %395 : vector<2x128xf32>
    %405 = arith.mulf %404, %402 : vector<2x128xf32>
    %406 = arith.mulf %395, %372 : vector<2x128xf32>
    %407 = arith.addf %405, %406 : vector<2x128xf32>
    %c4_133 = arith.constant 4 : index
    %c0_134 = arith.constant 0 : index
    %408 = vector.load %arg15[%c4_133, %c0_134] : memref<16x128xf32, #tpu.memory_space<vmem>>, vector<2x128xf32>
    tpu.vector_store %arg15[%c4_133, %c0_134], %407 {strides = array<i32>} : memref<16x128xf32, #tpu.memory_space<vmem>>, vector<2x128xf32>,
    %cst_135 = arith.constant dense<0.000000e+00> : vector<2x384xf32>
    %409 = tpu.matmul %407, %300, %cst_135 {dimension_numbers = #tpu.dot_dimension_numbers<[1], [0], [0], [1], [0, 0, 1, 1], [], []>} : vector<2x128xf32>, vector<128x384xf32>, vector<2x384xf32> -> vector<2x384xf32>
    %410 = vector.extract_strided_slice %299 {offsets = [6, 0], sizes = [2, 384], strides = [1, 1]} : vector<16x384xf32> to vector<2x384xf32>
    %411 = vector.extract_strided_slice %410 {offsets = [0, 0], sizes = [2, 128], strides = [1, 1]} : vector<2x384xf32> to vector<2x128xf32>
    %412 = vector.extract_strided_slice %409 {offsets = [0, 0], sizes = [2, 128], strides = [1, 1]} : vector<2x384xf32> to vector<2x128xf32>
    %413 = arith.addf %411, %412 : vector<2x128xf32>
    %cst_136 = arith.constant 0.000000e+00 : f32
    %414 = vector.broadcast %cst_136 : f32 to vector<2x128xf32>
    %415 = arith.subf %414, %413 : vector<2x128xf32>
    %416 = math.exp %415 : vector<2x128xf32>
    %cst_137 = arith.constant 1.000000e+00 : f32
    %417 = vector.broadcast %cst_137 : f32 to vector<2x128xf32>
    %418 = arith.addf %417, %416 : vector<2x128xf32>
    %cst_138 = arith.constant 1.000000e+00 : f32
    %419 = vector.broadcast %cst_138 : f32 to vector<2x128xf32>
    %420 = arith.divf %419, %418 : vector<2x128xf32>
    %421 = vector.extract_strided_slice %410 {offsets = [0, 128], sizes = [2, 128], strides = [1, 1]} : vector<2x384xf32> to vector<2x128xf32>
    %422 = vector.extract_strided_slice %409 {offsets = [0, 128], sizes = [2, 128], strides = [1, 1]} : vector<2x384xf32> to vector<2x128xf32>
    %423 = arith.addf %421, %422 : vector<2x128xf32>
    %cst_139 = arith.constant 0.000000e+00 : f32
    %424 = vector.broadcast %cst_139 : f32 to vector<2x128xf32>
    %425 = arith.subf %424, %423 : vector<2x128xf32>
    %426 = math.exp %425 : vector<2x128xf32>
    %cst_140 = arith.constant 1.000000e+00 : f32
    %427 = vector.broadcast %cst_140 : f32 to vector<2x128xf32>
    %428 = arith.addf %427, %426 : vector<2x128xf32>
    %cst_141 = arith.constant 1.000000e+00 : f32
    %429 = vector.broadcast %cst_141 : f32 to vector<2x128xf32>
    %430 = arith.divf %429, %428 : vector<2x128xf32>
    %431 = vector.extract_strided_slice %410 {offsets = [0, 256], sizes = [2, 128], strides = [1, 1]} : vector<2x384xf32> to vector<2x128xf32>
    %432 = vector.extract_strided_slice %409 {offsets = [0, 256], sizes = [2, 128], strides = [1, 1]} : vector<2x384xf32> to vector<2x128xf32>
    %433 = vector.broadcast %301 : vector<1x128xf32> to vector<2x128xf32>
    %434 = arith.addf %432, %433 : vector<2x128xf32>
    %435 = arith.mulf %420, %434 : vector<2x128xf32>
    %436 = arith.addf %431, %435 : vector<2x128xf32>
    %437 = math.tanh %436 : vector<2x128xf32>
    %cst_142 = arith.constant 1.000000e+00 : f32
    %438 = vector.broadcast %cst_142 : f32 to vector<2x128xf32>
    %439 = arith.subf %438, %430 : vector<2x128xf32>
    %440 = arith.mulf %439, %437 : vector<2x128xf32>
    %441 = arith.mulf %430, %407 : vector<2x128xf32>
    %442 = arith.addf %440, %441 : vector<2x128xf32>
    %c6_143 = arith.constant 6 : index
    %c0_144 = arith.constant 0 : index
    %443 = vector.load %arg15[%c6_143, %c0_144] : memref<16x128xf32, #tpu.memory_space<vmem>>, vector<2x128xf32>
    tpu.vector_store %arg15[%c6_143, %c0_144], %442 {strides = array<i32>} : memref<16x128xf32, #tpu.memory_space<vmem>>, vector<2x128xf32>,
    %cst_145 = arith.constant dense<0.000000e+00> : vector<2x384xf32>
    %444 = tpu.matmul %442, %300, %cst_145 {dimension_numbers = #tpu.dot_dimension_numbers<[1], [0], [0], [1], [0, 0, 1, 1], [], []>} : vector<2x128xf32>, vector<128x384xf32>, vector<2x384xf32> -> vector<2x384xf32>
    %445 = vector.extract_strided_slice %299 {offsets = [8, 0], sizes = [2, 384], strides = [1, 1]} : vector<16x384xf32> to vector<2x384xf32>
    %446 = vector.extract_strided_slice %445 {offsets = [0, 0], sizes = [2, 128], strides = [1, 1]} : vector<2x384xf32> to vector<2x128xf32>
    %447 = vector.extract_strided_slice %444 {offsets = [0, 0], sizes = [2, 128], strides = [1, 1]} : vector<2x384xf32> to vector<2x128xf32>
    %448 = arith.addf %446, %447 : vector<2x128xf32>
    %cst_146 = arith.constant 0.000000e+00 : f32
    %449 = vector.broadcast %cst_146 : f32 to vector<2x128xf32>
    %450 = arith.subf %449, %448 : vector<2x128xf32>
    %451 = math.exp %450 : vector<2x128xf32>
    %cst_147 = arith.constant 1.000000e+00 : f32
    %452 = vector.broadcast %cst_147 : f32 to vector<2x128xf32>
    %453 = arith.addf %452, %451 : vector<2x128xf32>
    %cst_148 = arith.constant 1.000000e+00 : f32
    %454 = vector.broadcast %cst_148 : f32 to vector<2x128xf32>
    %455 = arith.divf %454, %453 : vector<2x128xf32>
    %456 = vector.extract_strided_slice %445 {offsets = [0, 128], sizes = [2, 128], strides = [1, 1]} : vector<2x384xf32> to vector<2x128xf32>
    %457 = vector.extract_strided_slice %444 {offsets = [0, 128], sizes = [2, 128], strides = [1, 1]} : vector<2x384xf32> to vector<2x128xf32>
    %458 = arith.addf %456, %457 : vector<2x128xf32>
    %cst_149 = arith.constant 0.000000e+00 : f32
    %459 = vector.broadcast %cst_149 : f32 to vector<2x128xf32>
    %460 = arith.subf %459, %458 : vector<2x128xf32>
    %461 = math.exp %460 : vector<2x128xf32>
    %cst_150 = arith.constant 1.000000e+00 : f32
    %462 = vector.broadcast %cst_150 : f32 to vector<2x128xf32>
    %463 = arith.addf %462, %461 : vector<2x128xf32>
    %cst_151 = arith.constant 1.000000e+00 : f32
    %464 = vector.broadcast %cst_151 : f32 to vector<2x128xf32>
    %465 = arith.divf %464, %463 : vector<2x128xf32>
    %466 = vector.extract_strided_slice %445 {offsets = [0, 256], sizes = [2, 128], strides = [1, 1]} : vector<2x384xf32> to vector<2x128xf32>
    %467 = vector.extract_strided_slice %444 {offsets = [0, 256], sizes = [2, 128], strides = [1, 1]} : vector<2x384xf32> to vector<2x128xf32>
    %468 = vector.broadcast %301 : vector<1x128xf32> to vector<2x128xf32>
    %469 = arith.addf %467, %468 : vector<2x128xf32>
    %470 = arith.mulf %455, %469 : vector<2x128xf32>
    %471 = arith.addf %466, %470 : vector<2x128xf32>
    %472 = math.tanh %471 : vector<2x128xf32>
    %cst_152 = arith.constant 1.000000e+00 : f32
    %473 = vector.broadcast %cst_152 : f32 to vector<2x128xf32>
    %474 = arith.subf %473, %465 : vector<2x128xf32>
    %475 = arith.mulf %474, %472 : vector<2x128xf32>
    %476 = arith.mulf %465, %442 : vector<2x128xf32>
    %477 = arith.addf %475, %476 : vector<2x128xf32>
    %c8_153 = arith.constant 8 : index
    %c0_154 = arith.constant 0 : index
    %478 = vector.load %arg15[%c8_153, %c0_154] : memref<16x128xf32, #tpu.memory_space<vmem>>, vector<2x128xf32>
    tpu.vector_store %arg15[%c8_153, %c0_154], %477 {strides = array<i32>} : memref<16x128xf32, #tpu.memory_space<vmem>>, vector<2x128xf32>,
    %cst_155 = arith.constant dense<0.000000e+00> : vector<2x384xf32>
    %479 = tpu.matmul %477, %300, %cst_155 {dimension_numbers = #tpu.dot_dimension_numbers<[1], [0], [0], [1], [0, 0, 1, 1], [], []>} : vector<2x128xf32>, vector<128x384xf32>, vector<2x384xf32> -> vector<2x384xf32>
    %480 = vector.extract_strided_slice %299 {offsets = [10, 0], sizes = [2, 384], strides = [1, 1]} : vector<16x384xf32> to vector<2x384xf32>
    %481 = vector.extract_strided_slice %480 {offsets = [0, 0], sizes = [2, 128], strides = [1, 1]} : vector<2x384xf32> to vector<2x128xf32>
    %482 = vector.extract_strided_slice %479 {offsets = [0, 0], sizes = [2, 128], strides = [1, 1]} : vector<2x384xf32> to vector<2x128xf32>
    %483 = arith.addf %481, %482 : vector<2x128xf32>
    %cst_156 = arith.constant 0.000000e+00 : f32
    %484 = vector.broadcast %cst_156 : f32 to vector<2x128xf32>
    %485 = arith.subf %484, %483 : vector<2x128xf32>
    %486 = math.exp %485 : vector<2x128xf32>
    %cst_157 = arith.constant 1.000000e+00 : f32
    %487 = vector.broadcast %cst_157 : f32 to vector<2x128xf32>
    %488 = arith.addf %487, %486 : vector<2x128xf32>
    %cst_158 = arith.constant 1.000000e+00 : f32
    %489 = vector.broadcast %cst_158 : f32 to vector<2x128xf32>
    %490 = arith.divf %489, %488 : vector<2x128xf32>
    %491 = vector.extract_strided_slice %480 {offsets = [0, 128], sizes = [2, 128], strides = [1, 1]} : vector<2x384xf32> to vector<2x128xf32>
    %492 = vector.extract_strided_slice %479 {offsets = [0, 128], sizes = [2, 128], strides = [1, 1]} : vector<2x384xf32> to vector<2x128xf32>
    %493 = arith.addf %491, %492 : vector<2x128xf32>
    %cst_159 = arith.constant 0.000000e+00 : f32
    %494 = vector.broadcast %cst_159 : f32 to vector<2x128xf32>
    %495 = arith.subf %494, %493 : vector<2x128xf32>
    %496 = math.exp %495 : vector<2x128xf32>
    %cst_160 = arith.constant 1.000000e+00 : f32
    %497 = vector.broadcast %cst_160 : f32 to vector<2x128xf32>
    %498 = arith.addf %497, %496 : vector<2x128xf32>
    %cst_161 = arith.constant 1.000000e+00 : f32
    %499 = vector.broadcast %cst_161 : f32 to vector<2x128xf32>
    %500 = arith.divf %499, %498 : vector<2x128xf32>
    %501 = vector.extract_strided_slice %480 {offsets = [0, 256], sizes = [2, 128], strides = [1, 1]} : vector<2x384xf32> to vector<2x128xf32>
    %502 = vector.extract_strided_slice %479 {offsets = [0, 256], sizes = [2, 128], strides = [1, 1]} : vector<2x384xf32> to vector<2x128xf32>
    %503 = vector.broadcast %301 : vector<1x128xf32> to vector<2x128xf32>
    %504 = arith.addf %502, %503 : vector<2x128xf32>
    %505 = arith.mulf %490, %504 : vector<2x128xf32>
    %506 = arith.addf %501, %505 : vector<2x128xf32>
    %507 = math.tanh %506 : vector<2x128xf32>
    %cst_162 = arith.constant 1.000000e+00 : f32
    %508 = vector.broadcast %cst_162 : f32 to vector<2x128xf32>
    %509 = arith.subf %508, %500 : vector<2x128xf32>
    %510 = arith.mulf %509, %507 : vector<2x128xf32>
    %511 = arith.mulf %500, %477 : vector<2x128xf32>
    %512 = arith.addf %510, %511 : vector<2x128xf32>
    %c10_163 = arith.constant 10 : index
    %c0_164 = arith.constant 0 : index
    %513 = vector.load %arg15[%c10_163, %c0_164] : memref<16x128xf32, #tpu.memory_space<vmem>>, vector<2x128xf32>
    tpu.vector_store %arg15[%c10_163, %c0_164], %512 {strides = array<i32>} : memref<16x128xf32, #tpu.memory_space<vmem>>, vector<2x128xf32>,
    %cst_165 = arith.constant dense<0.000000e+00> : vector<2x384xf32>
    %514 = tpu.matmul %512, %300, %cst_165 {dimension_numbers = #tpu.dot_dimension_numbers<[1], [0], [0], [1], [0, 0, 1, 1], [], []>} : vector<2x128xf32>, vector<128x384xf32>, vector<2x384xf32> -> vector<2x384xf32>
    %515 = vector.extract_strided_slice %299 {offsets = [12, 0], sizes = [2, 384], strides = [1, 1]} : vector<16x384xf32> to vector<2x384xf32>
    %516 = vector.extract_strided_slice %515 {offsets = [0, 0], sizes = [2, 128], strides = [1, 1]} : vector<2x384xf32> to vector<2x128xf32>
    %517 = vector.extract_strided_slice %514 {offsets = [0, 0], sizes = [2, 128], strides = [1, 1]} : vector<2x384xf32> to vector<2x128xf32>
    %518 = arith.addf %516, %517 : vector<2x128xf32>
    %cst_166 = arith.constant 0.000000e+00 : f32
    %519 = vector.broadcast %cst_166 : f32 to vector<2x128xf32>
    %520 = arith.subf %519, %518 : vector<2x128xf32>
    %521 = math.exp %520 : vector<2x128xf32>
    %cst_167 = arith.constant 1.000000e+00 : f32
    %522 = vector.broadcast %cst_167 : f32 to vector<2x128xf32>
    %523 = arith.addf %522, %521 : vector<2x128xf32>
    %cst_168 = arith.constant 1.000000e+00 : f32
    %524 = vector.broadcast %cst_168 : f32 to vector<2x128xf32>
    %525 = arith.divf %524, %523 : vector<2x128xf32>
    %526 = vector.extract_strided_slice %515 {offsets = [0, 128], sizes = [2, 128], strides = [1, 1]} : vector<2x384xf32> to vector<2x128xf32>
    %527 = vector.extract_strided_slice %514 {offsets = [0, 128], sizes = [2, 128], strides = [1, 1]} : vector<2x384xf32> to vector<2x128xf32>
    %528 = arith.addf %526, %527 : vector<2x128xf32>
    %cst_169 = arith.constant 0.000000e+00 : f32
    %529 = vector.broadcast %cst_169 : f32 to vector<2x128xf32>
    %530 = arith.subf %529, %528 : vector<2x128xf32>
    %531 = math.exp %530 : vector<2x128xf32>
    %cst_170 = arith.constant 1.000000e+00 : f32
    %532 = vector.broadcast %cst_170 : f32 to vector<2x128xf32>
    %533 = arith.addf %532, %531 : vector<2x128xf32>
    %cst_171 = arith.constant 1.000000e+00 : f32
    %534 = vector.broadcast %cst_171 : f32 to vector<2x128xf32>
    %535 = arith.divf %534, %533 : vector<2x128xf32>
    %536 = vector.extract_strided_slice %515 {offsets = [0, 256], sizes = [2, 128], strides = [1, 1]} : vector<2x384xf32> to vector<2x128xf32>
    %537 = vector.extract_strided_slice %514 {offsets = [0, 256], sizes = [2, 128], strides = [1, 1]} : vector<2x384xf32> to vector<2x128xf32>
    %538 = vector.broadcast %301 : vector<1x128xf32> to vector<2x128xf32>
    %539 = arith.addf %537, %538 : vector<2x128xf32>
    %540 = arith.mulf %525, %539 : vector<2x128xf32>
    %541 = arith.addf %536, %540 : vector<2x128xf32>
    %542 = math.tanh %541 : vector<2x128xf32>
    %cst_172 = arith.constant 1.000000e+00 : f32
    %543 = vector.broadcast %cst_172 : f32 to vector<2x128xf32>
    %544 = arith.subf %543, %535 : vector<2x128xf32>
    %545 = arith.mulf %544, %542 : vector<2x128xf32>
    %546 = arith.mulf %535, %512 : vector<2x128xf32>
    %547 = arith.addf %545, %546 : vector<2x128xf32>
    %c12_173 = arith.constant 12 : index
    %c0_174 = arith.constant 0 : index
    %548 = vector.load %arg15[%c12_173, %c0_174] : memref<16x128xf32, #tpu.memory_space<vmem>>, vector<2x128xf32>
    tpu.vector_store %arg15[%c12_173, %c0_174], %547 {strides = array<i32>} : memref<16x128xf32, #tpu.memory_space<vmem>>, vector<2x128xf32>,
    %cst_175 = arith.constant dense<0.000000e+00> : vector<2x384xf32>
    %549 = tpu.matmul %547, %300, %cst_175 {dimension_numbers = #tpu.dot_dimension_numbers<[1], [0], [0], [1], [0, 0, 1, 1], [], []>} : vector<2x128xf32>, vector<128x384xf32>, vector<2x384xf32> -> vector<2x384xf32>
    %550 = vector.extract_strided_slice %299 {offsets = [14, 0], sizes = [2, 384], strides = [1, 1]} : vector<16x384xf32> to vector<2x384xf32>
    %551 = vector.extract_strided_slice %550 {offsets = [0, 0], sizes = [2, 128], strides = [1, 1]} : vector<2x384xf32> to vector<2x128xf32>
    %552 = vector.extract_strided_slice %549 {offsets = [0, 0], sizes = [2, 128], strides = [1, 1]} : vector<2x384xf32> to vector<2x128xf32>
    %553 = arith.addf %551, %552 : vector<2x128xf32>
    %cst_176 = arith.constant 0.000000e+00 : f32
    %554 = vector.broadcast %cst_176 : f32 to vector<2x128xf32>
    %555 = arith.subf %554, %553 : vector<2x128xf32>
    %556 = math.exp %555 : vector<2x128xf32>
    %cst_177 = arith.constant 1.000000e+00 : f32
    %557 = vector.broadcast %cst_177 : f32 to vector<2x128xf32>
    %558 = arith.addf %557, %556 : vector<2x128xf32>
    %cst_178 = arith.constant 1.000000e+00 : f32
    %559 = vector.broadcast %cst_178 : f32 to vector<2x128xf32>
    %560 = arith.divf %559, %558 : vector<2x128xf32>
    %561 = vector.extract_strided_slice %550 {offsets = [0, 128], sizes = [2, 128], strides = [1, 1]} : vector<2x384xf32> to vector<2x128xf32>
    %562 = vector.extract_strided_slice %549 {offsets = [0, 128], sizes = [2, 128], strides = [1, 1]} : vector<2x384xf32> to vector<2x128xf32>
    %563 = arith.addf %561, %562 : vector<2x128xf32>
    %cst_179 = arith.constant 0.000000e+00 : f32
    %564 = vector.broadcast %cst_179 : f32 to vector<2x128xf32>
    %565 = arith.subf %564, %563 : vector<2x128xf32>
    %566 = math.exp %565 : vector<2x128xf32>
    %cst_180 = arith.constant 1.000000e+00 : f32
    %567 = vector.broadcast %cst_180 : f32 to vector<2x128xf32>
    %568 = arith.addf %567, %566 : vector<2x128xf32>
    %cst_181 = arith.constant 1.000000e+00 : f32
    %569 = vector.broadcast %cst_181 : f32 to vector<2x128xf32>
    %570 = arith.divf %569, %568 : vector<2x128xf32>
    %571 = vector.extract_strided_slice %550 {offsets = [0, 256], sizes = [2, 128], strides = [1, 1]} : vector<2x384xf32> to vector<2x128xf32>
    %572 = vector.extract_strided_slice %549 {offsets = [0, 256], sizes = [2, 128], strides = [1, 1]} : vector<2x384xf32> to vector<2x128xf32>
    %573 = vector.broadcast %301 : vector<1x128xf32> to vector<2x128xf32>
    %574 = arith.addf %572, %573 : vector<2x128xf32>
    %575 = arith.mulf %560, %574 : vector<2x128xf32>
    %576 = arith.addf %571, %575 : vector<2x128xf32>
    %577 = math.tanh %576 : vector<2x128xf32>
    %cst_182 = arith.constant 1.000000e+00 : f32
    %578 = vector.broadcast %cst_182 : f32 to vector<2x128xf32>
    %579 = arith.subf %578, %570 : vector<2x128xf32>
    %580 = arith.mulf %579, %577 : vector<2x128xf32>
    %581 = arith.mulf %570, %547 : vector<2x128xf32>
    %582 = arith.addf %580, %581 : vector<2x128xf32>
    %c14_183 = arith.constant 14 : index
    %c0_184 = arith.constant 0 : index
    %583 = vector.load %arg15[%c14_183, %c0_184] : memref<16x128xf32, #tpu.memory_space<vmem>>, vector<2x128xf32>
    tpu.vector_store %arg15[%c14_183, %c0_184], %582 {strides = array<i32>} : memref<16x128xf32, #tpu.memory_space<vmem>>, vector<2x128xf32>,
    %c0_185 = arith.constant 0 : index
    %c1_186 = arith.constant 1 : index
    %c0_187 = arith.constant 0 : index
    %c0_188 = arith.constant 0 : index
    %584 = vector.load %arg14[%c0_185, %c1_186, %c0_187, %c0_188] : memref<1x2x2x128xf32, #tpu.memory_space<vmem>>, vector<1x1x2x128xf32>
    %585 = vector.shape_cast %584 : vector<1x1x2x128xf32> to vector<2x128xf32>
    %586 = vector.shape_cast %582 : vector<2x128xf32> to vector<1x1x2x128xf32>
    tpu.vector_store %arg14[%c0_185, %c1_186, %c0_187, %c0_188], %586 {strides = array<i32>} : memref<1x2x2x128xf32, #tpu.memory_space<vmem>>, vector<1x1x2x128xf32>,
    %c0_189 = arith.constant 0 : index
    %c0_190 = arith.constant 0 : index
    %587 = vector.load %arg15[%c0_189, %c0_190] : memref<16x128xf32, #tpu.memory_space<vmem>>, vector<16x128xf32>
    %c0_191 = arith.constant 0 : index
    %c0_192 = arith.constant 0 : index
    %588 = vector.load %arg11[%c0_191, %c0_192] : memref<128x128xf32, #tpu.memory_space<vmem>>, vector<128x128xf32>
    %cst_193 = arith.constant dense<0.000000e+00> : vector<16x128xf32>
    %589 = tpu.matmul %587, %588, %cst_193 {dimension_numbers = #tpu.dot_dimension_numbers<[1], [0], [0], [1], [0, 0, 1, 1], [], []>} : vector<16x128xf32>, vector<128x128xf32>, vector<16x128xf32> -> vector<16x128xf32>
    %c0_194 = arith.constant 0 : index
    %c0_195 = arith.constant 0 : index
    %590 = vector.load %arg12[%c0_194, %c0_195] : memref<1x128xf32, #tpu.memory_space<vmem>>, vector<1x128xf32>
    %591 = vector.broadcast %590 : vector<1x128xf32> to vector<16x128xf32>
    %592 = arith.addf %589, %591 : vector<16x128xf32>
    %c0_196 = arith.constant 0 : index
    %c0_197 = arith.constant 0 : index
    %c0_198 = arith.constant 0 : index
    %593 = vector.load %arg13[%c0_196, %c0_197, %c0_198] : memref<1x16x128xf32, #tpu.memory_space<vmem>>, vector<1x16x128xf32>
    %594 = vector.shape_cast %593 : vector<1x16x128xf32> to vector<16x128xf32>
    %595 = vector.shape_cast %592 : vector<16x128xf32> to vector<1x16x128xf32>
    tpu.vector_store %arg13[%c0_196, %c0_197, %c0_198], %595 {strides = array<i32>} : memref<1x16x128xf32, #tpu.memory_space<vmem>>, vector<1x16x128xf32>,
    return
  }
  func.func @transform_0(%arg0: i32) -> (i32, i32, i32) {
    %c0_i32 = arith.constant 0 : i32
    %c0_i32_0 = arith.constant 0 : i32
    %c0_i32_1 = arith.constant 0 : i32
    return %arg0, %c0_i32, %c0_i32_0 : i32, i32, i32
  }
  func.func @transform_1(%arg0: i32) -> (i32, i32, i32, i32) {
    %c0_i32 = arith.constant 0 : i32
    %c0_i32_0 = arith.constant 0 : i32
    %c0_i32_1 = arith.constant 0 : i32
    %c0_i32_2 = arith.constant 0 : i32
    return %arg0, %c0_i32, %c0_i32_0, %c0_i32_1 : i32, i32, i32, i32
  }
  func.func @transform_2(%arg0: i32) -> (i32, i32) {
    %c0_i32 = arith.constant 0 : i32
    %c0_i32_0 = arith.constant 0 : i32
    %c0_i32_1 = arith.constant 0 : i32
    return %c0_i32, %c0_i32_0 : i32, i32
  }
  func.func @transform_3(%arg0: i32) -> (i32, i32) {
    %c0_i32 = arith.constant 0 : i32
    %c0_i32_0 = arith.constant 0 : i32
    %c0_i32_1 = arith.constant 0 : i32
    return %c0_i32, %c0_i32_0 : i32, i32
  }
  func.func @transform_4(%arg0: i32) -> (i32, i32) {
    %c0_i32 = arith.constant 0 : i32
    %c0_i32_0 = arith.constant 0 : i32
    %c0_i32_1 = arith.constant 0 : i32
    return %c0_i32, %c0_i32_0 : i32, i32
  }
  func.func @transform_5(%arg0: i32) -> (i32, i32) {
    %c0_i32 = arith.constant 0 : i32
    %c0_i32_0 = arith.constant 0 : i32
    %c0_i32_1 = arith.constant 0 : i32
    return %c0_i32, %c0_i32_0 : i32, i32
  }
  func.func @transform_6(%arg0: i32) -> (i32, i32) {
    %c0_i32 = arith.constant 0 : i32
    %c0_i32_0 = arith.constant 0 : i32
    %c0_i32_1 = arith.constant 0 : i32
    return %c0_i32, %c0_i32_0 : i32, i32
  }
  func.func @transform_7(%arg0: i32) -> (i32, i32) {
    %c0_i32 = arith.constant 0 : i32
    %c0_i32_0 = arith.constant 0 : i32
    %c0_i32_1 = arith.constant 0 : i32
    return %c0_i32, %c0_i32_0 : i32, i32
  }
  func.func @transform_8(%arg0: i32) -> (i32, i32) {
    %c0_i32 = arith.constant 0 : i32
    %c0_i32_0 = arith.constant 0 : i32
    %c0_i32_1 = arith.constant 0 : i32
    return %c0_i32, %c0_i32_0 : i32, i32
  }
  func.func @transform_9(%arg0: i32) -> (i32, i32) {
    %c0_i32 = arith.constant 0 : i32
    %c0_i32_0 = arith.constant 0 : i32
    %c0_i32_1 = arith.constant 0 : i32
    return %c0_i32, %c0_i32_0 : i32, i32
  }
  func.func @transform_10(%arg0: i32) -> (i32, i32) {
    %c0_i32 = arith.constant 0 : i32
    %c0_i32_0 = arith.constant 0 : i32
    %c0_i32_1 = arith.constant 0 : i32
    return %c0_i32, %c0_i32_0 : i32, i32
  }
  func.func @transform_11(%arg0: i32) -> (i32, i32) {
    %c0_i32 = arith.constant 0 : i32
    %c0_i32_0 = arith.constant 0 : i32
    %c0_i32_1 = arith.constant 0 : i32
    return %c0_i32, %c0_i32_0 : i32, i32
  }
  func.func @transform_12(%arg0: i32) -> (i32, i32, i32) {
    %c0_i32 = arith.constant 0 : i32
    %c0_i32_0 = arith.constant 0 : i32
    %c0_i32_1 = arith.constant 0 : i32
    return %arg0, %c0_i32, %c0_i32_0 : i32, i32, i32
  }
  func.func @transform_13(%arg0: i32) -> (i32, i32, i32, i32) {
    %c0_i32 = arith.constant 0 : i32
    %c0_i32_0 = arith.constant 0 : i32
    %c0_i32_1 = arith.constant 0 : i32
    %c0_i32_2 = arith.constant 0 : i32
    return %arg0, %c0_i32, %c0_i32_0, %c0_i32_1 : i32, i32, i32, i32
  }
}

</mosaic_0001>

<llo_original>
// kernel: auxiliary_gru_forward.1
$region0: #{auxiliary_gru_forward.1}
  #allocation0 [shape = 'u32[]', space=smem, size = 0x4, offset = 0x4, fixed_abs, tag = 'smem constant byte address 0x4 - core index']
  #allocation1 [shape = 'u32[144,128]{1,0:T(1,128)}', space=vmem, size = 0x12000, scoped, tag = 'internal scratch']
  #allocation2 [shape = 'f32[16,128]{1,0:T(8,128)}', space=vmem, size = 0x2000, scoped, tag = 'scratch operand']
  %s0 = inlined_call_operand.vmem [shape: f32[1,16,128], index: 0, kind: input, shape index: {}]
  %s1 = inlined_call_operand.vmem [shape: f32[1,2,2,128], index: 1, kind: input, shape index: {}, may-alias: {1,13}]
  %s2 = inlined_call_operand.vmem [shape: f32[128,384], index: 2, kind: input, shape index: {}]
  %s3 = inlined_call_operand.vmem [shape: f32[128,384], index: 3, kind: input, shape index: {}]
  %s4 = inlined_call_operand.vmem [shape: f32[1,384], index: 4, kind: input, shape index: {}]
  %s5 = inlined_call_operand.vmem [shape: f32[1,128], index: 5, kind: input, shape index: {}]
  %s6 = inlined_call_operand.vmem [shape: f32[128,384], index: 6, kind: input, shape index: {}]
  %s7 = inlined_call_operand.vmem [shape: f32[128,384], index: 7, kind: input, shape index: {}]
  %s8 = inlined_call_operand.vmem [shape: f32[1,384], index: 8, kind: input, shape index: {}]
  %s9 = inlined_call_operand.vmem [shape: f32[1,128], index: 9, kind: input, shape index: {}]
  %s10 = inlined_call_operand.vmem [shape: f32[128,128], index: 10, kind: input, shape index: {}]
  %s11 = inlined_call_operand.vmem [shape: f32[1,128], index: 11, kind: input, shape index: {}]
  %s12 = inlined_call_operand.vmem [shape: f32[1,16,128], index: 12, kind: output, shape index: {0}]
  %s13 = inlined_call_operand.vmem [shape: f32[1,2,2,128], index: 13, kind: output, shape index: {1}, may-alias: {1,13}]
  %14 = xla_tuple %s12, %s13
  %s15 = sld [smem:[#allocation0]]
  $region66: #{auxiliary_gru_forward.1} parent=0
    _
  %s17 = ssub.s32 1, %s15
  %s18 = scalar_select 0, %s17, %s15
  // Predicated region
  $region2: #{auxiliary_gru_forward.1} parent=0 // pred_check
    _
  $region3: #{auxiliary_gru_forward.1} parent=0 // pred_check_branch
    %20 = sbr.rel (0) target = $region5
  $region4: #{auxiliary_gru_forward.1} parent=0 // pred_region
    _
  $region5: #{auxiliary_gru_forward.1} parent=0 // pred_fallthru
    _
  // Predicated region
  $region6: #{auxiliary_gru_forward.1} parent=0 // pred_check
    _
  $region7: #{auxiliary_gru_forward.1} parent=0 // pred_check_branch
    %22 = sbr.rel (0) target = $region9
  $region8: #{auxiliary_gru_forward.1} parent=0 // pred_region
    _
  $region9: #{auxiliary_gru_forward.1} parent=0 // pred_fallthru
    _
  // Predicated region
  $region10: #{auxiliary_gru_forward.1} parent=0 // pred_check
    _
  $region11: #{auxiliary_gru_forward.1} parent=0 // pred_check_branch
    %24 = sbr.rel (0) target = $region13
  $region12: #{auxiliary_gru_forward.1} parent=0 // pred_region
    _
  $region13: #{auxiliary_gru_forward.1} parent=0 // pred_fallthru
    _
  // Predicated region
  $region14: #{auxiliary_gru_forward.1} parent=0 // pred_check
    _
  $region15: #{auxiliary_gru_forward.1} parent=0 // pred_check_branch
    %26 = sbr.rel (0) target = $region17
  $region16: #{auxiliary_gru_forward.1} parent=0 // pred_region
    _
  $region17: #{auxiliary_gru_forward.1} parent=0 // pred_fallthru
    _
  // Predicated region
  $region18: #{auxiliary_gru_forward.1} parent=0 // pred_check
    _
  $region19: #{auxiliary_gru_forward.1} parent=0 // pred_check_branch
    %28 = sbr.rel (0) target = $region21
  $region20: #{auxiliary_gru_forward.1} parent=0 // pred_region
    _
  $region21: #{auxiliary_gru_forward.1} parent=0 // pred_fallthru
    _
  // Predicated region
  $region22: #{auxiliary_gru_forward.1} parent=0 // pred_check
    _
  $region23: #{auxiliary_gru_forward.1} parent=0 // pred_check_branch
    %30 = sbr.rel (0) target = $region25
  $region24: #{auxiliary_gru_forward.1} parent=0 // pred_region
    _
  $region25: #{auxiliary_gru_forward.1} parent=0 // pred_fallthru
    _
  // Predicated region
  $region26: #{auxiliary_gru_forward.1} parent=0 // pred_check
    _
  $region27: #{auxiliary_gru_forward.1} parent=0 // pred_check_branch
    %32 = sbr.rel (0) target = $region29
  $region28: #{auxiliary_gru_forward.1} parent=0 // pred_region
    _
  $region29: #{auxiliary_gru_forward.1} parent=0 // pred_fallthru
    _
  // Predicated region
  $region30: #{auxiliary_gru_forward.1} parent=0 // pred_check
    _
  $region31: #{auxiliary_gru_forward.1} parent=0 // pred_check_branch
    %34 = sbr.rel (0) target = $region33
  $region32: #{auxiliary_gru_forward.1} parent=0 // pred_region
    _
  $region33: #{auxiliary_gru_forward.1} parent=0 // pred_fallthru
    _
  // Predicated region
  $region34: #{auxiliary_gru_forward.1} parent=0 // pred_check
    _
  $region35: #{auxiliary_gru_forward.1} parent=0 // pred_check_branch
    %36 = sbr.rel (0) target = $region37
  $region36: #{auxiliary_gru_forward.1} parent=0 // pred_region
    _
  $region37: #{auxiliary_gru_forward.1} parent=0 // pred_fallthru
    _
  // Predicated region
  $region38: #{auxiliary_gru_forward.1} parent=0 // pred_check
    _
  $region39: #{auxiliary_gru_forward.1} parent=0 // pred_check_branch
    %38 = sbr.rel (0) target = $region41
  $region40: #{auxiliary_gru_forward.1} parent=0 // pred_region
    _
  $region41: #{auxiliary_gru_forward.1} parent=0 // pred_fallthru
    _
  // Predicated region
  $region42: #{auxiliary_gru_forward.1} parent=0 // pred_check
    _
  $region43: #{auxiliary_gru_forward.1} parent=0 // pred_check_branch
    %40 = sbr.rel (0) target = $region45
  $region44: #{auxiliary_gru_forward.1} parent=0 // pred_region
    _
  $region45: #{auxiliary_gru_forward.1} parent=0 // pred_fallthru
    _
  // Predicated region
  $region46: #{auxiliary_gru_forward.1} parent=0 // pred_check
    _
  $region47: #{auxiliary_gru_forward.1} parent=0 // pred_check_branch
    %42 = sbr.rel (0) target = $region49
  $region48: #{auxiliary_gru_forward.1} parent=0 // pred_region
    _
  $region49: #{auxiliary_gru_forward.1} parent=0 // pred_fallthru
    _
  %v43 = vld [vmem:[%s0] sm:$0xff]
  %v44 = vld [vmem:[%s0 + $0x8] sm:$0xff]
  %v45 = vld [vmem:[%s2] sm:$0xff]
  %v46 = vld [vmem:[%s2 + $0x8] sm:$0xff]
  %v47 = vld [vmem:[%s2 + $0x10] sm:$0xff]
  %v48 = vld [vmem:[%s2 + $0x18] sm:$0xff]
  %v49 = vld [vmem:[%s2 + $0x20] sm:$0xff]
  %v50 = vld [vmem:[%s2 + $0x28] sm:$0xff]
  %v51 = vld [vmem:[%s2 + $0x30] sm:$0xff]
  %v52 = vld [vmem:[%s2 + $0x38] sm:$0xff]
  %v53 = vld [vmem:[%s2 + $0x40] sm:$0xff]
  %v54 = vld [vmem:[%s2 + $0x48] sm:$0xff]
  %v55 = vld [vmem:[%s2 + $0x50] sm:$0xff]
  %v56 = vld [vmem:[%s2 + $0x58] sm:$0xff]
  %v57 = vld [vmem:[%s2 + $0x60] sm:$0xff]
  %v58 = vld [vmem:[%s2 + $0x68] sm:$0xff]
  %v59 = vld [vmem:[%s2 + $0x70] sm:$0xff]
  %v60 = vld [vmem:[%s2 + $0x78] sm:$0xff]
  %v61 = vld [vmem:[%s2 + $0x80] sm:$0xff]
  %v62 = vld [vmem:[%s2 + $0x88] sm:$0xff]
  %v63 = vld [vmem:[%s2 + $0x90] sm:$0xff]
  %v64 = vld [vmem:[%s2 + $0x98] sm:$0xff]
  %v65 = vld [vmem:[%s2 + $0xa0] sm:$0xff]
  %v66 = vld [vmem:[%s2 + $0xa8] sm:$0xff]
  %v67 = vld [vmem:[%s2 + $0xb0] sm:$0xff]
  %v68 = vld [vmem:[%s2 + $0xb8] sm:$0xff]
  %v69 = vld [vmem:[%s2 + $0xc0] sm:$0xff]
  %v70 = vld [vmem:[%s2 + $0xc8] sm:$0xff]
  %v71 = vld [vmem:[%s2 + $0xd0] sm:$0xff]
  %v72 = vld [vmem:[%s2 + $0xd8] sm:$0xff]
  %v73 = vld [vmem:[%s2 + $0xe0] sm:$0xff]
  %v74 = vld [vmem:[%s2 + $0xe8] sm:$0xff]
  %v75 = vld [vmem:[%s2 + $0xf0] sm:$0xff]
  %v76 = vld [vmem:[%s2 + $0xf8] sm:$0xff]
  %v77 = vld [vmem:[%s2 + $0x100] sm:$0xff]
  %v78 = vld [vmem:[%s2 + $0x108] sm:$0xff]
  %v79 = vld [vmem:[%s2 + $0x110] sm:$0xff]
  %v80 = vld [vmem:[%s2 + $0x118] sm:$0xff]
  %v81 = vld [vmem:[%s2 + $0x120] sm:$0xff]
  %v82 = vld [vmem:[%s2 + $0x128] sm:$0xff]
  %v83 = vld [vmem:[%s2 + $0x130] sm:$0xff]
  %v84 = vld [vmem:[%s2 + $0x138] sm:$0xff]
  %v85 = vld [vmem:[%s2 + $0x140] sm:$0xff]
  %v86 = vld [vmem:[%s2 + $0x148] sm:$0xff]
  %v87 = vld [vmem:[%s2 + $0x150] sm:$0xff]
  %v88 = vld [vmem:[%s2 + $0x158] sm:$0xff]
  %v89 = vld [vmem:[%s2 + $0x160] sm:$0xff]
  %v90 = vld [vmem:[%s2 + $0x168] sm:$0xff]
  %v91 = vld [vmem:[%s2 + $0x170] sm:$0xff]
  %v92 = vld [vmem:[%s2 + $0x178] sm:$0xff]
  %v93 = vld [vmem:[%s4] sm:$0x7]
  %v95 = vlaneseq
  %v96 = vshrl.u32 %v95, 7
  %v97 = vsub.s32 0, %v96
  %v98 = vrot.slane %v93, %v97
  %v99 = vlaneseq
  %v100 = vshrl.u32 %v99, 7
  %v101 = vsub.s32 1, %v100
  %v102 = vrot.slane %v93, %v101
  %v103 = vlaneseq
  %v104 = vshrl.u32 %v103, 7
  %v105 = vsub.s32 2, %v104
  %v106 = vrot.slane %v93, %v105
  %110 = vmatprep.subr.mxu0 %v46
  %111 = vmatpush1.msra.mxu0 %v45
  %112 = vmatprep.subr.mxu0 %v49
  %113 = vmatpush1.msra.mxu0 %v48
  %114 = vmatprep.subr.mxu0 %v52
  %115 = vmatpush1.msra.mxu0 %v51
  %116 = vmatprep.subr.mxu0 %v55
  %117 = vmatpush1.msra.mxu0 %v54
  %118 = vmatprep.subr.mxu0 %v58
  %119 = vmatpush1.msra.mxu0 %v57
  %120 = vmatprep.subr.mxu0 %v61
  %121 = vmatpush1.msra.mxu0 %v60
  %122 = vmatprep.subr.mxu0 %v64
  %123 = vmatpush1.msra.mxu0 %v63
  %124 = vmatprep.subr.mxu0 %v67
  %125 = vmatpush1.msra.mxu0 %v66
  %126 = vmatprep.subr.mxu0 %v70
  %127 = vmatpush1.msra.mxu0 %v69
  %128 = vmatprep.subr.mxu0 %v73
  %129 = vmatpush1.msra.mxu0 %v72
  %130 = vmatprep.subr.mxu0 %v76
  %131 = vmatpush1.msra.mxu0 %v75
  %132 = vmatprep.subr.mxu0 %v79
  %133 = vmatpush1.msra.mxu0 %v78
  %134 = vmatprep.subr.mxu0 %v82
  %135 = vmatpush1.msra.mxu0 %v81
  %136 = vmatprep.subr.mxu0 %v85
  %137 = vmatpush1.msra.mxu0 %v84
  %138 = vmatprep.subr.mxu0 %v88
  %139 = vmatpush1.msra.mxu0 %v87
  %140 = vmatprep.subr.mxu0 %v91
  %141 = vmatpush1.msra.mxu0 %v90
  %142 = vmatprep.subr.mxu0 0.0
  %143 = vmatpush1.msra.mxu0 0.0
  %144 = vmatprep.subr.mxu0 0.0
  %145 = vmatpush1.msra.mxu0 0.0
  %146 = vmatprep.subr.mxu0 0.0
  %147 = vmatpush1.msra.mxu0 0.0
  %148 = vmatprep.subr.mxu0 0.0
  %149 = vmatpush1.msra.mxu0 0.0
  %150 = vmatprep.subr.mxu0 0.0
  %151 = vmatpush1.msra.mxu0 0.0
  %152 = vmatprep.subr.mxu0 0.0
  %153 = vmatpush1.msra.mxu0 0.0
  %154 = vmatprep.subr.mxu0 0.0
  %155 = vmatpush1.msra.mxu0 0.0
  %156 = vmatprep.subr.mxu0 0.0
  %157 = vmatpush1.msra.mxu0 0.0
  %158 = vmatprep.subr.mxu0 0.0
  %159 = vmatpush1.msra.mxu0 0.0
  %160 = vmatprep.subr.mxu0 0.0
  %161 = vmatpush1.msra.mxu0 0.0
  %162 = vmatprep.subr.mxu0 0.0
  %163 = vmatpush1.msra.mxu0 0.0
  %164 = vmatprep.subr.mxu0 0.0
  %165 = vmatpush1.msra.mxu0 0.0
  %166 = vmatprep.subr.mxu0 0.0
  %167 = vmatpush1.msra.mxu0 0.0
  %168 = vmatprep.subr.mxu0 0.0
  %169 = vmatpush1.msra.mxu0 0.0
  %170 = vmatprep.subr.mxu0 0.0
  %171 = vmatpush1.msra.mxu0 0.0
  %172 = vmatprep.subr.mxu0 0.0
  %173 = vmatpush1.msra.mxu0 0.0
  %174 = vmatprep.mubr.f32.mxu0 0.0
  %175 = vmatmul.mubr.f32.gmra.mrb[0].mxu0 %v43
  %v176 = vpop.f32.mrb[0].mxu0
  %v177 = vadd.f32 %v98, %v176
  %v178 = vpop.f32.mrb[0].mxu0
  %v179 = vadd.f32 %v102, %v178
  %180 = vmatprep.mubr.f32.mxu0 0.0
  %181 = vmatmul.mubr.f32.gmra.mrb[0].mxu0 %v44
  %v182 = vpop.f32.mrb[0].mxu0
  %v183 = vadd.f32 %v98, %v182
  %v184 = vpop.f32.mrb[0].mxu0
  %v185 = vadd.f32 %v102, %v184
  %186 = vdwg.mxu0
  %187 = vmatprep.subr.mxu0 0.0
  %188 = vmatpush1.msra.mxu0 %v47
  %189 = vmatprep.subr.mxu0 0.0
  %190 = vmatpush1.msra.mxu0 %v50
  %191 = vmatprep.subr.mxu0 0.0
  %192 = vmatpush1.msra.mxu0 %v53
  %193 = vmatprep.subr.mxu0 0.0
  %194 = vmatpush1.msra.mxu0 %v56
  %195 = vmatprep.subr.mxu0 0.0
  %196 = vmatpush1.msra.mxu0 %v59
  %197 = vmatprep.subr.mxu0 0.0
  %198 = vmatpush1.msra.mxu0 %v62
  %199 = vmatprep.subr.mxu0 0.0
  %200 = vmatpush1.msra.mxu0 %v65
  %201 = vmatprep.subr.mxu0 0.0
  %202 = vmatpush1.msra.mxu0 %v68
  %203 = vmatprep.subr.mxu0 0.0
  %204 = vmatpush1.msra.mxu0 %v71
  %205 = vmatprep.subr.mxu0 0.0
  %206 = vmatpush1.msra.mxu0 %v74
  %207 = vmatprep.subr.mxu0 0.0
  %208 = vmatpush1.msra.mxu0 %v77
  %209 = vmatprep.subr.mxu0 0.0
  %210 = vmatpush1.msra.mxu0 %v80
  %211 = vmatprep.subr.mxu0 0.0
  %212 = vmatpush1.msra.mxu0 %v83
  %213 = vmatprep.subr.mxu0 0.0
  %214 = vmatpush1.msra.mxu0 %v86
  %215 = vmatprep.subr.mxu0 0.0
  %216 = vmatpush1.msra.mxu0 %v89
  %217 = vmatprep.subr.mxu0 0.0
  %218 = vmatpush1.msra.mxu0 %v92
  %219 = vmatprep.subr.mxu0 0.0
  %220 = vmatpush1.msra.mxu0 0.0
  %221 = vmatprep.subr.mxu0 0.0
  %222 = vmatpush1.msra.mxu0 0.0
  %223 = vmatprep.subr.mxu0 0.0
  %224 = vmatpush1.msra.mxu0 0.0
  %225 = vmatprep.subr.mxu0 0.0
  %226 = vmatpush1.msra.mxu0 0.0
  %227 = vmatprep.subr.mxu0 0.0
  %228 = vmatpush1.msra.mxu0 0.0
  %229 = vmatprep.subr.mxu0 0.0
  %230 = vmatpush1.msra.mxu0 0.0
  %231 = vmatprep.subr.mxu0 0.0
  %232 = vmatpush1.msra.mxu0 0.0
  %233 = vmatprep.subr.mxu0 0.0
  %234 = vmatpush1.msra.mxu0 0.0
  %235 = vmatprep.subr.mxu0 0.0
  %236 = vmatpush1.msra.mxu0 0.0
  %237 = vmatprep.subr.mxu0 0.0
  %238 = vmatpush1.msra.mxu0 0.0
  %239 = vmatprep.subr.mxu0 0.0
  %240 = vmatpush1.msra.mxu0 0.0
  %241 = vmatprep.subr.mxu0 0.0
  %242 = vmatpush1.msra.mxu0 0.0
  %243 = vmatprep.subr.mxu0 0.0
  %244 = vmatpush1.msra.mxu0 0.0
  %245 = vmatprep.subr.mxu0 0.0
  %246 = vmatpush1.msra.mxu0 0.0
  %247 = vmatprep.subr.mxu0 0.0
  %248 = vmatpush1.msra.mxu0 0.0
  %249 = vmatprep.subr.mxu0 0.0
  %250 = vmatpush1.msra.mxu0 0.0
  %251 = vmatprep.mubr.f32.mxu0 0.0
  %252 = vmatmul.mubr.f32.gmra.mrb[0].mxu0 %v43
  %v253 = vpop.f32.mrb[0].mxu0
  %v254 = vadd.f32 %v106, %v253
  %v255 = vpop.f32.mrb[0].mxu0
  %256 = vmatprep.mubr.f32.mxu0 0.0
  %257 = vmatmul.mubr.f32.gmra.mrb[0].mxu0 %v44
  %v258 = vpop.f32.mrb[0].mxu0
  %v259 = vadd.f32 %v106, %v258
  %v260 = vpop.f32.mrb[0].mxu0
  %261 = vdwg.mxu0
  %v262 = vld [vmem:[%s3] sm:$0xff]
  %v263 = vld [vmem:[%s3 + $0x8] sm:$0xff]
  %v264 = vld [vmem:[%s3 + $0x10] sm:$0xff]
  %v265 = vld [vmem:[%s3 + $0x18] sm:$0xff]
  %v266 = vld [vmem:[%s3 + $0x20] sm:$0xff]
  %v267 = vld [vmem:[%s3 + $0x28] sm:$0xff]
  %v268 = vld [vmem:[%s3 + $0x30] sm:$0xff]
  %v269 = vld [vmem:[%s3 + $0x38] sm:$0xff]
  %v270 = vld [vmem:[%s3 + $0x40] sm:$0xff]
  %v271 = vld [vmem:[%s3 + $0x48] sm:$0xff]
  %v272 = vld [vmem:[%s3 + $0x50] sm:$0xff]
  %v273 = vld [vmem:[%s3 + $0x58] sm:$0xff]
  %v274 = vld [vmem:[%s3 + $0x60] sm:$0xff]
  %v275 = vld [vmem:[%s3 + $0x68] sm:$0xff]
  %v276 = vld [vmem:[%s3 + $0x70] sm:$0xff]
  %v277 = vld [vmem:[%s3 + $0x78] sm:$0xff]
  %v278 = vld [vmem:[%s3 + $0x80] sm:$0xff]
  %v279 = vld [vmem:[%s3 + $0x88] sm:$0xff]
  %v280 = vld [vmem:[%s3 + $0x90] sm:$0xff]
  %v281 = vld [vmem:[%s3 + $0x98] sm:$0xff]
  %v282 = vld [vmem:[%s3 + $0xa0] sm:$0xff]
  %v283 = vld [vmem:[%s3 + $0xa8] sm:$0xff]
  %v284 = vld [vmem:[%s3 + $0xb0] sm:$0xff]
  %v285 = vld [vmem:[%s3 + $0xb8] sm:$0xff]
  %v286 = vld [vmem:[%s3 + $0xc0] sm:$0xff]
  %v287 = vld [vmem:[%s3 + $0xc8] sm:$0xff]
  %v288 = vld [vmem:[%s3 + $0xd0] sm:$0xff]
  %v289 = vld [vmem:[%s3 + $0xd8] sm:$0xff]
  %v290 = vld [vmem:[%s3 + $0xe0] sm:$0xff]
  %v291 = vld [vmem:[%s3 + $0xe8] sm:$0xff]
  %v292 = vld [vmem:[%s3 + $0xf0] sm:$0xff]
  %v293 = vld [vmem:[%s3 + $0xf8] sm:$0xff]
  %v294 = vld [vmem:[%s3 + $0x100] sm:$0xff]
  %v295 = vld [vmem:[%s3 + $0x108] sm:$0xff]
  %v296 = vld [vmem:[%s3 + $0x110] sm:$0xff]
  %v297 = vld [vmem:[%s3 + $0x118] sm:$0xff]
  %v298 = vld [vmem:[%s3 + $0x120] sm:$0xff]
  %v299 = vld [vmem:[%s3 + $0x128] sm:$0xff]
  %v300 = vld [vmem:[%s3 + $0x130] sm:$0xff]
  %v301 = vld [vmem:[%s3 + $0x138] sm:$0xff]
  %v302 = vld [vmem:[%s3 + $0x140] sm:$0xff]
  %v303 = vld [vmem:[%s3 + $0x148] sm:$0xff]
  %v304 = vld [vmem:[%s3 + $0x150] sm:$0xff]
  %v305 = vld [vmem:[%s3 + $0x158] sm:$0xff]
  %v306 = vld [vmem:[%s3 + $0x160] sm:$0xff]
  %v307 = vld [vmem:[%s3 + $0x168] sm:$0xff]
  %v308 = vld [vmem:[%s3 + $0x170] sm:$0xff]
  %v309 = vld [vmem:[%s3 + $0x178] sm:$0xff]
  %v310 = vld [vmem:[%s5] sm:$0x1]
  %v311 = vld [vmem:[%s1] sm:$0x3]
  %312 = vmatprep.subr.mxu0 %v263
  %313 = vmatpush1.msra.mxu0 %v262
  %314 = vmatprep.subr.mxu0 %v266
  %315 = vmatpush1.msra.mxu0 %v265
  %316 = vmatprep.subr.mxu0 %v269
  %317 = vmatpush1.msra.mxu0 %v268
  %318 = vmatprep.subr.mxu0 %v272
  %319 = vmatpush1.msra.mxu0 %v271
  %320 = vmatprep.subr.mxu0 %v275
  %321 = vmatpush1.msra.mxu0 %v274
  %322 = vmatprep.subr.mxu0 %v278
  %323 = vmatpush1.msra.mxu0 %v277
  %324 = vmatprep.subr.mxu0 %v281
  %325 = vmatpush1.msra.mxu0 %v280
  %326 = vmatprep.subr.mxu0 %v284
  %327 = vmatpush1.msra.mxu0 %v283
  %328 = vmatprep.subr.mxu0 %v287
  %329 = vmatpush1.msra.mxu0 %v286
  %330 = vmatprep.subr.mxu0 %v290
  %331 = vmatpush1.msra.mxu0 %v289
  %332 = vmatprep.subr.mxu0 %v293
  %333 = vmatpush1.msra.mxu0 %v292
  %334 = vmatprep.subr.mxu0 %v296
  %335 = vmatpush1.msra.mxu0 %v295
  %336 = vmatprep.subr.mxu0 %v299
  %337 = vmatpush1.msra.mxu0 %v298
  %338 = vmatprep.subr.mxu0 %v302
  %339 = vmatpush1.msra.mxu0 %v301
  %340 = vmatprep.subr.mxu0 %v305
  %341 = vmatpush1.msra.mxu0 %v304
  %342 = vmatprep.subr.mxu0 %v308
  %343 = vmatpush1.msra.mxu0 %v307
  %344 = vmatprep.subr.mxu0 0.0
  %345 = vmatpush1.msra.mxu0 0.0
  %346 = vmatprep.subr.mxu0 0.0
  %347 = vmatpush1.msra.mxu0 0.0
  %348 = vmatprep.subr.mxu0 0.0
  %349 = vmatpush1.msra.mxu0 0.0
  %350 = vmatprep.subr.mxu0 0.0
  %351 = vmatpush1.msra.mxu0 0.0
  %352 = vmatprep.subr.mxu0 0.0
  %353 = vmatpush1.msra.mxu0 0.0
  %354 = vmatprep.subr.mxu0 0.0
  %355 = vmatpush1.msra.mxu0 0.0
  %356 = vmatprep.subr.mxu0 0.0
  %357 = vmatpush1.msra.mxu0 0.0
  %358 = vmatprep.subr.mxu0 0.0
  %359 = vmatpush1.msra.mxu0 0.0
  %360 = vmatprep.subr.mxu0 0.0
  %361 = vmatpush1.msra.mxu0 0.0
  %362 = vmatprep.subr.mxu0 0.0
  %363 = vmatpush1.msra.mxu0 0.0
  %364 = vmatprep.subr.mxu0 0.0
  %365 = vmatpush1.msra.mxu0 0.0
  %366 = vmatprep.subr.mxu0 0.0
  %367 = vmatpush1.msra.mxu0 0.0
  %368 = vmatprep.subr.mxu0 0.0
  %369 = vmatpush1.msra.mxu0 0.0
  %370 = vmatprep.subr.mxu0 0.0
  %371 = vmatpush1.msra.mxu0 0.0
  %372 = vmatprep.subr.mxu0 0.0
  %373 = vmatpush1.msra.mxu0 0.0
  %374 = vmatprep.subr.mxu0 0.0
  %375 = vmatpush1.msra.mxu0 0.0
  %376 = vmatprep.mubr.f32.mxu0 0.0
  %377 = vmatmul.mubr.f32.gmra.mrb[0].mxu0 %v311
  %v378 = vpop.f32.mrb[0].mxu0
  %v379 = vadd.f32 0.0, %v378
  %v380 = vpop.f32.mrb[0].mxu0
  %v381 = vadd.f32 0.0, %v380
  %382 = vdwg.mxu0
  %383 = vmatprep.subr.mxu0 0.0
  %384 = vmatpush1.msra.mxu0 %v264
  %385 = vmatprep.subr.mxu0 0.0
  %386 = vmatpush1.msra.mxu0 %v267
  %387 = vmatprep.subr.mxu0 0.0
  %388 = vmatpush1.msra.mxu0 %v270
  %389 = vmatprep.subr.mxu0 0.0
  %390 = vmatpush1.msra.mxu0 %v273
  %391 = vmatprep.subr.mxu0 0.0
  %392 = vmatpush1.msra.mxu0 %v276
  %393 = vmatprep.subr.mxu0 0.0
  %394 = vmatpush1.msra.mxu0 %v279
  %395 = vmatprep.subr.mxu0 0.0
  %396 = vmatpush1.msra.mxu0 %v282
  %397 = vmatprep.subr.mxu0 0.0
  %398 = vmatpush1.msra.mxu0 %v285
  %399 = vmatprep.subr.mxu0 0.0
  %400 = vmatpush1.msra.mxu0 %v288
  %401 = vmatprep.subr.mxu0 0.0
  %402 = vmatpush1.msra.mxu0 %v291
  %403 = vmatprep.subr.mxu0 0.0
  %404 = vmatpush1.msra.mxu0 %v294
  %405 = vmatprep.subr.mxu0 0.0
  %406 = vmatpush1.msra.mxu0 %v297
  %407 = vmatprep.subr.mxu0 0.0
  %408 = vmatpush1.msra.mxu0 %v300
  %409 = vmatprep.subr.mxu0 0.0
  %410 = vmatpush1.msra.mxu0 %v303
  %411 = vmatprep.subr.mxu0 0.0
  %412 = vmatpush1.msra.mxu0 %v306
  %413 = vmatprep.subr.mxu0 0.0
  %414 = vmatpush1.msra.mxu0 %v309
  %415 = vmatprep.subr.mxu0 0.0
  %416 = vmatpush1.msra.mxu0 0.0
  %417 = vmatprep.subr.mxu0 0.0
  %418 = vmatpush1.msra.mxu0 0.0
  %419 = vmatprep.subr.mxu0 0.0
  %420 = vmatpush1.msra.mxu0 0.0
  %421 = vmatprep.subr.mxu0 0.0
  %422 = vmatpush1.msra.mxu0 0.0
  %423 = vmatprep.subr.mxu0 0.0
  %424 = vmatpush1.msra.mxu0 0.0
  %425 = vmatprep.subr.mxu0 0.0
  %426 = vmatpush1.msra.mxu0 0.0
  %427 = vmatprep.subr.mxu0 0.0
  %428 = vmatpush1.msra.mxu0 0.0
  %429 = vmatprep.subr.mxu0 0.0
  %430 = vmatpush1.msra.mxu0 0.0
  %431 = vmatprep.subr.mxu0 0.0
  %432 = vmatpush1.msra.mxu0 0.0
  %433 = vmatprep.subr.mxu0 0.0
  %434 = vmatpush1.msra.mxu0 0.0
  %435 = vmatprep.subr.mxu0 0.0
  %436 = vmatpush1.msra.mxu0 0.0
  %437 = vmatprep.subr.mxu0 0.0
  %438 = vmatpush1.msra.mxu0 0.0
  %439 = vmatprep.subr.mxu0 0.0
  %440 = vmatpush1.msra.mxu0 0.0
  %441 = vmatprep.subr.mxu0 0.0
  %442 = vmatpush1.msra.mxu0 0.0
  %443 = vmatprep.subr.mxu0 0.0
  %444 = vmatpush1.msra.mxu0 0.0
  %445 = vmatprep.subr.mxu0 0.0
  %446 = vmatpush1.msra.mxu0 0.0
  %447 = vmatprep.mubr.f32.mxu0 0.0
  %448 = vmatmul.mubr.f32.gmra.mrb[0].mxu0 %v311
  %v449 = vpop.f32.mrb[0].mxu0
  %v450 = vadd.f32 0.0, %v449
  %v451 = vpop.f32.mrb[0].mxu0
  %452 = vdwg.mxu0
  %v453 = vadd.f32 %v177, %v379
  %v454 = vsub.f32 0.0, %v453
  %v455 = vmul.f32 %v454, 1.442695
  %v456 = vpow.pop %v455
  %v457 = vadd.f32 %v456, 1.0
  %v458 = vrcp.pop %v457
  %v459 = vmul.f32 1.0, %v458
  %v460 = vadd.f32 %v179, %v381
  %v461 = vsub.f32 0.0, %v460
  %v462 = vmul.f32 %v461, 1.442695
  %v463 = vpow.pop %v462
  %v464 = vadd.f32 %v463, 1.0
  %v465 = vrcp.pop %v464
  %v466 = vmul.f32 1.0, %v465
  %v468 = vlaneseq
  %v469 = vshrl.u32 %v468, 7
  %v470 = vsub.s32 0, %v469
  %v471 = vrot.slane %v310, %v470
  %v473 = vadd.f32 %v450, %v471
  %v474 = vmul.f32 %v459, %v473
  %v475 = vadd.f32 %v254, %v474
  %v476 = vtanh.pop %v475
  %v477 = vsub.f32 1.0, %v466
  %v478 = vmul.f32 %v477, %v476
  %v479 = vmul.f32 %v466, %v311
  %v480 = vadd.f32 %v478, %v479
  %481 = vst [vmem:[#allocation2] sm:$0x3] %v480
  %482 = vmatprep.subr.mxu0 %v263
  %483 = vmatpush1.msra.mxu0 %v262
  %484 = vmatprep.subr.mxu0 %v266
  %485 = vmatpush1.msra.mxu0 %v265
  %486 = vmatprep.subr.mxu0 %v269
  %487 = vmatpush1.msra.mxu0 %v268
  %488 = vmatprep.subr.mxu0 %v272
  %489 = vmatpush1.msra.mxu0 %v271
  %490 = vmatprep.subr.mxu0 %v275
  %491 = vmatpush1.msra.mxu0 %v274
  %492 = vmatprep.subr.mxu0 %v278
  %493 = vmatpush1.msra.mxu0 %v277
  %494 = vmatprep.subr.mxu0 %v281
  %495 = vmatpush1.msra.mxu0 %v280
  %496 = vmatprep.subr.mxu0 %v284
  %497 = vmatpush1.msra.mxu0 %v283
  %498 = vmatprep.subr.mxu0 %v287
  %499 = vmatpush1.msra.mxu0 %v286
  %500 = vmatprep.subr.mxu0 %v290
  %501 = vmatpush1.msra.mxu0 %v289
  %502 = vmatprep.subr.mxu0 %v293
  %503 = vmatpush1.msra.mxu0 %v292
  %504 = vmatprep.subr.mxu0 %v296
  %505 = vmatpush1.msra.mxu0 %v295
  %506 = vmatprep.subr.mxu0 %v299
  %507 = vmatpush1.msra.mxu0 %v298
  %508 = vmatprep.subr.mxu0 %v302
  %509 = vmatpush1.msra.mxu0 %v301
  %510 = vmatprep.subr.mxu0 %v305
  %511 = vmatpush1.msra.mxu0 %v304
  %512 = vmatprep.subr.mxu0 %v308
  %513 = vmatpush1.msra.mxu0 %v307
  %514 = vmatprep.subr.mxu0 0.0
  %515 = vmatpush1.msra.mxu0 0.0
  %516 = vmatprep.subr.mxu0 0.0
  %517 = vmatpush1.msra.mxu0 0.0
  %518 = vmatprep.subr.mxu0 0.0
  %519 = vmatpush1.msra.mxu0 0.0
  %520 = vmatprep.subr.mxu0 0.0
  %521 = vmatpush1.msra.mxu0 0.0
  %522 = vmatprep.subr.mxu0 0.0
  %523 = vmatpush1.msra.mxu0 0.0
  %524 = vmatprep.subr.mxu0 0.0
  %525 = vmatpush1.msra.mxu0 0.0
  %526 = vmatprep.subr.mxu0 0.0
  %527 = vmatpush1.msra.mxu0 0.0
  %528 = vmatprep.subr.mxu0 0.0
  %529 = vmatpush1.msra.mxu0 0.0
  %530 = vmatprep.subr.mxu0 0.0
  %531 = vmatpush1.msra.mxu0 0.0
  %532 = vmatprep.subr.mxu0 0.0
  %533 = vmatpush1.msra.mxu0 0.0
  %534 = vmatprep.subr.mxu0 0.0
  %535 = vmatpush1.msra.mxu0 0.0
  %536 = vmatprep.subr.mxu0 0.0
  %537 = vmatpush1.msra.mxu0 0.0
  %538 = vmatprep.subr.mxu0 0.0
  %539 = vmatpush1.msra.mxu0 0.0
  %540 = vmatprep.subr.mxu0 0.0
  %541 = vmatpush1.msra.mxu0 0.0
  %542 = vmatprep.subr.mxu0 0.0
  %543 = vmatpush1.msra.mxu0 0.0
  %544 = vmatprep.subr.mxu0 0.0
  %545 = vmatpush1.msra.mxu0 0.0
  %546 = vmatprep.mubr.f32.mxu0 0.0
  %547 = vmatmul.mubr.f32.gmra.mrb[0].mxu0 %v480
  %v548 = vpop.f32.mrb[0].mxu0
  %v549 = vadd.f32 0.0, %v548
  %v550 = vpop.f32.mrb[0].mxu0
  %v551 = vadd.f32 0.0, %v550
  %552 = vdwg.mxu0
  %553 = vmatprep.subr.mxu0 0.0
  %554 = vmatpush1.msra.mxu0 %v264
  %555 = vmatprep.subr.mxu0 0.0
  %556 = vmatpush1.msra.mxu0 %v267
  %557 = vmatprep.subr.mxu0 0.0
  %558 = vmatpush1.msra.mxu0 %v270
  %559 = vmatprep.subr.mxu0 0.0
  %560 = vmatpush1.msra.mxu0 %v273
  %561 = vmatprep.subr.mxu0 0.0
  %562 = vmatpush1.msra.mxu0 %v276
  %563 = vmatprep.subr.mxu0 0.0
  %564 = vmatpush1.msra.mxu0 %v279
  %565 = vmatprep.subr.mxu0 0.0
  %566 = vmatpush1.msra.mxu0 %v282
  %567 = vmatprep.subr.mxu0 0.0
  %568 = vmatpush1.msra.mxu0 %v285
  %569 = vmatprep.subr.mxu0 0.0
  %570 = vmatpush1.msra.mxu0 %v288
  %571 = vmatprep.subr.mxu0 0.0
  %572 = vmatpush1.msra.mxu0 %v291
  %573 = vmatprep.subr.mxu0 0.0
  %574 = vmatpush1.msra.mxu0 %v294
  %575 = vmatprep.subr.mxu0 0.0
  %576 = vmatpush1.msra.mxu0 %v297
  %577 = vmatprep.subr.mxu0 0.0
  %578 = vmatpush1.msra.mxu0 %v300
  %579 = vmatprep.subr.mxu0 0.0
  %580 = vmatpush1.msra.mxu0 %v303
  %581 = vmatprep.subr.mxu0 0.0
  %582 = vmatpush1.msra.mxu0 %v306
  %583 = vmatprep.subr.mxu0 0.0
  %584 = vmatpush1.msra.mxu0 %v309
  %585 = vmatprep.subr.mxu0 0.0
  %586 = vmatpush1.msra.mxu0 0.0
  %587 = vmatprep.subr.mxu0 0.0
  %588 = vmatpush1.msra.mxu0 0.0
  %589 = vmatprep.subr.mxu0 0.0
  %590 = vmatpush1.msra.mxu0 0.0
  %591 = vmatprep.subr.mxu0 0.0
  %592 = vmatpush1.msra.mxu0 0.0
  %593 = vmatprep.subr.mxu0 0.0
  %594 = vmatpush1.msra.mxu0 0.0
  %595 = vmatprep.subr.mxu0 0.0
  %596 = vmatpush1.msra.mxu0 0.0
  %597 = vmatprep.subr.mxu0 0.0
  %598 = vmatpush1.msra.mxu0 0.0
  %599 = vmatprep.subr.mxu0 0.0
  %600 = vmatpush1.msra.mxu0 0.0
  %601 = vmatprep.subr.mxu0 0.0
  %602 = vmatpush1.msra.mxu0 0.0
  %603 = vmatprep.subr.mxu0 0.0
  %604 = vmatpush1.msra.mxu0 0.0
  %605 = vmatprep.subr.mxu0 0.0
  %606 = vmatpush1.msra.mxu0 0.0
  %607 = vmatprep.subr.mxu0 0.0
  %608 = vmatpush1.msra.mxu0 0.0
  %609 = vmatprep.subr.mxu0 0.0
  %610 = vmatpush1.msra.mxu0 0.0
  %611 = vmatprep.subr.mxu0 0.0
  %612 = vmatpush1.msra.mxu0 0.0
  %613 = vmatprep.subr.mxu0 0.0
  %614 = vmatpush1.msra.mxu0 0.0
  %615 = vmatprep.subr.mxu0 0.0
  %616 = vmatpush1.msra.mxu0 0.0
  %617 = vmatprep.mubr.f32.mxu0 0.0
  %618 = vmatmul.mubr.f32.gmra.mrb[0].mxu0 %v480
  %v619 = vpop.f32.mrb[0].mxu0
  %v620 = vadd.f32 0.0, %v619
  %v621 = vpop.f32.mrb[0].mxu0
  %622 = vdwg.mxu0
  %v624 = vrot.slane %v549, 6
  %v626 = vadd.f32 %v177, %v624
  %v627 = vsub.f32 0.0, %v626
  %v628 = vmul.f32 %v627, 1.442695
  %v629 = vpow.pop %v628
  %v630 = vadd.f32 %v629, 1.0
  %v631 = vrcp.pop %v630
  %v632 = vmul.f32 1.0, %v631
  %v634 = vrot.slane %v551, 6
  %v636 = vadd.f32 %v179, %v634
  %v637 = vsub.f32 0.0, %v636
  %v638 = vmul.f32 %v637, 1.442695
  %v639 = vpow.pop %v638
  %v640 = vadd.f32 %v639, 1.0
  %v641 = vrcp.pop %v640
  %v642 = vmul.f32 1.0, %v641
  %v643 = vadd.f32 %v620, %v471
  %v645 = vrot.slane %v643, 6
  %v647 = vmul.f32 %v632, %v645
  %v648 = vadd.f32 %v254, %v647
  %v649 = vtanh.pop %v648
  %v650 = vsub.f32 1.0, %v642
  %v651 = vmul.f32 %v650, %v649
  %v653 = vrot.slane %v480, 6
  %v655 = vmul.f32 %v642, %v653
  %v656 = vadd.f32 %v651, %v655
  %657 = vst [vmem:[#allocation2] sm:$0xc] %v656
  %v659 = vrot.slane %v656, 2
  %661 = vmatprep.subr.mxu0 %v263
  %662 = vmatpush1.msra.mxu0 %v262
  %663 = vmatprep.subr.mxu0 %v266
  %664 = vmatpush1.msra.mxu0 %v265
  %665 = vmatprep.subr.mxu0 %v269
  %666 = vmatpush1.msra.mxu0 %v268
  %667 = vmatprep.subr.mxu0 %v272
  %668 = vmatpush1.msra.mxu0 %v271
  %669 = vmatprep.subr.mxu0 %v275
  %670 = vmatpush1.msra.mxu0 %v274
  %671 = vmatprep.subr.mxu0 %v278
  %672 = vmatpush1.msra.mxu0 %v277
  %673 = vmatprep.subr.mxu0 %v281
  %674 = vmatpush1.msra.mxu0 %v280
  %675 = vmatprep.subr.mxu0 %v284
  %676 = vmatpush1.msra.mxu0 %v283
  %677 = vmatprep.subr.mxu0 %v287
  %678 = vmatpush1.msra.mxu0 %v286
  %679 = vmatprep.subr.mxu0 %v290
  %680 = vmatpush1.msra.mxu0 %v289
  %681 = vmatprep.subr.mxu0 %v293
  %682 = vmatpush1.msra.mxu0 %v292
  %683 = vmatprep.subr.mxu0 %v296
  %684 = vmatpush1.msra.mxu0 %v295
  %685 = vmatprep.subr.mxu0 %v299
  %686 = vmatpush1.msra.mxu0 %v298
  %687 = vmatprep.subr.mxu0 %v302
  %688 = vmatpush1.msra.mxu0 %v301
  %689 = vmatprep.subr.mxu0 %v305
  %690 = vmatpush1.msra.mxu0 %v304
  %691 = vmatprep.subr.mxu0 %v308
  %692 = vmatpush1.msra.mxu0 %v307
  %693 = vmatprep.subr.mxu0 0.0
  %694 = vmatpush1.msra.mxu0 0.0
  %695 = vmatprep.subr.mxu0 0.0
  %696 = vmatpush1.msra.mxu0 0.0
  %697 = vmatprep.subr.mxu0 0.0
  %698 = vmatpush1.msra.mxu0 0.0
  %699 = vmatprep.subr.mxu0 0.0
  %700 = vmatpush1.msra.mxu0 0.0
  %701 = vmatprep.subr.mxu0 0.0
  %702 = vmatpush1.msra.mxu0 0.0
  %703 = vmatprep.subr.mxu0 0.0
  %704 = vmatpush1.msra.mxu0 0.0
  %705 = vmatprep.subr.mxu0 0.0
  %706 = vmatpush1.msra.mxu0 0.0
  %707 = vmatprep.subr.mxu0 0.0
  %708 = vmatpush1.msra.mxu0 0.0
  %709 = vmatprep.subr.mxu0 0.0
  %710 = vmatpush1.msra.mxu0 0.0
  %711 = vmatprep.subr.mxu0 0.0
  %712 = vmatpush1.msra.mxu0 0.0
  %713 = vmatprep.subr.mxu0 0.0
  %714 = vmatpush1.msra.mxu0 0.0
  %715 = vmatprep.subr.mxu0 0.0
  %716 = vmatpush1.msra.mxu0 0.0
  %717 = vmatprep.subr.mxu0 0.0
  %718 = vmatpush1.msra.mxu0 0.0
  %719 = vmatprep.subr.mxu0 0.0
  %720 = vmatpush1.msra.mxu0 0.0
  %721 = vmatprep.subr.mxu0 0.0
  %722 = vmatpush1.msra.mxu0 0.0
  %723 = vmatprep.subr.mxu0 0.0
  %724 = vmatpush1.msra.mxu0 0.0
  %725 = vmatprep.mubr.f32.mxu0 0.0
  %726 = vmatmul.mubr.f32.gmra.mrb[0].mxu0 %v659
  %v727 = vpop.f32.mrb[0].mxu0
  %v728 = vadd.f32 0.0, %v727
  %v729 = vpop.f32.mrb[0].mxu0
  %v730 = vadd.f32 0.0, %v729
  %731 = vdwg.mxu0
  %732 = vmatprep.subr.mxu0 0.0
  %733 = vmatpush1.msra.mxu0 %v264
  %734 = vmatprep.subr.mxu0 0.0
  %735 = vmatpush1.msra.mxu0 %v267
  %736 = vmatprep.subr.mxu0 0.0
  %737 = vmatpush1.msra.mxu0 %v270
  %738 = vmatprep.subr.mxu0 0.0
  %739 = vmatpush1.msra.mxu0 %v273
  %740 = vmatprep.subr.mxu0 0.0
  %741 = vmatpush1.msra.mxu0 %v276
  %742 = vmatprep.subr.mxu0 0.0
  %743 = vmatpush1.msra.mxu0 %v279
  %744 = vmatprep.subr.mxu0 0.0
  %745 = vmatpush1.msra.mxu0 %v282
  %746 = vmatprep.subr.mxu0 0.0
  %747 = vmatpush1.msra.mxu0 %v285
  %748 = vmatprep.subr.mxu0 0.0
  %749 = vmatpush1.msra.mxu0 %v288
  %750 = vmatprep.subr.mxu0 0.0
  %751 = vmatpush1.msra.mxu0 %v291
  %752 = vmatprep.subr.mxu0 0.0
  %753 = vmatpush1.msra.mxu0 %v294
  %754 = vmatprep.subr.mxu0 0.0
  %755 = vmatpush1.msra.mxu0 %v297
  %756 = vmatprep.subr.mxu0 0.0
  %757 = vmatpush1.msra.mxu0 %v300
  %758 = vmatprep.subr.mxu0 0.0
  %759 = vmatpush1.msra.mxu0 %v303
  %760 = vmatprep.subr.mxu0 0.0
  %761 = vmatpush1.msra.mxu0 %v306
  %762 = vmatprep.subr.mxu0 0.0
  %763 = vmatpush1.msra.mxu0 %v309
  %764 = vmatprep.subr.mxu0 0.0
  %765 = vmatpush1.msra.mxu0 0.0
  %766 = vmatprep.subr.mxu0 0.0
  %767 = vmatpush1.msra.mxu0 0.0
  %768 = vmatprep.subr.mxu0 0.0
  %769 = vmatpush1.msra.mxu0 0.0
  %770 = vmatprep.subr.mxu0 0.0
  %771 = vmatpush1.msra.mxu0 0.0
  %772 = vmatprep.subr.mxu0 0.0
  %773 = vmatpush1.msra.mxu0 0.0
  %774 = vmatprep.subr.mxu0 0.0
  %775 = vmatpush1.msra.mxu0 0.0
  %776 = vmatprep.subr.mxu0 0.0
  %777 = vmatpush1.msra.mxu0 0.0
  %778 = vmatprep.subr.mxu0 0.0
  %779 = vmatpush1.msra.mxu0 0.0
  %780 = vmatprep.subr.mxu0 0.0
  %781 = vmatpush1.msra.mxu0 0.0
  %782 = vmatprep.subr.mxu0 0.0
  %783 = vmatpush1.msra.mxu0 0.0
  %784 = vmatprep.subr.mxu0 0.0
  %785 = vmatpush1.msra.mxu0 0.0
  %786 = vmatprep.subr.mxu0 0.0
  %787 = vmatpush1.msra.mxu0 0.0
  %788 = vmatprep.subr.mxu0 0.0
  %789 = vmatpush1.msra.mxu0 0.0
  %790 = vmatprep.subr.mxu0 0.0
  %791 = vmatpush1.msra.mxu0 0.0
  %792 = vmatprep.subr.mxu0 0.0
  %793 = vmatpush1.msra.mxu0 0.0
  %794 = vmatprep.subr.mxu0 0.0
  %795 = vmatpush1.msra.mxu0 0.0
  %796 = vmatprep.mubr.f32.mxu0 0.0
  %797 = vmatmul.mubr.f32.gmra.mrb[0].mxu0 %v659
  %v798 = vpop.f32.mrb[0].mxu0
  %v799 = vadd.f32 0.0, %v798
  %v800 = vpop.f32.mrb[0].mxu0
  %801 = vdwg.mxu0
  %v803 = vrot.slane %v728, 4
  %v805 = vadd.f32 %v177, %v803
  %v806 = vsub.f32 0.0, %v805
  %v807 = vmul.f32 %v806, 1.442695
  %v808 = vpow.pop %v807
  %v809 = vadd.f32 %v808, 1.0
  %v810 = vrcp.pop %v809
  %v811 = vmul.f32 1.0, %v810
  %v813 = vrot.slane %v730, 4
  %v815 = vadd.f32 %v179, %v813
  %v816 = vsub.f32 0.0, %v815
  %v817 = vmul.f32 %v816, 1.442695
  %v818 = vpow.pop %v817
  %v819 = vadd.f32 %v818, 1.0
  %v820 = vrcp.pop %v819
  %v821 = vmul.f32 1.0, %v820
  %v822 = vadd.f32 %v799, %v471
  %v824 = vrot.slane %v822, 4
  %v826 = vmul.f32 %v811, %v824
  %v827 = vadd.f32 %v254, %v826
  %v828 = vtanh.pop %v827
  %v829 = vsub.f32 1.0, %v821
  %v830 = vmul.f32 %v829, %v828
  %v831 = vrot.slane %v656, 6
  %v833 = vmul.f32 %v821, %v831
  %v834 = vadd.f32 %v830, %v833
  %835 = vst [vmem:[#allocation2] sm:$0x30] %v834
  %v837 = vrot.slane %v834, 4
  %839 = vmatprep.subr.mxu0 %v263
  %840 = vmatpush1.msra.mxu0 %v262
  %841 = vmatprep.subr.mxu0 %v266
  %842 = vmatpush1.msra.mxu0 %v265
  %843 = vmatprep.subr.mxu0 %v269
  %844 = vmatpush1.msra.mxu0 %v268
  %845 = vmatprep.subr.mxu0 %v272
  %846 = vmatpush1.msra.mxu0 %v271
  %847 = vmatprep.subr.mxu0 %v275
  %848 = vmatpush1.msra.mxu0 %v274
  %849 = vmatprep.subr.mxu0 %v278
  %850 = vmatpush1.msra.mxu0 %v277
  %851 = vmatprep.subr.mxu0 %v281
  %852 = vmatpush1.msra.mxu0 %v280
  %853 = vmatprep.subr.mxu0 %v284
  %854 = vmatpush1.msra.mxu0 %v283
  %855 = vmatprep.subr.mxu0 %v287
  %856 = vmatpush1.msra.mxu0 %v286
  %857 = vmatprep.subr.mxu0 %v290
  %858 = vmatpush1.msra.mxu0 %v289
  %859 = vmatprep.subr.mxu0 %v293
  %860 = vmatpush1.msra.mxu0 %v292
  %861 = vmatprep.subr.mxu0 %v296
  %862 = vmatpush1.msra.mxu0 %v295
  %863 = vmatprep.subr.mxu0 %v299
  %864 = vmatpush1.msra.mxu0 %v298
  %865 = vmatprep.subr.mxu0 %v302
  %866 = vmatpush1.msra.mxu0 %v301
  %867 = vmatprep.subr.mxu0 %v305
  %868 = vmatpush1.msra.mxu0 %v304
  %869 = vmatprep.subr.mxu0 %v308
  %870 = vmatpush1.msra.mxu0 %v307
  %871 = vmatprep.subr.mxu0 0.0
  %872 = vmatpush1.msra.mxu0 0.0
  %873 = vmatprep.subr.mxu0 0.0
  %874 = vmatpush1.msra.mxu0 0.0
  %875 = vmatprep.subr.mxu0 0.0
  %876 = vmatpush1.msra.mxu0 0.0
  %877 = vmatprep.subr.mxu0 0.0
  %878 = vmatpush1.msra.mxu0 0.0
  %879 = vmatprep.subr.mxu0 0.0
  %880 = vmatpush1.msra.mxu0 0.0
  %881 = vmatprep.subr.mxu0 0.0
  %882 = vmatpush1.msra.mxu0 0.0
  %883 = vmatprep.subr.mxu0 0.0
  %884 = vmatpush1.msra.mxu0 0.0
  %885 = vmatprep.subr.mxu0 0.0
  %886 = vmatpush1.msra.mxu0 0.0
  %887 = vmatprep.subr.mxu0 0.0
  %888 = vmatpush1.msra.mxu0 0.0
  %889 = vmatprep.subr.mxu0 0.0
  %890 = vmatpush1.msra.mxu0 0.0
  %891 = vmatprep.subr.mxu0 0.0
  %892 = vmatpush1.msra.mxu0 0.0
  %893 = vmatprep.subr.mxu0 0.0
  %894 = vmatpush1.msra.mxu0 0.0
  %895 = vmatprep.subr.mxu0 0.0
  %896 = vmatpush1.msra.mxu0 0.0
  %897 = vmatprep.subr.mxu0 0.0
  %898 = vmatpush1.msra.mxu0 0.0
  %899 = vmatprep.subr.mxu0 0.0
  %900 = vmatpush1.msra.mxu0 0.0
  %901 = vmatprep.subr.mxu0 0.0
  %902 = vmatpush1.msra.mxu0 0.0
  %903 = vmatprep.mubr.f32.mxu0 0.0
  %904 = vmatmul.mubr.f32.gmra.mrb[0].mxu0 %v837
  %v905 = vpop.f32.mrb[0].mxu0
  %v906 = vadd.f32 0.0, %v905
  %v907 = vpop.f32.mrb[0].mxu0
  %v908 = vadd.f32 0.0, %v907
  %909 = vdwg.mxu0
  %910 = vmatprep.subr.mxu0 0.0
  %911 = vmatpush1.msra.mxu0 %v264
  %912 = vmatprep.subr.mxu0 0.0
  %913 = vmatpush1.msra.mxu0 %v267
  %914 = vmatprep.subr.mxu0 0.0
  %915 = vmatpush1.msra.mxu0 %v270
  %916 = vmatprep.subr.mxu0 0.0
  %917 = vmatpush1.msra.mxu0 %v273
  %918 = vmatprep.subr.mxu0 0.0
  %919 = vmatpush1.msra.mxu0 %v276
  %920 = vmatprep.subr.mxu0 0.0
  %921 = vmatpush1.msra.mxu0 %v279
  %922 = vmatprep.subr.mxu0 0.0
  %923 = vmatpush1.msra.mxu0 %v282
  %924 = vmatprep.subr.mxu0 0.0
  %925 = vmatpush1.msra.mxu0 %v285
  %926 = vmatprep.subr.mxu0 0.0
  %927 = vmatpush1.msra.mxu0 %v288
  %928 = vmatprep.subr.mxu0 0.0
  %929 = vmatpush1.msra.mxu0 %v291
  %930 = vmatprep.subr.mxu0 0.0
  %931 = vmatpush1.msra.mxu0 %v294
  %932 = vmatprep.subr.mxu0 0.0
  %933 = vmatpush1.msra.mxu0 %v297
  %934 = vmatprep.subr.mxu0 0.0
  %935 = vmatpush1.msra.mxu0 %v300
  %936 = vmatprep.subr.mxu0 0.0
  %937 = vmatpush1.msra.mxu0 %v303
  %938 = vmatprep.subr.mxu0 0.0
  %939 = vmatpush1.msra.mxu0 %v306
  %940 = vmatprep.subr.mxu0 0.0
  %941 = vmatpush1.msra.mxu0 %v309
  %942 = vmatprep.subr.mxu0 0.0
  %943 = vmatpush1.msra.mxu0 0.0
  %944 = vmatprep.subr.mxu0 0.0
  %945 = vmatpush1.msra.mxu0 0.0
  %946 = vmatprep.subr.mxu0 0.0
  %947 = vmatpush1.msra.mxu0 0.0
  %948 = vmatprep.subr.mxu0 0.0
  %949 = vmatpush1.msra.mxu0 0.0
  %950 = vmatprep.subr.mxu0 0.0
  %951 = vmatpush1.msra.mxu0 0.0
  %952 = vmatprep.subr.mxu0 0.0
  %953 = vmatpush1.msra.mxu0 0.0
  %954 = vmatprep.subr.mxu0 0.0
  %955 = vmatpush1.msra.mxu0 0.0
  %956 = vmatprep.subr.mxu0 0.0
  %957 = vmatpush1.msra.mxu0 0.0
  %958 = vmatprep.subr.mxu0 0.0
  %959 = vmatpush1.msra.mxu0 0.0
  %960 = vmatprep.subr.mxu0 0.0
  %961 = vmatpush1.msra.mxu0 0.0
  %962 = vmatprep.subr.mxu0 0.0
  %963 = vmatpush1.msra.mxu0 0.0
  %964 = vmatprep.subr.mxu0 0.0
  %965 = vmatpush1.msra.mxu0 0.0
  %966 = vmatprep.subr.mxu0 0.0
  %967 = vmatpush1.msra.mxu0 0.0
  %968 = vmatprep.subr.mxu0 0.0
  %969 = vmatpush1.msra.mxu0 0.0
  %970 = vmatprep.subr.mxu0 0.0
  %971 = vmatpush1.msra.mxu0 0.0
  %972 = vmatprep.subr.mxu0 0.0
  %973 = vmatpush1.msra.mxu0 0.0
  %974 = vmatprep.mubr.f32.mxu0 0.0
  %975 = vmatmul.mubr.f32.gmra.mrb[0].mxu0 %v837
  %v976 = vpop.f32.mrb[0].mxu0
  %v977 = vadd.f32 0.0, %v976
  %v978 = vpop.f32.mrb[0].mxu0
  %979 = vdwg.mxu0
  %v981 = vrot.slane %v906, 2
  %v983 = vadd.f32 %v177, %v981
  %v984 = vsub.f32 0.0, %v983
  %v985 = vmul.f32 %v984, 1.442695
  %v986 = vpow.pop %v985
  %v987 = vadd.f32 %v986, 1.0
  %v988 = vrcp.pop %v987
  %v989 = vmul.f32 1.0, %v988
  %v991 = vrot.slane %v908, 2
  %v993 = vadd.f32 %v179, %v991
  %v994 = vsub.f32 0.0, %v993
  %v995 = vmul.f32 %v994, 1.442695
  %v996 = vpow.pop %v995
  %v997 = vadd.f32 %v996, 1.0
  %v998 = vrcp.pop %v997
  %v999 = vmul.f32 1.0, %v998
  %v1000 = vadd.f32 %v977, %v471
  %v1002 = vrot.slane %v1000, 2
  %v1004 = vmul.f32 %v989, %v1002
  %v1005 = vadd.f32 %v254, %v1004
  %v1006 = vtanh.pop %v1005
  %v1007 = vsub.f32 1.0, %v999
  %v1008 = vmul.f32 %v1007, %v1006
  %v1009 = vrot.slane %v834, 6
  %v1011 = vmul.f32 %v999, %v1009
  %v1012 = vadd.f32 %v1008, %v1011
  %1013 = vst [vmem:[#allocation2] sm:$0xc0] %v1012
  %v1015 = vrot.slane %v1012, 6
  %1017 = vmatprep.subr.mxu0 %v263
  %1018 = vmatpush1.msra.mxu0 %v262
  %1019 = vmatprep.subr.mxu0 %v266
  %1020 = vmatpush1.msra.mxu0 %v265
  %1021 = vmatprep.subr.mxu0 %v269
  %1022 = vmatpush1.msra.mxu0 %v268
  %1023 = vmatprep.subr.mxu0 %v272
  %1024 = vmatpush1.msra.mxu0 %v271
  %1025 = vmatprep.subr.mxu0 %v275
  %1026 = vmatpush1.msra.mxu0 %v274
  %1027 = vmatprep.subr.mxu0 %v278
  %1028 = vmatpush1.msra.mxu0 %v277
  %1029 = vmatprep.subr.mxu0 %v281
  %1030 = vmatpush1.msra.mxu0 %v280
  %1031 = vmatprep.subr.mxu0 %v284
  %1032 = vmatpush1.msra.mxu0 %v283
  %1033 = vmatprep.subr.mxu0 %v287
  %1034 = vmatpush1.msra.mxu0 %v286
  %1035 = vmatprep.subr.mxu0 %v290
  %1036 = vmatpush1.msra.mxu0 %v289
  %1037 = vmatprep.subr.mxu0 %v293
  %1038 = vmatpush1.msra.mxu0 %v292
  %1039 = vmatprep.subr.mxu0 %v296
  %1040 = vmatpush1.msra.mxu0 %v295
  %1041 = vmatprep.subr.mxu0 %v299
  %1042 = vmatpush1.msra.mxu0 %v298
  %1043 = vmatprep.subr.mxu0 %v302
  %1044 = vmatpush1.msra.mxu0 %v301
  %1045 = vmatprep.subr.mxu0 %v305
  %1046 = vmatpush1.msra.mxu0 %v304
  %1047 = vmatprep.subr.mxu0 %v308
  %1048 = vmatpush1.msra.mxu0 %v307
  %1049 = vmatprep.subr.mxu0 0.0
  %1050 = vmatpush1.msra.mxu0 0.0
  %1051 = vmatprep.subr.mxu0 0.0
  %1052 = vmatpush1.msra.mxu0 0.0
  %1053 = vmatprep.subr.mxu0 0.0
  %1054 = vmatpush1.msra.mxu0 0.0
  %1055 = vmatprep.subr.mxu0 0.0
  %1056 = vmatpush1.msra.mxu0 0.0
  %1057 = vmatprep.subr.mxu0 0.0
  %1058 = vmatpush1.msra.mxu0 0.0
  %1059 = vmatprep.subr.mxu0 0.0
  %1060 = vmatpush1.msra.mxu0 0.0
  %1061 = vmatprep.subr.mxu0 0.0
  %1062 = vmatpush1.msra.mxu0 0.0
  %1063 = vmatprep.subr.mxu0 0.0
  %1064 = vmatpush1.msra.mxu0 0.0
  %1065 = vmatprep.subr.mxu0 0.0
  %1066 = vmatpush1.msra.mxu0 0.0
  %1067 = vmatprep.subr.mxu0 0.0
  %1068 = vmatpush1.msra.mxu0 0.0
  %1069 = vmatprep.subr.mxu0 0.0
  %1070 = vmatpush1.msra.mxu0 0.0
  %1071 = vmatprep.subr.mxu0 0.0
  %1072 = vmatpush1.msra.mxu0 0.0
  %1073 = vmatprep.subr.mxu0 0.0
  %1074 = vmatpush1.msra.mxu0 0.0
  %1075 = vmatprep.subr.mxu0 0.0
  %1076 = vmatpush1.msra.mxu0 0.0
  %1077 = vmatprep.subr.mxu0 0.0
  %1078 = vmatpush1.msra.mxu0 0.0
  %1079 = vmatprep.subr.mxu0 0.0
  %1080 = vmatpush1.msra.mxu0 0.0
  %1081 = vmatprep.mubr.f32.mxu0 0.0
  %1082 = vmatmul.mubr.f32.gmra.mrb[0].mxu0 %v1015
  %v1083 = vpop.f32.mrb[0].mxu0
  %v1084 = vadd.f32 0.0, %v1083
  %v1085 = vpop.f32.mrb[0].mxu0
  %v1086 = vadd.f32 0.0, %v1085
  %1087 = vdwg.mxu0
  %1088 = vmatprep.subr.mxu0 0.0
  %1089 = vmatpush1.msra.mxu0 %v264
  %1090 = vmatprep.subr.mxu0 0.0
  %1091 = vmatpush1.msra.mxu0 %v267
  %1092 = vmatprep.subr.mxu0 0.0
  %1093 = vmatpush1.msra.mxu0 %v270
  %1094 = vmatprep.subr.mxu0 0.0
  %1095 = vmatpush1.msra.mxu0 %v273
  %1096 = vmatprep.subr.mxu0 0.0
  %1097 = vmatpush1.msra.mxu0 %v276
  %1098 = vmatprep.subr.mxu0 0.0
  %1099 = vmatpush1.msra.mxu0 %v279
  %1100 = vmatprep.subr.mxu0 0.0
  %1101 = vmatpush1.msra.mxu0 %v282
  %1102 = vmatprep.subr.mxu0 0.0
  %1103 = vmatpush1.msra.mxu0 %v285
  %1104 = vmatprep.subr.mxu0 0.0
  %1105 = vmatpush1.msra.mxu0 %v288
  %1106 = vmatprep.subr.mxu0 0.0
  %1107 = vmatpush1.msra.mxu0 %v291
  %1108 = vmatprep.subr.mxu0 0.0
  %1109 = vmatpush1.msra.mxu0 %v294
  %1110 = vmatprep.subr.mxu0 0.0
  %1111 = vmatpush1.msra.mxu0 %v297
  %1112 = vmatprep.subr.mxu0 0.0
  %1113 = vmatpush1.msra.mxu0 %v300
  %1114 = vmatprep.subr.mxu0 0.0
  %1115 = vmatpush1.msra.mxu0 %v303
  %1116 = vmatprep.subr.mxu0 0.0
  %1117 = vmatpush1.msra.mxu0 %v306
  %1118 = vmatprep.subr.mxu0 0.0
  %1119 = vmatpush1.msra.mxu0 %v309
  %1120 = vmatprep.subr.mxu0 0.0
  %1121 = vmatpush1.msra.mxu0 0.0
  %1122 = vmatprep.subr.mxu0 0.0
  %1123 = vmatpush1.msra.mxu0 0.0
  %1124 = vmatprep.subr.mxu0 0.0
  %1125 = vmatpush1.msra.mxu0 0.0
  %1126 = vmatprep.subr.mxu0 0.0
  %1127 = vmatpush1.msra.mxu0 0.0
  %1128 = vmatprep.subr.mxu0 0.0
  %1129 = vmatpush1.msra.mxu0 0.0
  %1130 = vmatprep.subr.mxu0 0.0
  %1131 = vmatpush1.msra.mxu0 0.0
  %1132 = vmatprep.subr.mxu0 0.0
  %1133 = vmatpush1.msra.mxu0 0.0
  %1134 = vmatprep.subr.mxu0 0.0
  %1135 = vmatpush1.msra.mxu0 0.0
  %1136 = vmatprep.subr.mxu0 0.0
  %1137 = vmatpush1.msra.mxu0 0.0
  %1138 = vmatprep.subr.mxu0 0.0
  %1139 = vmatpush1.msra.mxu0 0.0
  %1140 = vmatprep.subr.mxu0 0.0
  %1141 = vmatpush1.msra.mxu0 0.0
  %1142 = vmatprep.subr.mxu0 0.0
  %1143 = vmatpush1.msra.mxu0 0.0
  %1144 = vmatprep.subr.mxu0 0.0
  %1145 = vmatpush1.msra.mxu0 0.0
  %1146 = vmatprep.subr.mxu0 0.0
  %1147 = vmatpush1.msra.mxu0 0.0
  %1148 = vmatprep.subr.mxu0 0.0
  %1149 = vmatpush1.msra.mxu0 0.0
  %1150 = vmatprep.subr.mxu0 0.0
  %1151 = vmatpush1.msra.mxu0 0.0
  %1152 = vmatprep.mubr.f32.mxu0 0.0
  %1153 = vmatmul.mubr.f32.gmra.mrb[0].mxu0 %v1015
  %v1154 = vpop.f32.mrb[0].mxu0
  %v1155 = vadd.f32 0.0, %v1154
  %v1156 = vpop.f32.mrb[0].mxu0
  %1157 = vdwg.mxu0
  %v1158 = vadd.f32 %v183, %v1084
  %v1159 = vsub.f32 0.0, %v1158
  %v1160 = vmul.f32 %v1159, 1.442695
  %v1161 = vpow.pop %v1160
  %v1162 = vadd.f32 %v1161, 1.0
  %v1163 = vrcp.pop %v1162
  %v1164 = vmul.f32 1.0, %v1163
  %v1165 = vadd.f32 %v185, %v1086
  %v1166 = vsub.f32 0.0, %v1165
  %v1167 = vmul.f32 %v1166, 1.442695
  %v1168 = vpow.pop %v1167
  %v1169 = vadd.f32 %v1168, 1.0
  %v1170 = vrcp.pop %v1169
  %v1171 = vmul.f32 1.0, %v1170
  %v1172 = vadd.f32 %v1155, %v471
  %v1173 = vmul.f32 %v1164, %v1172
  %v1174 = vadd.f32 %v259, %v1173
  %v1175 = vtanh.pop %v1174
  %v1176 = vsub.f32 1.0, %v1171
  %v1177 = vmul.f32 %v1176, %v1175
  %v1178 = vmul.f32 %v1171, %v1015
  %v1179 = vadd.f32 %v1177, %v1178
  %1180 = vst [vmem:[#allocation2 + $0x8] sm:$0x3] %v1179
  %1181 = vmatprep.subr.mxu0 %v263
  %1182 = vmatpush1.msra.mxu0 %v262
  %1183 = vmatprep.subr.mxu0 %v266
  %1184 = vmatpush1.msra.mxu0 %v265
  %1185 = vmatprep.subr.mxu0 %v269
  %1186 = vmatpush1.msra.mxu0 %v268
  %1187 = vmatprep.subr.mxu0 %v272
  %1188 = vmatpush1.msra.mxu0 %v271
  %1189 = vmatprep.subr.mxu0 %v275
  %1190 = vmatpush1.msra.mxu0 %v274
  %1191 = vmatprep.subr.mxu0 %v278
  %1192 = vmatpush1.msra.mxu0 %v277
  %1193 = vmatprep.subr.mxu0 %v281
  %1194 = vmatpush1.msra.mxu0 %v280
  %1195 = vmatprep.subr.mxu0 %v284
  %1196 = vmatpush1.msra.mxu0 %v283
  %1197 = vmatprep.subr.mxu0 %v287
  %1198 = vmatpush1.msra.mxu0 %v286
  %1199 = vmatprep.subr.mxu0 %v290
  %1200 = vmatpush1.msra.mxu0 %v289
  %1201 = vmatprep.subr.mxu0 %v293
  %1202 = vmatpush1.msra.mxu0 %v292
  %1203 = vmatprep.subr.mxu0 %v296
  %1204 = vmatpush1.msra.mxu0 %v295
  %1205 = vmatprep.subr.mxu0 %v299
  %1206 = vmatpush1.msra.mxu0 %v298
  %1207 = vmatprep.subr.mxu0 %v302
  %1208 = vmatpush1.msra.mxu0 %v301
  %1209 = vmatprep.subr.mxu0 %v305
  %1210 = vmatpush1.msra.mxu0 %v304
  %1211 = vmatprep.subr.mxu0 %v308
  %1212 = vmatpush1.msra.mxu0 %v307
  %1213 = vmatprep.subr.mxu0 0.0
  %1214 = vmatpush1.msra.mxu0 0.0
  %1215 = vmatprep.subr.mxu0 0.0
  %1216 = vmatpush1.msra.mxu0 0.0
  %1217 = vmatprep.subr.mxu0 0.0
  %1218 = vmatpush1.msra.mxu0 0.0
  %1219 = vmatprep.subr.mxu0 0.0
  %1220 = vmatpush1.msra.mxu0 0.0
  %1221 = vmatprep.subr.mxu0 0.0
  %1222 = vmatpush1.msra.mxu0 0.0
  %1223 = vmatprep.subr.mxu0 0.0
  %1224 = vmatpush1.msra.mxu0 0.0
  %1225 = vmatprep.subr.mxu0 0.0
  %1226 = vmatpush1.msra.mxu0 0.0
  %1227 = vmatprep.subr.mxu0 0.0
  %1228 = vmatpush1.msra.mxu0 0.0
  %1229 = vmatprep.subr.mxu0 0.0
  %1230 = vmatpush1.msra.mxu0 0.0
  %1231 = vmatprep.subr.mxu0 0.0
  %1232 = vmatpush1.msra.mxu0 0.0
  %1233 = vmatprep.subr.mxu0 0.0
  %1234 = vmatpush1.msra.mxu0 0.0
  %1235 = vmatprep.subr.mxu0 0.0
  %1236 = vmatpush1.msra.mxu0 0.0
  %1237 = vmatprep.subr.mxu0 0.0
  %1238 = vmatpush1.msra.mxu0 0.0
  %1239 = vmatprep.subr.mxu0 0.0
  %1240 = vmatpush1.msra.mxu0 0.0
  %1241 = vmatprep.subr.mxu0 0.0
  %1242 = vmatpush1.msra.mxu0 0.0
  %1243 = vmatprep.subr.mxu0 0.0
  %1244 = vmatpush1.msra.mxu0 0.0
  %1245 = vmatprep.mubr.f32.mxu0 0.0
  %1246 = vmatmul.mubr.f32.gmra.mrb[0].mxu0 %v1179
  %v1247 = vpop.f32.mrb[0].mxu0
  %v1248 = vadd.f32 0.0, %v1247
  %v1249 = vpop.f32.mrb[0].mxu0
  %v1250 = vadd.f32 0.0, %v1249
  %1251 = vdwg.mxu0
  %1252 = vmatprep.subr.mxu0 0.0
  %1253 = vmatpush1.msra.mxu0 %v264
  %1254 = vmatprep.subr.mxu0 0.0
  %1255 = vmatpush1.msra.mxu0 %v267
  %1256 = vmatprep.subr.mxu0 0.0
  %1257 = vmatpush1.msra.mxu0 %v270
  %1258 = vmatprep.subr.mxu0 0.0
  %1259 = vmatpush1.msra.mxu0 %v273
  %1260 = vmatprep.subr.mxu0 0.0
  %1261 = vmatpush1.msra.mxu0 %v276
  %1262 = vmatprep.subr.mxu0 0.0
  %1263 = vmatpush1.msra.mxu0 %v279
  %1264 = vmatprep.subr.mxu0 0.0
  %1265 = vmatpush1.msra.mxu0 %v282
  %1266 = vmatprep.subr.mxu0 0.0
  %1267 = vmatpush1.msra.mxu0 %v285
  %1268 = vmatprep.subr.mxu0 0.0
  %1269 = vmatpush1.msra.mxu0 %v288
  %1270 = vmatprep.subr.mxu0 0.0
  %1271 = vmatpush1.msra.mxu0 %v291
  %1272 = vmatprep.subr.mxu0 0.0
  %1273 = vmatpush1.msra.mxu0 %v294
  %1274 = vmatprep.subr.mxu0 0.0
  %1275 = vmatpush1.msra.mxu0 %v297
  %1276 = vmatprep.subr.mxu0 0.0
  %1277 = vmatpush1.msra.mxu0 %v300
  %1278 = vmatprep.subr.mxu0 0.0
  %1279 = vmatpush1.msra.mxu0 %v303
  %1280 = vmatprep.subr.mxu0 0.0
  %1281 = vmatpush1.msra.mxu0 %v306
  %1282 = vmatprep.subr.mxu0 0.0
  %1283 = vmatpush1.msra.mxu0 %v309
  %1284 = vmatprep.subr.mxu0 0.0
  %1285 = vmatpush1.msra.mxu0 0.0
  %1286 = vmatprep.subr.mxu0 0.0
  %1287 = vmatpush1.msra.mxu0 0.0
  %1288 = vmatprep.subr.mxu0 0.0
  %1289 = vmatpush1.msra.mxu0 0.0
  %1290 = vmatprep.subr.mxu0 0.0
  %1291 = vmatpush1.msra.mxu0 0.0
  %1292 = vmatprep.subr.mxu0 0.0
  %1293 = vmatpush1.msra.mxu0 0.0
  %1294 = vmatprep.subr.mxu0 0.0
  %1295 = vmatpush1.msra.mxu0 0.0
  %1296 = vmatprep.subr.mxu0 0.0
  %1297 = vmatpush1.msra.mxu0 0.0
  %1298 = vmatprep.subr.mxu0 0.0
  %1299 = vmatpush1.msra.mxu0 0.0
  %1300 = vmatprep.subr.mxu0 0.0
  %1301 = vmatpush1.msra.mxu0 0.0
  %1302 = vmatprep.subr.mxu0 0.0
  %1303 = vmatpush1.msra.mxu0 0.0
  %1304 = vmatprep.subr.mxu0 0.0
  %1305 = vmatpush1.msra.mxu0 0.0
  %1306 = vmatprep.subr.mxu0 0.0
  %1307 = vmatpush1.msra.mxu0 0.0
  %1308 = vmatprep.subr.mxu0 0.0
  %1309 = vmatpush1.msra.mxu0 0.0
  %1310 = vmatprep.subr.mxu0 0.0
  %1311 = vmatpush1.msra.mxu0 0.0
  %1312 = vmatprep.subr.mxu0 0.0
  %1313 = vmatpush1.msra.mxu0 0.0
  %1314 = vmatprep.subr.mxu0 0.0
  %1315 = vmatpush1.msra.mxu0 0.0
  %1316 = vmatprep.mubr.f32.mxu0 0.0
  %1317 = vmatmul.mubr.f32.gmra.mrb[0].mxu0 %v1179
  %v1318 = vpop.f32.mrb[0].mxu0
  %v1319 = vadd.f32 0.0, %v1318
  %v1320 = vpop.f32.mrb[0].mxu0
  %1321 = vdwg.mxu0
  %v1323 = vrot.slane %v1248, 6
  %v1325 = vadd.f32 %v183, %v1323
  %v1326 = vsub.f32 0.0, %v1325
  %v1327 = vmul.f32 %v1326, 1.442695
  %v1328 = vpow.pop %v1327
  %v1329 = vadd.f32 %v1328, 1.0
  %v1330 = vrcp.pop %v1329
  %v1331 = vmul.f32 1.0, %v1330
  %v1333 = vrot.slane %v1250, 6
  %v1335 = vadd.f32 %v185, %v1333
  %v1336 = vsub.f32 0.0, %v1335
  %v1337 = vmul.f32 %v1336, 1.442695
  %v1338 = vpow.pop %v1337
  %v1339 = vadd.f32 %v1338, 1.0
  %v1340 = vrcp.pop %v1339
  %v1341 = vmul.f32 1.0, %v1340
  %v1342 = vadd.f32 %v1319, %v471
  %v1344 = vrot.slane %v1342, 6
  %v1346 = vmul.f32 %v1331, %v1344
  %v1347 = vadd.f32 %v259, %v1346
  %v1348 = vtanh.pop %v1347
  %v1349 = vsub.f32 1.0, %v1341
  %v1350 = vmul.f32 %v1349, %v1348
  %v1352 = vrot.slane %v1179, 6
  %v1354 = vmul.f32 %v1341, %v1352
  %v1355 = vadd.f32 %v1350, %v1354
  %1356 = vst [vmem:[#allocation2 + $0x8] sm:$0xc] %v1355
  %v1358 = vrot.slane %v1355, 2
  %1360 = vmatprep.subr.mxu0 %v263
  %1361 = vmatpush1.msra.mxu0 %v262
  %1362 = vmatprep.subr.mxu0 %v266
  %1363 = vmatpush1.msra.mxu0 %v265
  %1364 = vmatprep.subr.mxu0 %v269
  %1365 = vmatpush1.msra.mxu0 %v268
  %1366 = vmatprep.subr.mxu0 %v272
  %1367 = vmatpush1.msra.mxu0 %v271
  %1368 = vmatprep.subr.mxu0 %v275
  %1369 = vmatpush1.msra.mxu0 %v274
  %1370 = vmatprep.subr.mxu0 %v278
  %1371 = vmatpush1.msra.mxu0 %v277
  %1372 = vmatprep.subr.mxu0 %v281
  %1373 = vmatpush1.msra.mxu0 %v280
  %1374 = vmatprep.subr.mxu0 %v284
  %1375 = vmatpush1.msra.mxu0 %v283
  %1376 = vmatprep.subr.mxu0 %v287
  %1377 = vmatpush1.msra.mxu0 %v286
  %1378 = vmatprep.subr.mxu0 %v290
  %1379 = vmatpush1.msra.mxu0 %v289
  %1380 = vmatprep.subr.mxu0 %v293
  %1381 = vmatpush1.msra.mxu0 %v292
  %1382 = vmatprep.subr.mxu0 %v296
  %1383 = vmatpush1.msra.mxu0 %v295
  %1384 = vmatprep.subr.mxu0 %v299
  %1385 = vmatpush1.msra.mxu0 %v298
  %1386 = vmatprep.subr.mxu0 %v302
  %1387 = vmatpush1.msra.mxu0 %v301
  %1388 = vmatprep.subr.mxu0 %v305
  %1389 = vmatpush1.msra.mxu0 %v304
  %1390 = vmatprep.subr.mxu0 %v308
  %1391 = vmatpush1.msra.mxu0 %v307
  %1392 = vmatprep.subr.mxu0 0.0
  %1393 = vmatpush1.msra.mxu0 0.0
  %1394 = vmatprep.subr.mxu0 0.0
  %1395 = vmatpush1.msra.mxu0 0.0
  %1396 = vmatprep.subr.mxu0 0.0
  %1397 = vmatpush1.msra.mxu0 0.0
  %1398 = vmatprep.subr.mxu0 0.0
  %1399 = vmatpush1.msra.mxu0 0.0
  %1400 = vmatprep.subr.mxu0 0.0
  %1401 = vmatpush1.msra.mxu0 0.0
  %1402 = vmatprep.subr.mxu0 0.0
  %1403 = vmatpush1.msra.mxu0 0.0
  %1404 = vmatprep.subr.mxu0 0.0
  %1405 = vmatpush1.msra.mxu0 0.0
  %1406 = vmatprep.subr.mxu0 0.0
  %1407 = vmatpush1.msra.mxu0 0.0
  %1408 = vmatprep.subr.mxu0 0.0
  %1409 = vmatpush1.msra.mxu0 0.0
  %1410 = vmatprep.subr.mxu0 0.0
  %1411 = vmatpush1.msra.mxu0 0.0
  %1412 = vmatprep.subr.mxu0 0.0
  %1413 = vmatpush1.msra.mxu0 0.0
  %1414 = vmatprep.subr.mxu0 0.0
  %1415 = vmatpush1.msra.mxu0 0.0
  %1416 = vmatprep.subr.mxu0 0.0
  %1417 = vmatpush1.msra.mxu0 0.0
  %1418 = vmatprep.subr.mxu0 0.0
  %1419 = vmatpush1.msra.mxu0 0.0
  %1420 = vmatprep.subr.mxu0 0.0
  %1421 = vmatpush1.msra.mxu0 0.0
  %1422 = vmatprep.subr.mxu0 0.0
  %1423 = vmatpush1.msra.mxu0 0.0
  %1424 = vmatprep.mubr.f32.mxu0 0.0
  %1425 = vmatmul.mubr.f32.gmra.mrb[0].mxu0 %v1358
  %v1426 = vpop.f32.mrb[0].mxu0
  %v1427 = vadd.f32 0.0, %v1426
  %v1428 = vpop.f32.mrb[0].mxu0
  %v1429 = vadd.f32 0.0, %v1428
  %1430 = vdwg.mxu0
  %1431 = vmatprep.subr.mxu0 0.0
  %1432 = vmatpush1.msra.mxu0 %v264
  %1433 = vmatprep.subr.mxu0 0.0
  %1434 = vmatpush1.msra.mxu0 %v267
  %1435 = vmatprep.subr.mxu0 0.0
  %1436 = vmatpush1.msra.mxu0 %v270
  %1437 = vmatprep.subr.mxu0 0.0
  %1438 = vmatpush1.msra.mxu0 %v273
  %1439 = vmatprep.subr.mxu0 0.0
  %1440 = vmatpush1.msra.mxu0 %v276
  %1441 = vmatprep.subr.mxu0 0.0
  %1442 = vmatpush1.msra.mxu0 %v279
  %1443 = vmatprep.subr.mxu0 0.0
  %1444 = vmatpush1.msra.mxu0 %v282
  %1445 = vmatprep.subr.mxu0 0.0
  %1446 = vmatpush1.msra.mxu0 %v285
  %1447 = vmatprep.subr.mxu0 0.0
  %1448 = vmatpush1.msra.mxu0 %v288
  %1449 = vmatprep.subr.mxu0 0.0
  %1450 = vmatpush1.msra.mxu0 %v291
  %1451 = vmatprep.subr.mxu0 0.0
  %1452 = vmatpush1.msra.mxu0 %v294
  %1453 = vmatprep.subr.mxu0 0.0
  %1454 = vmatpush1.msra.mxu0 %v297
  %1455 = vmatprep.subr.mxu0 0.0
  %1456 = vmatpush1.msra.mxu0 %v300
  %1457 = vmatprep.subr.mxu0 0.0
  %1458 = vmatpush1.msra.mxu0 %v303
  %1459 = vmatprep.subr.mxu0 0.0
  %1460 = vmatpush1.msra.mxu0 %v306
  %1461 = vmatprep.subr.mxu0 0.0
  %1462 = vmatpush1.msra.mxu0 %v309
  %1463 = vmatprep.subr.mxu0 0.0
  %1464 = vmatpush1.msra.mxu0 0.0
  %1465 = vmatprep.subr.mxu0 0.0
  %1466 = vmatpush1.msra.mxu0 0.0
  %1467 = vmatprep.subr.mxu0 0.0
  %1468 = vmatpush1.msra.mxu0 0.0
  %1469 = vmatprep.subr.mxu0 0.0
  %1470 = vmatpush1.msra.mxu0 0.0
  %1471 = vmatprep.subr.mxu0 0.0
  %1472 = vmatpush1.msra.mxu0 0.0
  %1473 = vmatprep.subr.mxu0 0.0
  %1474 = vmatpush1.msra.mxu0 0.0
  %1475 = vmatprep.subr.mxu0 0.0
  %1476 = vmatpush1.msra.mxu0 0.0
  %1477 = vmatprep.subr.mxu0 0.0
  %1478 = vmatpush1.msra.mxu0 0.0
  %1479 = vmatprep.subr.mxu0 0.0
  %1480 = vmatpush1.msra.mxu0 0.0
  %1481 = vmatprep.subr.mxu0 0.0
  %1482 = vmatpush1.msra.mxu0 0.0
  %1483 = vmatprep.subr.mxu0 0.0
  %1484 = vmatpush1.msra.mxu0 0.0
  %1485 = vmatprep.subr.mxu0 0.0
  %1486 = vmatpush1.msra.mxu0 0.0
  %1487 = vmatprep.subr.mxu0 0.0
  %1488 = vmatpush1.msra.mxu0 0.0
  %1489 = vmatprep.subr.mxu0 0.0
  %1490 = vmatpush1.msra.mxu0 0.0
  %1491 = vmatprep.subr.mxu0 0.0
  %1492 = vmatpush1.msra.mxu0 0.0
  %1493 = vmatprep.subr.mxu0 0.0
  %1494 = vmatpush1.msra.mxu0 0.0
  %1495 = vmatprep.mubr.f32.mxu0 0.0
  %1496 = vmatmul.mubr.f32.gmra.mrb[0].mxu0 %v1358
  %v1497 = vpop.f32.mrb[0].mxu0
  %v1498 = vadd.f32 0.0, %v1497
  %v1499 = vpop.f32.mrb[0].mxu0
  %1500 = vdwg.mxu0
  %v1502 = vrot.slane %v1427, 4
  %v1504 = vadd.f32 %v183, %v1502
  %v1505 = vsub.f32 0.0, %v1504
  %v1506 = vmul.f32 %v1505, 1.442695
  %v1507 = vpow.pop %v1506
  %v1508 = vadd.f32 %v1507, 1.0
  %v1509 = vrcp.pop %v1508
  %v1510 = vmul.f32 1.0, %v1509
  %v1512 = vrot.slane %v1429, 4
  %v1514 = vadd.f32 %v185, %v1512
  %v1515 = vsub.f32 0.0, %v1514
  %v1516 = vmul.f32 %v1515, 1.442695
  %v1517 = vpow.pop %v1516
  %v1518 = vadd.f32 %v1517, 1.0
  %v1519 = vrcp.pop %v1518
  %v1520 = vmul.f32 1.0, %v1519
  %v1521 = vadd.f32 %v1498, %v471
  %v1523 = vrot.slane %v1521, 4
  %v1525 = vmul.f32 %v1510, %v1523
  %v1526 = vadd.f32 %v259, %v1525
  %v1527 = vtanh.pop %v1526
  %v1528 = vsub.f32 1.0, %v1520
  %v1529 = vmul.f32 %v1528, %v1527
  %v1530 = vrot.slane %v1355, 6
  %v1532 = vmul.f32 %v1520, %v1530
  %v1533 = vadd.f32 %v1529, %v1532
  %1534 = vst [vmem:[#allocation2 + $0x8] sm:$0x30] %v1533
  %v1536 = vrot.slane %v1533, 4
  %1538 = vmatprep.subr.mxu0 %v263
  %1539 = vmatpush1.msra.mxu0 %v262
  %1540 = vmatprep.subr.mxu0 %v266
  %1541 = vmatpush1.msra.mxu0 %v265
  %1542 = vmatprep.subr.mxu0 %v269
  %1543 = vmatpush1.msra.mxu0 %v268
  %1544 = vmatprep.subr.mxu0 %v272
  %1545 = vmatpush1.msra.mxu0 %v271
  %1546 = vmatprep.subr.mxu0 %v275
  %1547 = vmatpush1.msra.mxu0 %v274
  %1548 = vmatprep.subr.mxu0 %v278
  %1549 = vmatpush1.msra.mxu0 %v277
  %1550 = vmatprep.subr.mxu0 %v281
  %1551 = vmatpush1.msra.mxu0 %v280
  %1552 = vmatprep.subr.mxu0 %v284
  %1553 = vmatpush1.msra.mxu0 %v283
  %1554 = vmatprep.subr.mxu0 %v287
  %1555 = vmatpush1.msra.mxu0 %v286
  %1556 = vmatprep.subr.mxu0 %v290
  %1557 = vmatpush1.msra.mxu0 %v289
  %1558 = vmatprep.subr.mxu0 %v293
  %1559 = vmatpush1.msra.mxu0 %v292
  %1560 = vmatprep.subr.mxu0 %v296
  %1561 = vmatpush1.msra.mxu0 %v295
  %1562 = vmatprep.subr.mxu0 %v299
  %1563 = vmatpush1.msra.mxu0 %v298
  %1564 = vmatprep.subr.mxu0 %v302
  %1565 = vmatpush1.msra.mxu0 %v301
  %1566 = vmatprep.subr.mxu0 %v305
  %1567 = vmatpush1.msra.mxu0 %v304
  %1568 = vmatprep.subr.mxu0 %v308
  %1569 = vmatpush1.msra.mxu0 %v307
  %1570 = vmatprep.subr.mxu0 0.0
  %1571 = vmatpush1.msra.mxu0 0.0
  %1572 = vmatprep.subr.mxu0 0.0
  %1573 = vmatpush1.msra.mxu0 0.0
  %1574 = vmatprep.subr.mxu0 0.0
  %1575 = vmatpush1.msra.mxu0 0.0
  %1576 = vmatprep.subr.mxu0 0.0
  %1577 = vmatpush1.msra.mxu0 0.0
  %1578 = vmatprep.subr.mxu0 0.0
  %1579 = vmatpush1.msra.mxu0 0.0
  %1580 = vmatprep.subr.mxu0 0.0
  %1581 = vmatpush1.msra.mxu0 0.0
  %1582 = vmatprep.subr.mxu0 0.0
  %1583 = vmatpush1.msra.mxu0 0.0
  %1584 = vmatprep.subr.mxu0 0.0
  %1585 = vmatpush1.msra.mxu0 0.0
  %1586 = vmatprep.subr.mxu0 0.0
  %1587 = vmatpush1.msra.mxu0 0.0
  %1588 = vmatprep.subr.mxu0 0.0
  %1589 = vmatpush1.msra.mxu0 0.0
  %1590 = vmatprep.subr.mxu0 0.0
  %1591 = vmatpush1.msra.mxu0 0.0
  %1592 = vmatprep.subr.mxu0 0.0
  %1593 = vmatpush1.msra.mxu0 0.0
  %1594 = vmatprep.subr.mxu0 0.0
  %1595 = vmatpush1.msra.mxu0 0.0
  %1596 = vmatprep.subr.mxu0 0.0
  %1597 = vmatpush1.msra.mxu0 0.0
  %1598 = vmatprep.subr.mxu0 0.0
  %1599 = vmatpush1.msra.mxu0 0.0
  %1600 = vmatprep.subr.mxu0 0.0
  %1601 = vmatpush1.msra.mxu0 0.0
  %1602 = vmatprep.mubr.f32.mxu0 0.0
  %1603 = vmatmul.mubr.f32.gmra.mrb[0].mxu0 %v1536
  %v1604 = vpop.f32.mrb[0].mxu0
  %v1605 = vadd.f32 0.0, %v1604
  %v1606 = vpop.f32.mrb[0].mxu0
  %v1607 = vadd.f32 0.0, %v1606
  %1608 = vdwg.mxu0
  %1609 = vmatprep.subr.mxu0 0.0
  %1610 = vmatpush1.msra.mxu0 %v264
  %1611 = vmatprep.subr.mxu0 0.0
  %1612 = vmatpush1.msra.mxu0 %v267
  %1613 = vmatprep.subr.mxu0 0.0
  %1614 = vmatpush1.msra.mxu0 %v270
  %1615 = vmatprep.subr.mxu0 0.0
  %1616 = vmatpush1.msra.mxu0 %v273
  %1617 = vmatprep.subr.mxu0 0.0
  %1618 = vmatpush1.msra.mxu0 %v276
  %1619 = vmatprep.subr.mxu0 0.0
  %1620 = vmatpush1.msra.mxu0 %v279
  %1621 = vmatprep.subr.mxu0 0.0
  %1622 = vmatpush1.msra.mxu0 %v282
  %1623 = vmatprep.subr.mxu0 0.0
  %1624 = vmatpush1.msra.mxu0 %v285
  %1625 = vmatprep.subr.mxu0 0.0
  %1626 = vmatpush1.msra.mxu0 %v288
  %1627 = vmatprep.subr.mxu0 0.0
  %1628 = vmatpush1.msra.mxu0 %v291
  %1629 = vmatprep.subr.mxu0 0.0
  %1630 = vmatpush1.msra.mxu0 %v294
  %1631 = vmatprep.subr.mxu0 0.0
  %1632 = vmatpush1.msra.mxu0 %v297
  %1633 = vmatprep.subr.mxu0 0.0
  %1634 = vmatpush1.msra.mxu0 %v300
  %1635 = vmatprep.subr.mxu0 0.0
  %1636 = vmatpush1.msra.mxu0 %v303
  %1637 = vmatprep.subr.mxu0 0.0
  %1638 = vmatpush1.msra.mxu0 %v306
  %1639 = vmatprep.subr.mxu0 0.0
  %1640 = vmatpush1.msra.mxu0 %v309
  %1641 = vmatprep.subr.mxu0 0.0
  %1642 = vmatpush1.msra.mxu0 0.0
  %1643 = vmatprep.subr.mxu0 0.0
  %1644 = vmatpush1.msra.mxu0 0.0
  %1645 = vmatprep.subr.mxu0 0.0
  %1646 = vmatpush1.msra.mxu0 0.0
  %1647 = vmatprep.subr.mxu0 0.0
  %1648 = vmatpush1.msra.mxu0 0.0
  %1649 = vmatprep.subr.mxu0 0.0
  %1650 = vmatpush1.msra.mxu0 0.0
  %1651 = vmatprep.subr.mxu0 0.0
  %1652 = vmatpush1.msra.mxu0 0.0
  %1653 = vmatprep.subr.mxu0 0.0
  %1654 = vmatpush1.msra.mxu0 0.0
  %1655 = vmatprep.subr.mxu0 0.0
  %1656 = vmatpush1.msra.mxu0 0.0
  %1657 = vmatprep.subr.mxu0 0.0
  %1658 = vmatpush1.msra.mxu0 0.0
  %1659 = vmatprep.subr.mxu0 0.0
  %1660 = vmatpush1.msra.mxu0 0.0
  %1661 = vmatprep.subr.mxu0 0.0
  %1662 = vmatpush1.msra.mxu0 0.0
  %1663 = vmatprep.subr.mxu0 0.0
  %1664 = vmatpush1.msra.mxu0 0.0
  %1665 = vmatprep.subr.mxu0 0.0
  %1666 = vmatpush1.msra.mxu0 0.0
  %1667 = vmatprep.subr.mxu0 0.0
  %1668 = vmatpush1.msra.mxu0 0.0
  %1669 = vmatprep.subr.mxu0 0.0
  %1670 = vmatpush1.msra.mxu0 0.0
  %1671 = vmatprep.subr.mxu0 0.0
  %1672 = vmatpush1.msra.mxu0 0.0
  %1673 = vmatprep.mubr.f32.mxu0 0.0
  %1674 = vmatmul.mubr.f32.gmra.mrb[0].mxu0 %v1536
  %v1675 = vpop.f32.mrb[0].mxu0
  %v1676 = vadd.f32 0.0, %v1675
  %v1677 = vpop.f32.mrb[0].mxu0
  %1678 = vdwg.mxu0
  %v1680 = vrot.slane %v1605, 2
  %v1682 = vadd.f32 %v183, %v1680
  %v1683 = vsub.f32 0.0, %v1682
  %v1684 = vmul.f32 %v1683, 1.442695
  %v1685 = vpow.pop %v1684
  %v1686 = vadd.f32 %v1685, 1.0
  %v1687 = vrcp.pop %v1686
  %v1688 = vmul.f32 1.0, %v1687
  %v1690 = vrot.slane %v1607, 2
  %v1692 = vadd.f32 %v185, %v1690
  %v1693 = vsub.f32 0.0, %v1692
  %v1694 = vmul.f32 %v1693, 1.442695
  %v1695 = vpow.pop %v1694
  %v1696 = vadd.f32 %v1695, 1.0
  %v1697 = vrcp.pop %v1696
  %v1698 = vmul.f32 1.0, %v1697
  %v1699 = vadd.f32 %v1676, %v471
  %v1701 = vrot.slane %v1699, 2
  %v1703 = vmul.f32 %v1688, %v1701
  %v1704 = vadd.f32 %v259, %v1703
  %v1705 = vtanh.pop %v1704
  %v1706 = vsub.f32 1.0, %v1698
  %v1707 = vmul.f32 %v1706, %v1705
  %v1708 = vrot.slane %v1533, 6
  %v1710 = vmul.f32 %v1698, %v1708
  %v1711 = vadd.f32 %v1707, %v1710
  %1712 = vst [vmem:[#allocation2 + $0x8] sm:$0xc0] %v1711
  %1713 = vst [vmem:[%s13 - $0x6] sm:$0xc0] %v1711
  %v1714 = vld [vmem:[#allocation2] sm:$0xff]
  %v1715 = vld [vmem:[#allocation2 + $0x8] sm:$0xff]
  %v1716 = vld [vmem:[%s6] sm:$0xff]
  %v1717 = vld [vmem:[%s6 + $0x8] sm:$0xff]
  %v1718 = vld [vmem:[%s6 + $0x10] sm:$0xff]
  %v1719 = vld [vmem:[%s6 + $0x18] sm:$0xff]
  %v1720 = vld [vmem:[%s6 + $0x20] sm:$0xff]
  %v1721 = vld [vmem:[%s6 + $0x28] sm:$0xff]
  %v1722 = vld [vmem:[%s6 + $0x30] sm:$0xff]
  %v1723 = vld [vmem:[%s6 + $0x38] sm:$0xff]
  %v1724 = vld [vmem:[%s6 + $0x40] sm:$0xff]
  %v1725 = vld [vmem:[%s6 + $0x48] sm:$0xff]
  %v1726 = vld [vmem:[%s6 + $0x50] sm:$0xff]
  %v1727 = vld [vmem:[%s6 + $0x58] sm:$0xff]
  %v1728 = vld [vmem:[%s6 + $0x60] sm:$0xff]
  %v1729 = vld [vmem:[%s6 + $0x68] sm:$0xff]
  %v1730 = vld [vmem:[%s6 + $0x70] sm:$0xff]
  %v1731 = vld [vmem:[%s6 + $0x78] sm:$0xff]
  %v1732 = vld [vmem:[%s6 + $0x80] sm:$0xff]
  %v1733 = vld [vmem:[%s6 + $0x88] sm:$0xff]
  %v1734 = vld [vmem:[%s6 + $0x90] sm:$0xff]
  %v1735 = vld [vmem:[%s6 + $0x98] sm:$0xff]
  %v1736 = vld [vmem:[%s6 + $0xa0] sm:$0xff]
  %v1737 = vld [vmem:[%s6 + $0xa8] sm:$0xff]
  %v1738 = vld [vmem:[%s6 + $0xb0] sm:$0xff]
  %v1739 = vld [vmem:[%s6 + $0xb8] sm:$0xff]
  %v1740 = vld [vmem:[%s6 + $0xc0] sm:$0xff]
  %v1741 = vld [vmem:[%s6 + $0xc8] sm:$0xff]
  %v1742 = vld [vmem:[%s6 + $0xd0] sm:$0xff]
  %v1743 = vld [vmem:[%s6 + $0xd8] sm:$0xff]
  %v1744 = vld [vmem:[%s6 + $0xe0] sm:$0xff]
  %v1745 = vld [vmem:[%s6 + $0xe8] sm:$0xff]
  %v1746 = vld [vmem:[%s6 + $0xf0] sm:$0xff]
  %v1747 = vld [vmem:[%s6 + $0xf8] sm:$0xff]
  %v1748 = vld [vmem:[%s6 + $0x100] sm:$0xff]
  %v1749 = vld [vmem:[%s6 + $0x108] sm:$0xff]
  %v1750 = vld [vmem:[%s6 + $0x110] sm:$0xff]
  %v1751 = vld [vmem:[%s6 + $0x118] sm:$0xff]
  %v1752 = vld [vmem:[%s6 + $0x120] sm:$0xff]
  %v1753 = vld [vmem:[%s6 + $0x128] sm:$0xff]
  %v1754 = vld [vmem:[%s6 + $0x130] sm:$0xff]
  %v1755 = vld [vmem:[%s6 + $0x138] sm:$0xff]
  %v1756 = vld [vmem:[%s6 + $0x140] sm:$0xff]
  %v1757 = vld [vmem:[%s6 + $0x148] sm:$0xff]
  %v1758 = vld [vmem:[%s6 + $0x150] sm:$0xff]
  %v1759 = vld [vmem:[%s6 + $0x158] sm:$0xff]
  %v1760 = vld [vmem:[%s6 + $0x160] sm:$0xff]
  %v1761 = vld [vmem:[%s6 + $0x168] sm:$0xff]
  %v1762 = vld [vmem:[%s6 + $0x170] sm:$0xff]
  %v1763 = vld [vmem:[%s6 + $0x178] sm:$0xff]
  %v1764 = vld [vmem:[%s8] sm:$0x7]
  %v1766 = vlaneseq
  %v1767 = vshrl.u32 %v1766, 7
  %v1768 = vsub.s32 0, %v1767
  %v1769 = vrot.slane %v1764, %v1768
  %v1770 = vlaneseq
  %v1771 = vshrl.u32 %v1770, 7
  %v1772 = vsub.s32 1, %v1771
  %v1773 = vrot.slane %v1764, %v1772
  %v1774 = vlaneseq
  %v1775 = vshrl.u32 %v1774, 7
  %v1776 = vsub.s32 2, %v1775
  %v1777 = vrot.slane %v1764, %v1776
  %1781 = vmatprep.subr.mxu0 %v1717
  %1782 = vmatpush1.msra.mxu0 %v1716
  %1783 = vmatprep.subr.mxu0 %v1720
  %1784 = vmatpush1.msra.mxu0 %v1719
  %1785 = vmatprep.subr.mxu0 %v1723
  %1786 = vmatpush1.msra.mxu0 %v1722
  %1787 = vmatprep.subr.mxu0 %v1726
  %1788 = vmatpush1.msra.mxu0 %v1725
  %1789 = vmatprep.subr.mxu0 %v1729
  %1790 = vmatpush1.msra.mxu0 %v1728
  %1791 = vmatprep.subr.mxu0 %v1732
  %1792 = vmatpush1.msra.mxu0 %v1731
  %1793 = vmatprep.subr.mxu0 %v1735
  %1794 = vmatpush1.msra.mxu0 %v1734
  %1795 = vmatprep.subr.mxu0 %v1738
  %1796 = vmatpush1.msra.mxu0 %v1737
  %1797 = vmatprep.subr.mxu0 %v1741
  %1798 = vmatpush1.msra.mxu0 %v1740
  %1799 = vmatprep.subr.mxu0 %v1744
  %1800 = vmatpush1.msra.mxu0 %v1743
  %1801 = vmatprep.subr.mxu0 %v1747
  %1802 = vmatpush1.msra.mxu0 %v1746
  %1803 = vmatprep.subr.mxu0 %v1750
  %1804 = vmatpush1.msra.mxu0 %v1749
  %1805 = vmatprep.subr.mxu0 %v1753
  %1806 = vmatpush1.msra.mxu0 %v1752
  %1807 = vmatprep.subr.mxu0 %v1756
  %1808 = vmatpush1.msra.mxu0 %v1755
  %1809 = vmatprep.subr.mxu0 %v1759
  %1810 = vmatpush1.msra.mxu0 %v1758
  %1811 = vmatprep.subr.mxu0 %v1762
  %1812 = vmatpush1.msra.mxu0 %v1761
  %1813 = vmatprep.subr.mxu0 0.0
  %1814 = vmatpush1.msra.mxu0 0.0
  %1815 = vmatprep.subr.mxu0 0.0
  %1816 = vmatpush1.msra.mxu0 0.0
  %1817 = vmatprep.subr.mxu0 0.0
  %1818 = vmatpush1.msra.mxu0 0.0
  %1819 = vmatprep.subr.mxu0 0.0
  %1820 = vmatpush1.msra.mxu0 0.0
  %1821 = vmatprep.subr.mxu0 0.0
  %1822 = vmatpush1.msra.mxu0 0.0
  %1823 = vmatprep.subr.mxu0 0.0
  %1824 = vmatpush1.msra.mxu0 0.0
  %1825 = vmatprep.subr.mxu0 0.0
  %1826 = vmatpush1.msra.mxu0 0.0
  %1827 = vmatprep.subr.mxu0 0.0
  %1828 = vmatpush1.msra.mxu0 0.0
  %1829 = vmatprep.subr.mxu0 0.0
  %1830 = vmatpush1.msra.mxu0 0.0
  %1831 = vmatprep.subr.mxu0 0.0
  %1832 = vmatpush1.msra.mxu0 0.0
  %1833 = vmatprep.subr.mxu0 0.0
  %1834 = vmatpush1.msra.mxu0 0.0
  %1835 = vmatprep.subr.mxu0 0.0
  %1836 = vmatpush1.msra.mxu0 0.0
  %1837 = vmatprep.subr.mxu0 0.0
  %1838 = vmatpush1.msra.mxu0 0.0
  %1839 = vmatprep.subr.mxu0 0.0
  %1840 = vmatpush1.msra.mxu0 0.0
  %1841 = vmatprep.subr.mxu0 0.0
  %1842 = vmatpush1.msra.mxu0 0.0
  %1843 = vmatprep.subr.mxu0 0.0
  %1844 = vmatpush1.msra.mxu0 0.0
  %1845 = vmatprep.mubr.f32.mxu0 0.0
  %1846 = vmatmul.mubr.f32.gmra.mrb[0].mxu0 %v1714
  %v1847 = vpop.f32.mrb[0].mxu0
  %v1848 = vadd.f32 %v1769, %v1847
  %v1849 = vpop.f32.mrb[0].mxu0
  %v1850 = vadd.f32 %v1773, %v1849
  %1851 = vmatprep.mubr.f32.mxu0 0.0
  %1852 = vmatmul.mubr.f32.gmra.mrb[0].mxu0 %v1715
  %v1853 = vpop.f32.mrb[0].mxu0
  %v1854 = vadd.f32 %v1769, %v1853
  %v1855 = vpop.f32.mrb[0].mxu0
  %v1856 = vadd.f32 %v1773, %v1855
  %1857 = vdwg.mxu0
  %1858 = vmatprep.subr.mxu0 0.0
  %1859 = vmatpush1.msra.mxu0 %v1718
  %1860 = vmatprep.subr.mxu0 0.0
  %1861 = vmatpush1.msra.mxu0 %v1721
  %1862 = vmatprep.subr.mxu0 0.0
  %1863 = vmatpush1.msra.mxu0 %v1724
  %1864 = vmatprep.subr.mxu0 0.0
  %1865 = vmatpush1.msra.mxu0 %v1727
  %1866 = vmatprep.subr.mxu0 0.0
  %1867 = vmatpush1.msra.mxu0 %v1730
  %1868 = vmatprep.subr.mxu0 0.0
  %1869 = vmatpush1.msra.mxu0 %v1733
  %1870 = vmatprep.subr.mxu0 0.0
  %1871 = vmatpush1.msra.mxu0 %v1736
  %1872 = vmatprep.subr.mxu0 0.0
  %1873 = vmatpush1.msra.mxu0 %v1739
  %1874 = vmatprep.subr.mxu0 0.0
  %1875 = vmatpush1.msra.mxu0 %v1742
  %1876 = vmatprep.subr.mxu0 0.0
  %1877 = vmatpush1.msra.mxu0 %v1745
  %1878 = vmatprep.subr.mxu0 0.0
  %1879 = vmatpush1.msra.mxu0 %v1748
  %1880 = vmatprep.subr.mxu0 0.0
  %1881 = vmatpush1.msra.mxu0 %v1751
  %1882 = vmatprep.subr.mxu0 0.0
  %1883 = vmatpush1.msra.mxu0 %v1754
  %1884 = vmatprep.subr.mxu0 0.0
  %1885 = vmatpush1.msra.mxu0 %v1757
  %1886 = vmatprep.subr.mxu0 0.0
  %1887 = vmatpush1.msra.mxu0 %v1760
  %1888 = vmatprep.subr.mxu0 0.0
  %1889 = vmatpush1.msra.mxu0 %v1763
  %1890 = vmatprep.subr.mxu0 0.0
  %1891 = vmatpush1.msra.mxu0 0.0
  %1892 = vmatprep.subr.mxu0 0.0
  %1893 = vmatpush1.msra.mxu0 0.0
  %1894 = vmatprep.subr.mxu0 0.0
  %1895 = vmatpush1.msra.mxu0 0.0
  %1896 = vmatprep.subr.mxu0 0.0
  %1897 = vmatpush1.msra.mxu0 0.0
  %1898 = vmatprep.subr.mxu0 0.0
  %1899 = vmatpush1.msra.mxu0 0.0
  %1900 = vmatprep.subr.mxu0 0.0
  %1901 = vmatpush1.msra.mxu0 0.0
  %1902 = vmatprep.subr.mxu0 0.0
  %1903 = vmatpush1.msra.mxu0 0.0
  %1904 = vmatprep.subr.mxu0 0.0
  %1905 = vmatpush1.msra.mxu0 0.0
  %1906 = vmatprep.subr.mxu0 0.0
  %1907 = vmatpush1.msra.mxu0 0.0
  %1908 = vmatprep.subr.mxu0 0.0
  %1909 = vmatpush1.msra.mxu0 0.0
  %1910 = vmatprep.subr.mxu0 0.0
  %1911 = vmatpush1.msra.mxu0 0.0
  %1912 = vmatprep.subr.mxu0 0.0
  %1913 = vmatpush1.msra.mxu0 0.0
  %1914 = vmatprep.subr.mxu0 0.0
  %1915 = vmatpush1.msra.mxu0 0.0
  %1916 = vmatprep.subr.mxu0 0.0
  %1917 = vmatpush1.msra.mxu0 0.0
  %1918 = vmatprep.subr.mxu0 0.0
  %1919 = vmatpush1.msra.mxu0 0.0
  %1920 = vmatprep.subr.mxu0 0.0
  %1921 = vmatpush1.msra.mxu0 0.0
  %1922 = vmatprep.mubr.f32.mxu0 0.0
  %1923 = vmatmul.mubr.f32.gmra.mrb[0].mxu0 %v1714
  %v1924 = vpop.f32.mrb[0].mxu0
  %v1925 = vadd.f32 %v1777, %v1924
  %v1926 = vpop.f32.mrb[0].mxu0
  %1927 = vmatprep.mubr.f32.mxu0 0.0
  %1928 = vmatmul.mubr.f32.gmra.mrb[0].mxu0 %v1715
  %v1929 = vpop.f32.mrb[0].mxu0
  %v1930 = vadd.f32 %v1777, %v1929
  %v1931 = vpop.f32.mrb[0].mxu0
  %1932 = vdwg.mxu0
  %v1933 = vld [vmem:[%s7] sm:$0xff]
  %v1934 = vld [vmem:[%s7 + $0x8] sm:$0xff]
  %v1935 = vld [vmem:[%s7 + $0x10] sm:$0xff]
  %v1936 = vld [vmem:[%s7 + $0x18] sm:$0xff]
  %v1937 = vld [vmem:[%s7 + $0x20] sm:$0xff]
  %v1938 = vld [vmem:[%s7 + $0x28] sm:$0xff]
  %v1939 = vld [vmem:[%s7 + $0x30] sm:$0xff]
  %v1940 = vld [vmem:[%s7 + $0x38] sm:$0xff]
  %v1941 = vld [vmem:[%s7 + $0x40] sm:$0xff]
  %v1942 = vld [vmem:[%s7 + $0x48] sm:$0xff]
  %v1943 = vld [vmem:[%s7 + $0x50] sm:$0xff]
  %v1944 = vld [vmem:[%s7 + $0x58] sm:$0xff]
  %v1945 = vld [vmem:[%s7 + $0x60] sm:$0xff]
  %v1946 = vld [vmem:[%s7 + $0x68] sm:$0xff]
  %v1947 = vld [vmem:[%s7 + $0x70] sm:$0xff]
  %v1948 = vld [vmem:[%s7 + $0x78] sm:$0xff]
  %v1949 = vld [vmem:[%s7 + $0x80] sm:$0xff]
  %v1950 = vld [vmem:[%s7 + $0x88] sm:$0xff]
  %v1951 = vld [vmem:[%s7 + $0x90] sm:$0xff]
  %v1952 = vld [vmem:[%s7 + $0x98] sm:$0xff]
  %v1953 = vld [vmem:[%s7 + $0xa0] sm:$0xff]
  %v1954 = vld [vmem:[%s7 + $0xa8] sm:$0xff]
  %v1955 = vld [vmem:[%s7 + $0xb0] sm:$0xff]
  %v1956 = vld [vmem:[%s7 + $0xb8] sm:$0xff]
  %v1957 = vld [vmem:[%s7 + $0xc0] sm:$0xff]
  %v1958 = vld [vmem:[%s7 + $0xc8] sm:$0xff]
  %v1959 = vld [vmem:[%s7 + $0xd0] sm:$0xff]
  %v1960 = vld [vmem:[%s7 + $0xd8] sm:$0xff]
  %v1961 = vld [vmem:[%s7 + $0xe0] sm:$0xff]
  %v1962 = vld [vmem:[%s7 + $0xe8] sm:$0xff]
  %v1963 = vld [vmem:[%s7 + $0xf0] sm:$0xff]
  %v1964 = vld [vmem:[%s7 + $0xf8] sm:$0xff]
  %v1965 = vld [vmem:[%s7 + $0x100] sm:$0xff]
  %v1966 = vld [vmem:[%s7 + $0x108] sm:$0xff]
  %v1967 = vld [vmem:[%s7 + $0x110] sm:$0xff]
  %v1968 = vld [vmem:[%s7 + $0x118] sm:$0xff]
  %v1969 = vld [vmem:[%s7 + $0x120] sm:$0xff]
  %v1970 = vld [vmem:[%s7 + $0x128] sm:$0xff]
  %v1971 = vld [vmem:[%s7 + $0x130] sm:$0xff]
  %v1972 = vld [vmem:[%s7 + $0x138] sm:$0xff]
  %v1973 = vld [vmem:[%s7 + $0x140] sm:$0xff]
  %v1974 = vld [vmem:[%s7 + $0x148] sm:$0xff]
  %v1975 = vld [vmem:[%s7 + $0x150] sm:$0xff]
  %v1976 = vld [vmem:[%s7 + $0x158] sm:$0xff]
  %v1977 = vld [vmem:[%s7 + $0x160] sm:$0xff]
  %v1978 = vld [vmem:[%s7 + $0x168] sm:$0xff]
  %v1979 = vld [vmem:[%s7 + $0x170] sm:$0xff]
  %v1980 = vld [vmem:[%s7 + $0x178] sm:$0xff]
  %v1981 = vld [vmem:[%s9] sm:$0x1]
  %s1982 = scalar_lea.vmem %s1, 2
  %v1983 = vld [vmem:[%s1982] sm:$0x3]
  %1984 = vmatprep.subr.mxu0 %v1934
  %1985 = vmatpush1.msra.mxu0 %v1933
  %1986 = vmatprep.subr.mxu0 %v1937
  %1987 = vmatpush1.msra.mxu0 %v1936
  %1988 = vmatprep.subr.mxu0 %v1940
  %1989 = vmatpush1.msra.mxu0 %v1939
  %1990 = vmatprep.subr.mxu0 %v1943
  %1991 = vmatpush1.msra.mxu0 %v1942
  %1992 = vmatprep.subr.mxu0 %v1946
  %1993 = vmatpush1.msra.mxu0 %v1945
  %1994 = vmatprep.subr.mxu0 %v1949
  %1995 = vmatpush1.msra.mxu0 %v1948
  %1996 = vmatprep.subr.mxu0 %v1952
  %1997 = vmatpush1.msra.mxu0 %v1951
  %1998 = vmatprep.subr.mxu0 %v1955
  %1999 = vmatpush1.msra.mxu0 %v1954
  %2000 = vmatprep.subr.mxu0 %v1958
  %2001 = vmatpush1.msra.mxu0 %v1957
  %2002 = vmatprep.subr.mxu0 %v1961
  %2003 = vmatpush1.msra.mxu0 %v1960
  %2004 = vmatprep.subr.mxu0 %v1964
  %2005 = vmatpush1.msra.mxu0 %v1963
  %2006 = vmatprep.subr.mxu0 %v1967
  %2007 = vmatpush1.msra.mxu0 %v1966
  %2008 = vmatprep.subr.mxu0 %v1970
  %2009 = vmatpush1.msra.mxu0 %v1969
  %2010 = vmatprep.subr.mxu0 %v1973
  %2011 = vmatpush1.msra.mxu0 %v1972
  %2012 = vmatprep.subr.mxu0 %v1976
  %2013 = vmatpush1.msra.mxu0 %v1975
  %2014 = vmatprep.subr.mxu0 %v1979
  %2015 = vmatpush1.msra.mxu0 %v1978
  %2016 = vmatprep.subr.mxu0 0.0
  %2017 = vmatpush1.msra.mxu0 0.0
  %2018 = vmatprep.subr.mxu0 0.0
  %2019 = vmatpush1.msra.mxu0 0.0
  %2020 = vmatprep.subr.mxu0 0.0
  %2021 = vmatpush1.msra.mxu0 0.0
  %2022 = vmatprep.subr.mxu0 0.0
  %2023 = vmatpush1.msra.mxu0 0.0
  %2024 = vmatprep.subr.mxu0 0.0
  %2025 = vmatpush1.msra.mxu0 0.0
  %2026 = vmatprep.subr.mxu0 0.0
  %2027 = vmatpush1.msra.mxu0 0.0
  %2028 = vmatprep.subr.mxu0 0.0
  %2029 = vmatpush1.msra.mxu0 0.0
  %2030 = vmatprep.subr.mxu0 0.0
  %2031 = vmatpush1.msra.mxu0 0.0
  %2032 = vmatprep.subr.mxu0 0.0
  %2033 = vmatpush1.msra.mxu0 0.0
  %2034 = vmatprep.subr.mxu0 0.0
  %2035 = vmatpush1.msra.mxu0 0.0
  %2036 = vmatprep.subr.mxu0 0.0
  %2037 = vmatpush1.msra.mxu0 0.0
  %2038 = vmatprep.subr.mxu0 0.0
  %2039 = vmatpush1.msra.mxu0 0.0
  %2040 = vmatprep.subr.mxu0 0.0
  %2041 = vmatpush1.msra.mxu0 0.0
  %2042 = vmatprep.subr.mxu0 0.0
  %2043 = vmatpush1.msra.mxu0 0.0
  %2044 = vmatprep.subr.mxu0 0.0
  %2045 = vmatpush1.msra.mxu0 0.0
  %2046 = vmatprep.subr.mxu0 0.0
  %2047 = vmatpush1.msra.mxu0 0.0
  %2048 = vmatprep.mubr.f32.mxu0 0.0
  %2049 = vmatmul.mubr.f32.gmra.mrb[0].mxu0 %v1983
  %v2050 = vpop.f32.mrb[0].mxu0
  %v2051 = vadd.f32 0.0, %v2050
  %v2052 = vpop.f32.mrb[0].mxu0
  %v2053 = vadd.f32 0.0, %v2052
  %2054 = vdwg.mxu0
  %2055 = vmatprep.subr.mxu0 0.0
  %2056 = vmatpush1.msra.mxu0 %v1935
  %2057 = vmatprep.subr.mxu0 0.0
  %2058 = vmatpush1.msra.mxu0 %v1938
  %2059 = vmatprep.subr.mxu0 0.0
  %2060 = vmatpush1.msra.mxu0 %v1941
  %2061 = vmatprep.subr.mxu0 0.0
  %2062 = vmatpush1.msra.mxu0 %v1944
  %2063 = vmatprep.subr.mxu0 0.0
  %2064 = vmatpush1.msra.mxu0 %v1947
  %2065 = vmatprep.subr.mxu0 0.0
  %2066 = vmatpush1.msra.mxu0 %v1950
  %2067 = vmatprep.subr.mxu0 0.0
  %2068 = vmatpush1.msra.mxu0 %v1953
  %2069 = vmatprep.subr.mxu0 0.0
  %2070 = vmatpush1.msra.mxu0 %v1956
  %2071 = vmatprep.subr.mxu0 0.0
  %2072 = vmatpush1.msra.mxu0 %v1959
  %2073 = vmatprep.subr.mxu0 0.0
  %2074 = vmatpush1.msra.mxu0 %v1962
  %2075 = vmatprep.subr.mxu0 0.0
  %2076 = vmatpush1.msra.mxu0 %v1965
  %2077 = vmatprep.subr.mxu0 0.0
  %2078 = vmatpush1.msra.mxu0 %v1968
  %2079 = vmatprep.subr.mxu0 0.0
  %2080 = vmatpush1.msra.mxu0 %v1971
  %2081 = vmatprep.subr.mxu0 0.0
  %2082 = vmatpush1.msra.mxu0 %v1974
  %2083 = vmatprep.subr.mxu0 0.0
  %2084 = vmatpush1.msra.mxu0 %v1977
  %2085 = vmatprep.subr.mxu0 0.0
  %2086 = vmatpush1.msra.mxu0 %v1980
  %2087 = vmatprep.subr.mxu0 0.0
  %2088 = vmatpush1.msra.mxu0 0.0
  %2089 = vmatprep.subr.mxu0 0.0
  %2090 = vmatpush1.msra.mxu0 0.0
  %2091 = vmatprep.subr.mxu0 0.0
  %2092 = vmatpush1.msra.mxu0 0.0
  %2093 = vmatprep.subr.mxu0 0.0
  %2094 = vmatpush1.msra.mxu0 0.0
  %2095 = vmatprep.subr.mxu0 0.0
  %2096 = vmatpush1.msra.mxu0 0.0
  %2097 = vmatprep.subr.mxu0 0.0
  %2098 = vmatpush1.msra.mxu0 0.0
  %2099 = vmatprep.subr.mxu0 0.0
  %2100 = vmatpush1.msra.mxu0 0.0
  %2101 = vmatprep.subr.mxu0 0.0
  %2102 = vmatpush1.msra.mxu0 0.0
  %2103 = vmatprep.subr.mxu0 0.0
  %2104 = vmatpush1.msra.mxu0 0.0
  %2105 = vmatprep.subr.mxu0 0.0
  %2106 = vmatpush1.msra.mxu0 0.0
  %2107 = vmatprep.subr.mxu0 0.0
  %2108 = vmatpush1.msra.mxu0 0.0
  %2109 = vmatprep.subr.mxu0 0.0
  %2110 = vmatpush1.msra.mxu0 0.0
  %2111 = vmatprep.subr.mxu0 0.0
  %2112 = vmatpush1.msra.mxu0 0.0
  %2113 = vmatprep.subr.mxu0 0.0
  %2114 = vmatpush1.msra.mxu0 0.0
  %2115 = vmatprep.subr.mxu0 0.0
  %2116 = vmatpush1.msra.mxu0 0.0
  %2117 = vmatprep.subr.mxu0 0.0
  %2118 = vmatpush1.msra.mxu0 0.0
  %2119 = vmatprep.mubr.f32.mxu0 0.0
  %2120 = vmatmul.mubr.f32.gmra.mrb[0].mxu0 %v1983
  %v2121 = vpop.f32.mrb[0].mxu0
  %v2122 = vadd.f32 0.0, %v2121
  %v2123 = vpop.f32.mrb[0].mxu0
  %2124 = vdwg.mxu0
  %v2125 = vadd.f32 %v1848, %v2051
  %v2126 = vsub.f32 0.0, %v2125
  %v2127 = vmul.f32 %v2126, 1.442695
  %v2128 = vpow.pop %v2127
  %v2129 = vadd.f32 %v2128, 1.0
  %v2130 = vrcp.pop %v2129
  %v2131 = vmul.f32 1.0, %v2130
  %v2132 = vadd.f32 %v1850, %v2053
  %v2133 = vsub.f32 0.0, %v2132
  %v2134 = vmul.f32 %v2133, 1.442695
  %v2135 = vpow.pop %v2134
  %v2136 = vadd.f32 %v2135, 1.0
  %v2137 = vrcp.pop %v2136
  %v2138 = vmul.f32 1.0, %v2137
  %v2140 = vlaneseq
  %v2141 = vshrl.u32 %v2140, 7
  %v2142 = vsub.s32 0, %v2141
  %v2143 = vrot.slane %v1981, %v2142
  %v2145 = vadd.f32 %v2122, %v2143
  %v2146 = vmul.f32 %v2131, %v2145
  %v2147 = vadd.f32 %v1925, %v2146
  %v2148 = vtanh.pop %v2147
  %v2149 = vsub.f32 1.0, %v2138
  %v2150 = vmul.f32 %v2149, %v2148
  %v2151 = vmul.f32 %v2138, %v1983
  %v2152 = vadd.f32 %v2150, %v2151
  %2153 = vst [vmem:[#allocation2] sm:$0x3] %v2152
  %2154 = vmatprep.subr.mxu0 %v1934
  %2155 = vmatpush1.msra.mxu0 %v1933
  %2156 = vmatprep.subr.mxu0 %v1937
  %2157 = vmatpush1.msra.mxu0 %v1936
  %2158 = vmatprep.subr.mxu0 %v1940
  %2159 = vmatpush1.msra.mxu0 %v1939
  %2160 = vmatprep.subr.mxu0 %v1943
  %2161 = vmatpush1.msra.mxu0 %v1942
  %2162 = vmatprep.subr.mxu0 %v1946
  %2163 = vmatpush1.msra.mxu0 %v1945
  %2164 = vmatprep.subr.mxu0 %v1949
  %2165 = vmatpush1.msra.mxu0 %v1948
  %2166 = vmatprep.subr.mxu0 %v1952
  %2167 = vmatpush1.msra.mxu0 %v1951
  %2168 = vmatprep.subr.mxu0 %v1955
  %2169 = vmatpush1.msra.mxu0 %v1954
  %2170 = vmatprep.subr.mxu0 %v1958
  %2171 = vmatpush1.msra.mxu0 %v1957
  %2172 = vmatprep.subr.mxu0 %v1961
  %2173 = vmatpush1.msra.mxu0 %v1960
  %2174 = vmatprep.subr.mxu0 %v1964
  %2175 = vmatpush1.msra.mxu0 %v1963
  %2176 = vmatprep.subr.mxu0 %v1967
  %2177 = vmatpush1.msra.mxu0 %v1966
  %2178 = vmatprep.subr.mxu0 %v1970
  %2179 = vmatpush1.msra.mxu0 %v1969
  %2180 = vmatprep.subr.mxu0 %v1973
  %2181 = vmatpush1.msra.mxu0 %v1972
  %2182 = vmatprep.subr.mxu0 %v1976
  %2183 = vmatpush1.msra.mxu0 %v1975
  %2184 = vmatprep.subr.mxu0 %v1979
  %2185 = vmatpush1.msra.mxu0 %v1978
  %2186 = vmatprep.subr.mxu0 0.0
  %2187 = vmatpush1.msra.mxu0 0.0
  %2188 = vmatprep.subr.mxu0 0.0
  %2189 = vmatpush1.msra.mxu0 0.0
  %2190 = vmatprep.subr.mxu0 0.0
  %2191 = vmatpush1.msra.mxu0 0.0
  %2192 = vmatprep.subr.mxu0 0.0
  %2193 = vmatpush1.msra.mxu0 0.0
  %2194 = vmatprep.subr.mxu0 0.0
  %2195 = vmatpush1.msra.mxu0 0.0
  %2196 = vmatprep.subr.mxu0 0.0
  %2197 = vmatpush1.msra.mxu0 0.0
  %2198 = vmatprep.subr.mxu0 0.0
  %2199 = vmatpush1.msra.mxu0 0.0
  %2200 = vmatprep.subr.mxu0 0.0
  %2201 = vmatpush1.msra.mxu0 0.0
  %2202 = vmatprep.subr.mxu0 0.0
  %2203 = vmatpush1.msra.mxu0 0.0
  %2204 = vmatprep.subr.mxu0 0.0
  %2205 = vmatpush1.msra.mxu0 0.0
  %2206 = vmatprep.subr.mxu0 0.0
  %2207 = vmatpush1.msra.mxu0 0.0
  %2208 = vmatprep.subr.mxu0 0.0
  %2209 = vmatpush1.msra.mxu0 0.0
  %2210 = vmatprep.subr.mxu0 0.0
  %2211 = vmatpush1.msra.mxu0 0.0
  %2212 = vmatprep.subr.mxu0 0.0
  %2213 = vmatpush1.msra.mxu0 0.0
  %2214 = vmatprep.subr.mxu0 0.0
  %2215 = vmatpush1.msra.mxu0 0.0
  %2216 = vmatprep.subr.mxu0 0.0
  %2217 = vmatpush1.msra.mxu0 0.0
  %2218 = vmatprep.mubr.f32.mxu0 0.0
  %2219 = vmatmul.mubr.f32.gmra.mrb[0].mxu0 %v2152
  %v2220 = vpop.f32.mrb[0].mxu0
  %v2221 = vadd.f32 0.0, %v2220
  %v2222 = vpop.f32.mrb[0].mxu0
  %v2223 = vadd.f32 0.0, %v2222
  %2224 = vdwg.mxu0
  %2225 = vmatprep.subr.mxu0 0.0
  %2226 = vmatpush1.msra.mxu0 %v1935
  %2227 = vmatprep.subr.mxu0 0.0
  %2228 = vmatpush1.msra.mxu0 %v1938
  %2229 = vmatprep.subr.mxu0 0.0
  %2230 = vmatpush1.msra.mxu0 %v1941
  %2231 = vmatprep.subr.mxu0 0.0
  %2232 = vmatpush1.msra.mxu0 %v1944
  %2233 = vmatprep.subr.mxu0 0.0
  %2234 = vmatpush1.msra.mxu0 %v1947
  %2235 = vmatprep.subr.mxu0 0.0
  %2236 = vmatpush1.msra.mxu0 %v1950
  %2237 = vmatprep.subr.mxu0 0.0
  %2238 = vmatpush1.msra.mxu0 %v1953
  %2239 = vmatprep.subr.mxu0 0.0
  %2240 = vmatpush1.msra.mxu0 %v1956
  %2241 = vmatprep.subr.mxu0 0.0
  %2242 = vmatpush1.msra.mxu0 %v1959
  %2243 = vmatprep.subr.mxu0 0.0
  %2244 = vmatpush1.msra.mxu0 %v1962
  %2245 = vmatprep.subr.mxu0 0.0
  %2246 = vmatpush1.msra.mxu0 %v1965
  %2247 = vmatprep.subr.mxu0 0.0
  %2248 = vmatpush1.msra.mxu0 %v1968
  %2249 = vmatprep.subr.mxu0 0.0
  %2250 = vmatpush1.msra.mxu0 %v1971
  %2251 = vmatprep.subr.mxu0 0.0
  %2252 = vmatpush1.msra.mxu0 %v1974
  %2253 = vmatprep.subr.mxu0 0.0
  %2254 = vmatpush1.msra.mxu0 %v1977
  %2255 = vmatprep.subr.mxu0 0.0
  %2256 = vmatpush1.msra.mxu0 %v1980
  %2257 = vmatprep.subr.mxu0 0.0
  %2258 = vmatpush1.msra.mxu0 0.0
  %2259 = vmatprep.subr.mxu0 0.0
  %2260 = vmatpush1.msra.mxu0 0.0
  %2261 = vmatprep.subr.mxu0 0.0
  %2262 = vmatpush1.msra.mxu0 0.0
  %2263 = vmatprep.subr.mxu0 0.0
  %2264 = vmatpush1.msra.mxu0 0.0
  %2265 = vmatprep.subr.mxu0 0.0
  %2266 = vmatpush1.msra.mxu0 0.0
  %2267 = vmatprep.subr.mxu0 0.0
  %2268 = vmatpush1.msra.mxu0 0.0
  %2269 = vmatprep.subr.mxu0 0.0
  %2270 = vmatpush1.msra.mxu0 0.0
  %2271 = vmatprep.subr.mxu0 0.0
  %2272 = vmatpush1.msra.mxu0 0.0
  %2273 = vmatprep.subr.mxu0 0.0
  %2274 = vmatpush1.msra.mxu0 0.0
  %2275 = vmatprep.subr.mxu0 0.0
  %2276 = vmatpush1.msra.mxu0 0.0
  %2277 = vmatprep.subr.mxu0 0.0
  %2278 = vmatpush1.msra.mxu0 0.0
  %2279 = vmatprep.subr.mxu0 0.0
  %2280 = vmatpush1.msra.mxu0 0.0
  %2281 = vmatprep.subr.mxu0 0.0
  %2282 = vmatpush1.msra.mxu0 0.0
  %2283 = vmatprep.subr.mxu0 0.0
  %2284 = vmatpush1.msra.mxu0 0.0
  %2285 = vmatprep.subr.mxu0 0.0
  %2286 = vmatpush1.msra.mxu0 0.0
  %2287 = vmatprep.subr.mxu0 0.0
  %2288 = vmatpush1.msra.mxu0 0.0
  %2289 = vmatprep.mubr.f32.mxu0 0.0
  %2290 = vmatmul.mubr.f32.gmra.mrb[0].mxu0 %v2152
  %v2291 = vpop.f32.mrb[0].mxu0
  %v2292 = vadd.f32 0.0, %v2291
  %v2293 = vpop.f32.mrb[0].mxu0
  %2294 = vdwg.mxu0
  %v2296 = vrot.slane %v2221, 6
  %v2298 = vadd.f32 %v1848, %v2296
  %v2299 = vsub.f32 0.0, %v2298
  %v2300 = vmul.f32 %v2299, 1.442695
  %v2301 = vpow.pop %v2300
  %v2302 = vadd.f32 %v2301, 1.0
  %v2303 = vrcp.pop %v2302
  %v2304 = vmul.f32 1.0, %v2303
  %v2306 = vrot.slane %v2223, 6
  %v2308 = vadd.f32 %v1850, %v2306
  %v2309 = vsub.f32 0.0, %v2308
  %v2310 = vmul.f32 %v2309, 1.442695
  %v2311 = vpow.pop %v2310
  %v2312 = vadd.f32 %v2311, 1.0
  %v2313 = vrcp.pop %v2312
  %v2314 = vmul.f32 1.0, %v2313
  %v2315 = vadd.f32 %v2292, %v2143
  %v2317 = vrot.slane %v2315, 6
  %v2319 = vmul.f32 %v2304, %v2317
  %v2320 = vadd.f32 %v1925, %v2319
  %v2321 = vtanh.pop %v2320
  %v2322 = vsub.f32 1.0, %v2314
  %v2323 = vmul.f32 %v2322, %v2321
  %v2325 = vrot.slane %v2152, 6
  %v2327 = vmul.f32 %v2314, %v2325
  %v2328 = vadd.f32 %v2323, %v2327
  %2329 = vst [vmem:[#allocation2] sm:$0xc] %v2328
  %v2331 = vrot.slane %v2328, 2
  %2333 = vmatprep.subr.mxu0 %v1934
  %2334 = vmatpush1.msra.mxu0 %v1933
  %2335 = vmatprep.subr.mxu0 %v1937
  %2336 = vmatpush1.msra.mxu0 %v1936
  %2337 = vmatprep.subr.mxu0 %v1940
  %2338 = vmatpush1.msra.mxu0 %v1939
  %2339 = vmatprep.subr.mxu0 %v1943
  %2340 = vmatpush1.msra.mxu0 %v1942
  %2341 = vmatprep.subr.mxu0 %v1946
  %2342 = vmatpush1.msra.mxu0 %v1945
  %2343 = vmatprep.subr.mxu0 %v1949
  %2344 = vmatpush1.msra.mxu0 %v1948
  %2345 = vmatprep.subr.mxu0 %v1952
  %2346 = vmatpush1.msra.mxu0 %v1951
  %2347 = vmatprep.subr.mxu0 %v1955
  %2348 = vmatpush1.msra.mxu0 %v1954
  %2349 = vmatprep.subr.mxu0 %v1958
  %2350 = vmatpush1.msra.mxu0 %v1957
  %2351 = vmatprep.subr.mxu0 %v1961
  %2352 = vmatpush1.msra.mxu0 %v1960
  %2353 = vmatprep.subr.mxu0 %v1964
  %2354 = vmatpush1.msra.mxu0 %v1963
  %2355 = vmatprep.subr.mxu0 %v1967
  %2356 = vmatpush1.msra.mxu0 %v1966
  %2357 = vmatprep.subr.mxu0 %v1970
  %2358 = vmatpush1.msra.mxu0 %v1969
  %2359 = vmatprep.subr.mxu0 %v1973
  %2360 = vmatpush1.msra.mxu0 %v1972
  %2361 = vmatprep.subr.mxu0 %v1976
  %2362 = vmatpush1.msra.mxu0 %v1975
  %2363 = vmatprep.subr.mxu0 %v1979
  %2364 = vmatpush1.msra.mxu0 %v1978
  %2365 = vmatprep.subr.mxu0 0.0
  %2366 = vmatpush1.msra.mxu0 0.0
  %2367 = vmatprep.subr.mxu0 0.0
  %2368 = vmatpush1.msra.mxu0 0.0
  %2369 = vmatprep.subr.mxu0 0.0
  %2370 = vmatpush1.msra.mxu0 0.0
  %2371 = vmatprep.subr.mxu0 0.0
  %2372 = vmatpush1.msra.mxu0 0.0
  %2373 = vmatprep.subr.mxu0 0.0
  %2374 = vmatpush1.msra.mxu0 0.0
  %2375 = vmatprep.subr.mxu0 0.0
  %2376 = vmatpush1.msra.mxu0 0.0
  %2377 = vmatprep.subr.mxu0 0.0
  %2378 = vmatpush1.msra.mxu0 0.0
  %2379 = vmatprep.subr.mxu0 0.0
  %2380 = vmatpush1.msra.mxu0 0.0
  %2381 = vmatprep.subr.mxu0 0.0
  %2382 = vmatpush1.msra.mxu0 0.0
  %2383 = vmatprep.subr.mxu0 0.0
  %2384 = vmatpush1.msra.mxu0 0.0
  %2385 = vmatprep.subr.mxu0 0.0
  %2386 = vmatpush1.msra.mxu0 0.0
  %2387 = vmatprep.subr.mxu0 0.0
  %2388 = vmatpush1.msra.mxu0 0.0
  %2389 = vmatprep.subr.mxu0 0.0
  %2390 = vmatpush1.msra.mxu0 0.0
  %2391 = vmatprep.subr.mxu0 0.0
  %2392 = vmatpush1.msra.mxu0 0.0
  %2393 = vmatprep.subr.mxu0 0.0
  %2394 = vmatpush1.msra.mxu0 0.0
  %2395 = vmatprep.subr.mxu0 0.0
  %2396 = vmatpush1.msra.mxu0 0.0
  %2397 = vmatprep.mubr.f32.mxu0 0.0
  %2398 = vmatmul.mubr.f32.gmra.mrb[0].mxu0 %v2331
  %v2399 = vpop.f32.mrb[0].mxu0
  %v2400 = vadd.f32 0.0, %v2399
  %v2401 = vpop.f32.mrb[0].mxu0
  %v2402 = vadd.f32 0.0, %v2401
  %2403 = vdwg.mxu0
  %2404 = vmatprep.subr.mxu0 0.0
  %2405 = vmatpush1.msra.mxu0 %v1935
  %2406 = vmatprep.subr.mxu0 0.0
  %2407 = vmatpush1.msra.mxu0 %v1938
  %2408 = vmatprep.subr.mxu0 0.0
  %2409 = vmatpush1.msra.mxu0 %v1941
  %2410 = vmatprep.subr.mxu0 0.0
  %2411 = vmatpush1.msra.mxu0 %v1944
  %2412 = vmatprep.subr.mxu0 0.0
  %2413 = vmatpush1.msra.mxu0 %v1947
  %2414 = vmatprep.subr.mxu0 0.0
  %2415 = vmatpush1.msra.mxu0 %v1950
  %2416 = vmatprep.subr.mxu0 0.0
  %2417 = vmatpush1.msra.mxu0 %v1953
  %2418 = vmatprep.subr.mxu0 0.0
  %2419 = vmatpush1.msra.mxu0 %v1956
  %2420 = vmatprep.subr.mxu0 0.0
  %2421 = vmatpush1.msra.mxu0 %v1959
  %2422 = vmatprep.subr.mxu0 0.0
  %2423 = vmatpush1.msra.mxu0 %v1962
  %2424 = vmatprep.subr.mxu0 0.0
  %2425 = vmatpush1.msra.mxu0 %v1965
  %2426 = vmatprep.subr.mxu0 0.0
  %2427 = vmatpush1.msra.mxu0 %v1968
  %2428 = vmatprep.subr.mxu0 0.0
  %2429 = vmatpush1.msra.mxu0 %v1971
  %2430 = vmatprep.subr.mxu0 0.0
  %2431 = vmatpush1.msra.mxu0 %v1974
  %2432 = vmatprep.subr.mxu0 0.0
  %2433 = vmatpush1.msra.mxu0 %v1977
  %2434 = vmatprep.subr.mxu0 0.0
  %2435 = vmatpush1.msra.mxu0 %v1980
  %2436 = vmatprep.subr.mxu0 0.0
  %2437 = vmatpush1.msra.mxu0 0.0
  %2438 = vmatprep.subr.mxu0 0.0
  %2439 = vmatpush1.msra.mxu0 0.0
  %2440 = vmatprep.subr.mxu0 0.0
  %2441 = vmatpush1.msra.mxu0 0.0
  %2442 = vmatprep.subr.mxu0 0.0
  %2443 = vmatpush1.msra.mxu0 0.0
  %2444 = vmatprep.subr.mxu0 0.0
  %2445 = vmatpush1.msra.mxu0 0.0
  %2446 = vmatprep.subr.mxu0 0.0
  %2447 = vmatpush1.msra.mxu0 0.0
  %2448 = vmatprep.subr.mxu0 0.0
  %2449 = vmatpush1.msra.mxu0 0.0
  %2450 = vmatprep.subr.mxu0 0.0
  %2451 = vmatpush1.msra.mxu0 0.0
  %2452 = vmatprep.subr.mxu0 0.0
  %2453 = vmatpush1.msra.mxu0 0.0
  %2454 = vmatprep.subr.mxu0 0.0
  %2455 = vmatpush1.msra.mxu0 0.0
  %2456 = vmatprep.subr.mxu0 0.0
  %2457 = vmatpush1.msra.mxu0 0.0
  %2458 = vmatprep.subr.mxu0 0.0
  %2459 = vmatpush1.msra.mxu0 0.0
  %2460 = vmatprep.subr.mxu0 0.0
  %2461 = vmatpush1.msra.mxu0 0.0
  %2462 = vmatprep.subr.mxu0 0.0
  %2463 = vmatpush1.msra.mxu0 0.0
  %2464 = vmatprep.subr.mxu0 0.0
  %2465 = vmatpush1.msra.mxu0 0.0
  %2466 = vmatprep.subr.mxu0 0.0
  %2467 = vmatpush1.msra.mxu0 0.0
  %2468 = vmatprep.mubr.f32.mxu0 0.0
  %2469 = vmatmul.mubr.f32.gmra.mrb[0].mxu0 %v2331
  %v2470 = vpop.f32.mrb[0].mxu0
  %v2471 = vadd.f32 0.0, %v2470
  %v2472 = vpop.f32.mrb[0].mxu0
  %2473 = vdwg.mxu0
  %v2475 = vrot.slane %v2400, 4
  %v2477 = vadd.f32 %v1848, %v2475
  %v2478 = vsub.f32 0.0, %v2477
  %v2479 = vmul.f32 %v2478, 1.442695
  %v2480 = vpow.pop %v2479
  %v2481 = vadd.f32 %v2480, 1.0
  %v2482 = vrcp.pop %v2481
  %v2483 = vmul.f32 1.0, %v2482
  %v2485 = vrot.slane %v2402, 4
  %v2487 = vadd.f32 %v1850, %v2485
  %v2488 = vsub.f32 0.0, %v2487
  %v2489 = vmul.f32 %v2488, 1.442695
  %v2490 = vpow.pop %v2489
  %v2491 = vadd.f32 %v2490, 1.0
  %v2492 = vrcp.pop %v2491
  %v2493 = vmul.f32 1.0, %v2492
  %v2494 = vadd.f32 %v2471, %v2143
  %v2496 = vrot.slane %v2494, 4
  %v2498 = vmul.f32 %v2483, %v2496
  %v2499 = vadd.f32 %v1925, %v2498
  %v2500 = vtanh.pop %v2499
  %v2501 = vsub.f32 1.0, %v2493
  %v2502 = vmul.f32 %v2501, %v2500
  %v2503 = vrot.slane %v2328, 6
  %v2505 = vmul.f32 %v2493, %v2503
  %v2506 = vadd.f32 %v2502, %v2505
  %2507 = vst [vmem:[#allocation2] sm:$0x30] %v2506
  %v2509 = vrot.slane %v2506, 4
  %2511 = vmatprep.subr.mxu0 %v1934
  %2512 = vmatpush1.msra.mxu0 %v1933
  %2513 = vmatprep.subr.mxu0 %v1937
  %2514 = vmatpush1.msra.mxu0 %v1936
  %2515 = vmatprep.subr.mxu0 %v1940
  %2516 = vmatpush1.msra.mxu0 %v1939
  %2517 = vmatprep.subr.mxu0 %v1943
  %2518 = vmatpush1.msra.mxu0 %v1942
  %2519 = vmatprep.subr.mxu0 %v1946
  %2520 = vmatpush1.msra.mxu0 %v1945
  %2521 = vmatprep.subr.mxu0 %v1949
  %2522 = vmatpush1.msra.mxu0 %v1948
  %2523 = vmatprep.subr.mxu0 %v1952
  %2524 = vmatpush1.msra.mxu0 %v1951
  %2525 = vmatprep.subr.mxu0 %v1955
  %2526 = vmatpush1.msra.mxu0 %v1954
  %2527 = vmatprep.subr.mxu0 %v1958
  %2528 = vmatpush1.msra.mxu0 %v1957
  %2529 = vmatprep.subr.mxu0 %v1961
  %2530 = vmatpush1.msra.mxu0 %v1960
  %2531 = vmatprep.subr.mxu0 %v1964
  %2532 = vmatpush1.msra.mxu0 %v1963
  %2533 = vmatprep.subr.mxu0 %v1967
  %2534 = vmatpush1.msra.mxu0 %v1966
  %2535 = vmatprep.subr.mxu0 %v1970
  %2536 = vmatpush1.msra.mxu0 %v1969
  %2537 = vmatprep.subr.mxu0 %v1973
  %2538 = vmatpush1.msra.mxu0 %v1972
  %2539 = vmatprep.subr.mxu0 %v1976
  %2540 = vmatpush1.msra.mxu0 %v1975
  %2541 = vmatprep.subr.mxu0 %v1979
  %2542 = vmatpush1.msra.mxu0 %v1978
  %2543 = vmatprep.subr.mxu0 0.0
  %2544 = vmatpush1.msra.mxu0 0.0
  %2545 = vmatprep.subr.mxu0 0.0
  %2546 = vmatpush1.msra.mxu0 0.0
  %2547 = vmatprep.subr.mxu0 0.0
  %2548 = vmatpush1.msra.mxu0 0.0
  %2549 = vmatprep.subr.mxu0 0.0
  %2550 = vmatpush1.msra.mxu0 0.0
  %2551 = vmatprep.subr.mxu0 0.0
  %2552 = vmatpush1.msra.mxu0 0.0
  %2553 = vmatprep.subr.mxu0 0.0
  %2554 = vmatpush1.msra.mxu0 0.0
  %2555 = vmatprep.subr.mxu0 0.0
  %2556 = vmatpush1.msra.mxu0 0.0
  %2557 = vmatprep.subr.mxu0 0.0
  %2558 = vmatpush1.msra.mxu0 0.0
  %2559 = vmatprep.subr.mxu0 0.0
  %2560 = vmatpush1.msra.mxu0 0.0
  %2561 = vmatprep.subr.mxu0 0.0
  %2562 = vmatpush1.msra.mxu0 0.0
  %2563 = vmatprep.subr.mxu0 0.0
  %2564 = vmatpush1.msra.mxu0 0.0
  %2565 = vmatprep.subr.mxu0 0.0
  %2566 = vmatpush1.msra.mxu0 0.0
  %2567 = vmatprep.subr.mxu0 0.0
  %2568 = vmatpush1.msra.mxu0 0.0
  %2569 = vmatprep.subr.mxu0 0.0
  %2570 = vmatpush1.msra.mxu0 0.0
  %2571 = vmatprep.subr.mxu0 0.0
  %2572 = vmatpush1.msra.mxu0 0.0
  %2573 = vmatprep.subr.mxu0 0.0
  %2574 = vmatpush1.msra.mxu0 0.0
  %2575 = vmatprep.mubr.f32.mxu0 0.0
  %2576 = vmatmul.mubr.f32.gmra.mrb[0].mxu0 %v2509
  %v2577 = vpop.f32.mrb[0].mxu0
  %v2578 = vadd.f32 0.0, %v2577
  %v2579 = vpop.f32.mrb[0].mxu0
  %v2580 = vadd.f32 0.0, %v2579
  %2581 = vdwg.mxu0
  %2582 = vmatprep.subr.mxu0 0.0
  %2583 = vmatpush1.msra.mxu0 %v1935
  %2584 = vmatprep.subr.mxu0 0.0
  %2585 = vmatpush1.msra.mxu0 %v1938
  %2586 = vmatprep.subr.mxu0 0.0
  %2587 = vmatpush1.msra.mxu0 %v1941
  %2588 = vmatprep.subr.mxu0 0.0
  %2589 = vmatpush1.msra.mxu0 %v1944
  %2590 = vmatprep.subr.mxu0 0.0
  %2591 = vmatpush1.msra.mxu0 %v1947
  %2592 = vmatprep.subr.mxu0 0.0
  %2593 = vmatpush1.msra.mxu0 %v1950
  %2594 = vmatprep.subr.mxu0 0.0
  %2595 = vmatpush1.msra.mxu0 %v1953
  %2596 = vmatprep.subr.mxu0 0.0
  %2597 = vmatpush1.msra.mxu0 %v1956
  %2598 = vmatprep.subr.mxu0 0.0
  %2599 = vmatpush1.msra.mxu0 %v1959
  %2600 = vmatprep.subr.mxu0 0.0
  %2601 = vmatpush1.msra.mxu0 %v1962
  %2602 = vmatprep.subr.mxu0 0.0
  %2603 = vmatpush1.msra.mxu0 %v1965
  %2604 = vmatprep.subr.mxu0 0.0
  %2605 = vmatpush1.msra.mxu0 %v1968
  %2606 = vmatprep.subr.mxu0 0.0
  %2607 = vmatpush1.msra.mxu0 %v1971
  %2608 = vmatprep.subr.mxu0 0.0
  %2609 = vmatpush1.msra.mxu0 %v1974
  %2610 = vmatprep.subr.mxu0 0.0
  %2611 = vmatpush1.msra.mxu0 %v1977
  %2612 = vmatprep.subr.mxu0 0.0
  %2613 = vmatpush1.msra.mxu0 %v1980
  %2614 = vmatprep.subr.mxu0 0.0
  %2615 = vmatpush1.msra.mxu0 0.0
  %2616 = vmatprep.subr.mxu0 0.0
  %2617 = vmatpush1.msra.mxu0 0.0
  %2618 = vmatprep.subr.mxu0 0.0
  %2619 = vmatpush1.msra.mxu0 0.0
  %2620 = vmatprep.subr.mxu0 0.0
  %2621 = vmatpush1.msra.mxu0 0.0
  %2622 = vmatprep.subr.mxu0 0.0
  %2623 = vmatpush1.msra.mxu0 0.0
  %2624 = vmatprep.subr.mxu0 0.0
  %2625 = vmatpush1.msra.mxu0 0.0
  %2626 = vmatprep.subr.mxu0 0.0
  %2627 = vmatpush1.msra.mxu0 0.0
  %2628 = vmatprep.subr.mxu0 0.0
  %2629 = vmatpush1.msra.mxu0 0.0
  %2630 = vmatprep.subr.mxu0 0.0
  %2631 = vmatpush1.msra.mxu0 0.0
  %2632 = vmatprep.subr.mxu0 0.0
  %2633 = vmatpush1.msra.mxu0 0.0
  %2634 = vmatprep.subr.mxu0 0.0
  %2635 = vmatpush1.msra.mxu0 0.0
  %2636 = vmatprep.subr.mxu0 0.0
  %2637 = vmatpush1.msra.mxu0 0.0
  %2638 = vmatprep.subr.mxu0 0.0
  %2639 = vmatpush1.msra.mxu0 0.0
  %2640 = vmatprep.subr.mxu0 0.0
  %2641 = vmatpush1.msra.mxu0 0.0
  %2642 = vmatprep.subr.mxu0 0.0
  %2643 = vmatpush1.msra.mxu0 0.0
  %2644 = vmatprep.subr.mxu0 0.0
  %2645 = vmatpush1.msra.mxu0 0.0
  %2646 = vmatprep.mubr.f32.mxu0 0.0
  %2647 = vmatmul.mubr.f32.gmra.mrb[0].mxu0 %v2509
  %v2648 = vpop.f32.mrb[0].mxu0
  %v2649 = vadd.f32 0.0, %v2648
  %v2650 = vpop.f32.mrb[0].mxu0
  %2651 = vdwg.mxu0
  %v2653 = vrot.slane %v2578, 2
  %v2655 = vadd.f32 %v1848, %v2653
  %v2656 = vsub.f32 0.0, %v2655
  %v2657 = vmul.f32 %v2656, 1.442695
  %v2658 = vpow.pop %v2657
  %v2659 = vadd.f32 %v2658, 1.0
  %v2660 = vrcp.pop %v2659
  %v2661 = vmul.f32 1.0, %v2660
  %v2663 = vrot.slane %v2580, 2
  %v2665 = vadd.f32 %v1850, %v2663
  %v2666 = vsub.f32 0.0, %v2665
  %v2667 = vmul.f32 %v2666, 1.442695
  %v2668 = vpow.pop %v2667
  %v2669 = vadd.f32 %v2668, 1.0
  %v2670 = vrcp.pop %v2669
  %v2671 = vmul.f32 1.0, %v2670
  %v2672 = vadd.f32 %v2649, %v2143
  %v2674 = vrot.slane %v2672, 2
  %v2676 = vmul.f32 %v2661, %v2674
  %v2677 = vadd.f32 %v1925, %v2676
  %v2678 = vtanh.pop %v2677
  %v2679 = vsub.f32 1.0, %v2671
  %v2680 = vmul.f32 %v2679, %v2678
  %v2681 = vrot.slane %v2506, 6
  %v2683 = vmul.f32 %v2671, %v2681
  %v2684 = vadd.f32 %v2680, %v2683
  %2685 = vst [vmem:[#allocation2] sm:$0xc0] %v2684
  %v2687 = vrot.slane %v2684, 6
  %2689 = vmatprep.subr.mxu0 %v1934
  %2690 = vmatpush1.msra.mxu0 %v1933
  %2691 = vmatprep.subr.mxu0 %v1937
  %2692 = vmatpush1.msra.mxu0 %v1936
  %2693 = vmatprep.subr.mxu0 %v1940
  %2694 = vmatpush1.msra.mxu0 %v1939
  %2695 = vmatprep.subr.mxu0 %v1943
  %2696 = vmatpush1.msra.mxu0 %v1942
  %2697 = vmatprep.subr.mxu0 %v1946
  %2698 = vmatpush1.msra.mxu0 %v1945
  %2699 = vmatprep.subr.mxu0 %v1949
  %2700 = vmatpush1.msra.mxu0 %v1948
  %2701 = vmatprep.subr.mxu0 %v1952
  %2702 = vmatpush1.msra.mxu0 %v1951
  %2703 = vmatprep.subr.mxu0 %v1955
  %2704 = vmatpush1.msra.mxu0 %v1954
  %2705 = vmatprep.subr.mxu0 %v1958
  %2706 = vmatpush1.msra.mxu0 %v1957
  %2707 = vmatprep.subr.mxu0 %v1961
  %2708 = vmatpush1.msra.mxu0 %v1960
  %2709 = vmatprep.subr.mxu0 %v1964
  %2710 = vmatpush1.msra.mxu0 %v1963
  %2711 = vmatprep.subr.mxu0 %v1967
  %2712 = vmatpush1.msra.mxu0 %v1966
  %2713 = vmatprep.subr.mxu0 %v1970
  %2714 = vmatpush1.msra.mxu0 %v1969
  %2715 = vmatprep.subr.mxu0 %v1973
  %2716 = vmatpush1.msra.mxu0 %v1972
  %2717 = vmatprep.subr.mxu0 %v1976
  %2718 = vmatpush1.msra.mxu0 %v1975
  %2719 = vmatprep.subr.mxu0 %v1979
  %2720 = vmatpush1.msra.mxu0 %v1978
  %2721 = vmatprep.subr.mxu0 0.0
  %2722 = vmatpush1.msra.mxu0 0.0
  %2723 = vmatprep.subr.mxu0 0.0
  %2724 = vmatpush1.msra.mxu0 0.0
  %2725 = vmatprep.subr.mxu0 0.0
  %2726 = vmatpush1.msra.mxu0 0.0
  %2727 = vmatprep.subr.mxu0 0.0
  %2728 = vmatpush1.msra.mxu0 0.0
  %2729 = vmatprep.subr.mxu0 0.0
  %2730 = vmatpush1.msra.mxu0 0.0
  %2731 = vmatprep.subr.mxu0 0.0
  %2732 = vmatpush1.msra.mxu0 0.0
  %2733 = vmatprep.subr.mxu0 0.0
  %2734 = vmatpush1.msra.mxu0 0.0
  %2735 = vmatprep.subr.mxu0 0.0
  %2736 = vmatpush1.msra.mxu0 0.0
  %2737 = vmatprep.subr.mxu0 0.0
  %2738 = vmatpush1.msra.mxu0 0.0
  %2739 = vmatprep.subr.mxu0 0.0
  %2740 = vmatpush1.msra.mxu0 0.0
  %2741 = vmatprep.subr.mxu0 0.0
  %2742 = vmatpush1.msra.mxu0 0.0
  %2743 = vmatprep.subr.mxu0 0.0
  %2744 = vmatpush1.msra.mxu0 0.0
  %2745 = vmatprep.subr.mxu0 0.0
  %2746 = vmatpush1.msra.mxu0 0.0
  %2747 = vmatprep.subr.mxu0 0.0
  %2748 = vmatpush1.msra.mxu0 0.0
  %2749 = vmatprep.subr.mxu0 0.0
  %2750 = vmatpush1.msra.mxu0 0.0
  %2751 = vmatprep.subr.mxu0 0.0
  %2752 = vmatpush1.msra.mxu0 0.0
  %2753 = vmatprep.mubr.f32.mxu0 0.0
  %2754 = vmatmul.mubr.f32.gmra.mrb[0].mxu0 %v2687
  %v2755 = vpop.f32.mrb[0].mxu0
  %v2756 = vadd.f32 0.0, %v2755
  %v2757 = vpop.f32.mrb[0].mxu0
  %v2758 = vadd.f32 0.0, %v2757
  %2759 = vdwg.mxu0
  %2760 = vmatprep.subr.mxu0 0.0
  %2761 = vmatpush1.msra.mxu0 %v1935
  %2762 = vmatprep.subr.mxu0 0.0
  %2763 = vmatpush1.msra.mxu0 %v1938
  %2764 = vmatprep.subr.mxu0 0.0
  %2765 = vmatpush1.msra.mxu0 %v1941
  %2766 = vmatprep.subr.mxu0 0.0
  %2767 = vmatpush1.msra.mxu0 %v1944
  %2768 = vmatprep.subr.mxu0 0.0
  %2769 = vmatpush1.msra.mxu0 %v1947
  %2770 = vmatprep.subr.mxu0 0.0
  %2771 = vmatpush1.msra.mxu0 %v1950
  %2772 = vmatprep.subr.mxu0 0.0
  %2773 = vmatpush1.msra.mxu0 %v1953
  %2774 = vmatprep.subr.mxu0 0.0
  %2775 = vmatpush1.msra.mxu0 %v1956
  %2776 = vmatprep.subr.mxu0 0.0
  %2777 = vmatpush1.msra.mxu0 %v1959
  %2778 = vmatprep.subr.mxu0 0.0
  %2779 = vmatpush1.msra.mxu0 %v1962
  %2780 = vmatprep.subr.mxu0 0.0
  %2781 = vmatpush1.msra.mxu0 %v1965
  %2782 = vmatprep.subr.mxu0 0.0
  %2783 = vmatpush1.msra.mxu0 %v1968
  %2784 = vmatprep.subr.mxu0 0.0
  %2785 = vmatpush1.msra.mxu0 %v1971
  %2786 = vmatprep.subr.mxu0 0.0
  %2787 = vmatpush1.msra.mxu0 %v1974
  %2788 = vmatprep.subr.mxu0 0.0
  %2789 = vmatpush1.msra.mxu0 %v1977
  %2790 = vmatprep.subr.mxu0 0.0
  %2791 = vmatpush1.msra.mxu0 %v1980
  %2792 = vmatprep.subr.mxu0 0.0
  %2793 = vmatpush1.msra.mxu0 0.0
  %2794 = vmatprep.subr.mxu0 0.0
  %2795 = vmatpush1.msra.mxu0 0.0
  %2796 = vmatprep.subr.mxu0 0.0
  %2797 = vmatpush1.msra.mxu0 0.0
  %2798 = vmatprep.subr.mxu0 0.0
  %2799 = vmatpush1.msra.mxu0 0.0
  %2800 = vmatprep.subr.mxu0 0.0
  %2801 = vmatpush1.msra.mxu0 0.0
  %2802 = vmatprep.subr.mxu0 0.0
  %2803 = vmatpush1.msra.mxu0 0.0
  %2804 = vmatprep.subr.mxu0 0.0
  %2805 = vmatpush1.msra.mxu0 0.0
  %2806 = vmatprep.subr.mxu0 0.0
  %2807 = vmatpush1.msra.mxu0 0.0
  %2808 = vmatprep.subr.mxu0 0.0
  %2809 = vmatpush1.msra.mxu0 0.0
  %2810 = vmatprep.subr.mxu0 0.0
  %2811 = vmatpush1.msra.mxu0 0.0
  %2812 = vmatprep.subr.mxu0 0.0
  %2813 = vmatpush1.msra.mxu0 0.0
  %2814 = vmatprep.subr.mxu0 0.0
  %2815 = vmatpush1.msra.mxu0 0.0
  %2816 = vmatprep.subr.mxu0 0.0
  %2817 = vmatpush1.msra.mxu0 0.0
  %2818 = vmatprep.subr.mxu0 0.0
  %2819 = vmatpush1.msra.mxu0 0.0
  %2820 = vmatprep.subr.mxu0 0.0
  %2821 = vmatpush1.msra.mxu0 0.0
  %2822 = vmatprep.subr.mxu0 0.0
  %2823 = vmatpush1.msra.mxu0 0.0
  %2824 = vmatprep.mubr.f32.mxu0 0.0
  %2825 = vmatmul.mubr.f32.gmra.mrb[0].mxu0 %v2687
  %v2826 = vpop.f32.mrb[0].mxu0
  %v2827 = vadd.f32 0.0, %v2826
  %v2828 = vpop.f32.mrb[0].mxu0
  %2829 = vdwg.mxu0
  %v2830 = vadd.f32 %v1854, %v2756
  %v2831 = vsub.f32 0.0, %v2830
  %v2832 = vmul.f32 %v2831, 1.442695
  %v2833 = vpow.pop %v2832
  %v2834 = vadd.f32 %v2833, 1.0
  %v2835 = vrcp.pop %v2834
  %v2836 = vmul.f32 1.0, %v2835
  %v2837 = vadd.f32 %v1856, %v2758
  %v2838 = vsub.f32 0.0, %v2837
  %v2839 = vmul.f32 %v2838, 1.442695
  %v2840 = vpow.pop %v2839
  %v2841 = vadd.f32 %v2840, 1.0
  %v2842 = vrcp.pop %v2841
  %v2843 = vmul.f32 1.0, %v2842
  %v2844 = vadd.f32 %v2827, %v2143
  %v2845 = vmul.f32 %v2836, %v2844
  %v2846 = vadd.f32 %v1930, %v2845
  %v2847 = vtanh.pop %v2846
  %v2848 = vsub.f32 1.0, %v2843
  %v2849 = vmul.f32 %v2848, %v2847
  %v2850 = vmul.f32 %v2843, %v2687
  %v2851 = vadd.f32 %v2849, %v2850
  %2852 = vst [vmem:[#allocation2 + $0x8] sm:$0x3] %v2851
  %2853 = vmatprep.subr.mxu0 %v1934
  %2854 = vmatpush1.msra.mxu0 %v1933
  %2855 = vmatprep.subr.mxu0 %v1937
  %2856 = vmatpush1.msra.mxu0 %v1936
  %2857 = vmatprep.subr.mxu0 %v1940
  %2858 = vmatpush1.msra.mxu0 %v1939
  %2859 = vmatprep.subr.mxu0 %v1943
  %2860 = vmatpush1.msra.mxu0 %v1942
  %2861 = vmatprep.subr.mxu0 %v1946
  %2862 = vmatpush1.msra.mxu0 %v1945
  %2863 = vmatprep.subr.mxu0 %v1949
  %2864 = vmatpush1.msra.mxu0 %v1948
  %2865 = vmatprep.subr.mxu0 %v1952
  %2866 = vmatpush1.msra.mxu0 %v1951
  %2867 = vmatprep.subr.mxu0 %v1955
  %2868 = vmatpush1.msra.mxu0 %v1954
  %2869 = vmatprep.subr.mxu0 %v1958
  %2870 = vmatpush1.msra.mxu0 %v1957
  %2871 = vmatprep.subr.mxu0 %v1961
  %2872 = vmatpush1.msra.mxu0 %v1960
  %2873 = vmatprep.subr.mxu0 %v1964
  %2874 = vmatpush1.msra.mxu0 %v1963
  %2875 = vmatprep.subr.mxu0 %v1967
  %2876 = vmatpush1.msra.mxu0 %v1966
  %2877 = vmatprep.subr.mxu0 %v1970
  %2878 = vmatpush1.msra.mxu0 %v1969
  %2879 = vmatprep.subr.mxu0 %v1973
  %2880 = vmatpush1.msra.mxu0 %v1972
  %2881 = vmatprep.subr.mxu0 %v1976
  %2882 = vmatpush1.msra.mxu0 %v1975
  %2883 = vmatprep.subr.mxu0 %v1979
  %2884 = vmatpush1.msra.mxu0 %v1978
  %2885 = vmatprep.subr.mxu0 0.0
  %2886 = vmatpush1.msra.mxu0 0.0
  %2887 = vmatprep.subr.mxu0 0.0
  %2888 = vmatpush1.msra.mxu0 0.0
  %2889 = vmatprep.subr.mxu0 0.0
  %2890 = vmatpush1.msra.mxu0 0.0
  %2891 = vmatprep.subr.mxu0 0.0
  %2892 = vmatpush1.msra.mxu0 0.0
  %2893 = vmatprep.subr.mxu0 0.0
  %2894 = vmatpush1.msra.mxu0 0.0
  %2895 = vmatprep.subr.mxu0 0.0
  %2896 = vmatpush1.msra.mxu0 0.0
  %2897 = vmatprep.subr.mxu0 0.0
  %2898 = vmatpush1.msra.mxu0 0.0
  %2899 = vmatprep.subr.mxu0 0.0
  %2900 = vmatpush1.msra.mxu0 0.0
  %2901 = vmatprep.subr.mxu0 0.0
  %2902 = vmatpush1.msra.mxu0 0.0
  %2903 = vmatprep.subr.mxu0 0.0
  %2904 = vmatpush1.msra.mxu0 0.0
  %2905 = vmatprep.subr.mxu0 0.0
  %2906 = vmatpush1.msra.mxu0 0.0
  %2907 = vmatprep.subr.mxu0 0.0
  %2908 = vmatpush1.msra.mxu0 0.0
  %2909 = vmatprep.subr.mxu0 0.0
  %2910 = vmatpush1.msra.mxu0 0.0
  %2911 = vmatprep.subr.mxu0 0.0
  %2912 = vmatpush1.msra.mxu0 0.0
  %2913 = vmatprep.subr.mxu0 0.0
  %2914 = vmatpush1.msra.mxu0 0.0
  %2915 = vmatprep.subr.mxu0 0.0
  %2916 = vmatpush1.msra.mxu0 0.0
  %2917 = vmatprep.mubr.f32.mxu0 0.0
  %2918 = vmatmul.mubr.f32.gmra.mrb[0].mxu0 %v2851
  %v2919 = vpop.f32.mrb[0].mxu0
  %v2920 = vadd.f32 0.0, %v2919
  %v2921 = vpop.f32.mrb[0].mxu0
  %v2922 = vadd.f32 0.0, %v2921
  %2923 = vdwg.mxu0
  %2924 = vmatprep.subr.mxu0 0.0
  %2925 = vmatpush1.msra.mxu0 %v1935
  %2926 = vmatprep.subr.mxu0 0.0
  %2927 = vmatpush1.msra.mxu0 %v1938
  %2928 = vmatprep.subr.mxu0 0.0
  %2929 = vmatpush1.msra.mxu0 %v1941
  %2930 = vmatprep.subr.mxu0 0.0
  %2931 = vmatpush1.msra.mxu0 %v1944
  %2932 = vmatprep.subr.mxu0 0.0
  %2933 = vmatpush1.msra.mxu0 %v1947
  %2934 = vmatprep.subr.mxu0 0.0
  %2935 = vmatpush1.msra.mxu0 %v1950
  %2936 = vmatprep.subr.mxu0 0.0
  %2937 = vmatpush1.msra.mxu0 %v1953
  %2938 = vmatprep.subr.mxu0 0.0
  %2939 = vmatpush1.msra.mxu0 %v1956
  %2940 = vmatprep.subr.mxu0 0.0
  %2941 = vmatpush1.msra.mxu0 %v1959
  %2942 = vmatprep.subr.mxu0 0.0
  %2943 = vmatpush1.msra.mxu0 %v1962
  %2944 = vmatprep.subr.mxu0 0.0
  %2945 = vmatpush1.msra.mxu0 %v1965
  %2946 = vmatprep.subr.mxu0 0.0
  %2947 = vmatpush1.msra.mxu0 %v1968
  %2948 = vmatprep.subr.mxu0 0.0
  %2949 = vmatpush1.msra.mxu0 %v1971
  %2950 = vmatprep.subr.mxu0 0.0
  %2951 = vmatpush1.msra.mxu0 %v1974
  %2952 = vmatprep.subr.mxu0 0.0
  %2953 = vmatpush1.msra.mxu0 %v1977
  %2954 = vmatprep.subr.mxu0 0.0
  %2955 = vmatpush1.msra.mxu0 %v1980
  %2956 = vmatprep.subr.mxu0 0.0
  %2957 = vmatpush1.msra.mxu0 0.0
  %2958 = vmatprep.subr.mxu0 0.0
  %2959 = vmatpush1.msra.mxu0 0.0
  %2960 = vmatprep.subr.mxu0 0.0
  %2961 = vmatpush1.msra.mxu0 0.0
  %2962 = vmatprep.subr.mxu0 0.0
  %2963 = vmatpush1.msra.mxu0 0.0
  %2964 = vmatprep.subr.mxu0 0.0
  %2965 = vmatpush1.msra.mxu0 0.0
  %2966 = vmatprep.subr.mxu0 0.0
  %2967 = vmatpush1.msra.mxu0 0.0
  %2968 = vmatprep.subr.mxu0 0.0
  %2969 = vmatpush1.msra.mxu0 0.0
  %2970 = vmatprep.subr.mxu0 0.0
  %2971 = vmatpush1.msra.mxu0 0.0
  %2972 = vmatprep.subr.mxu0 0.0
  %2973 = vmatpush1.msra.mxu0 0.0
  %2974 = vmatprep.subr.mxu0 0.0
  %2975 = vmatpush1.msra.mxu0 0.0
  %2976 = vmatprep.subr.mxu0 0.0
  %2977 = vmatpush1.msra.mxu0 0.0
  %2978 = vmatprep.subr.mxu0 0.0
  %2979 = vmatpush1.msra.mxu0 0.0
  %2980 = vmatprep.subr.mxu0 0.0
  %2981 = vmatpush1.msra.mxu0 0.0
  %2982 = vmatprep.subr.mxu0 0.0
  %2983 = vmatpush1.msra.mxu0 0.0
  %2984 = vmatprep.subr.mxu0 0.0
  %2985 = vmatpush1.msra.mxu0 0.0
  %2986 = vmatprep.subr.mxu0 0.0
  %2987 = vmatpush1.msra.mxu0 0.0
  %2988 = vmatprep.mubr.f32.mxu0 0.0
  %2989 = vmatmul.mubr.f32.gmra.mrb[0].mxu0 %v2851
  %v2990 = vpop.f32.mrb[0].mxu0
  %v2991 = vadd.f32 0.0, %v2990
  %v2992 = vpop.f32.mrb[0].mxu0
  %2993 = vdwg.mxu0
  %v2995 = vrot.slane %v2920, 6
  %v2997 = vadd.f32 %v1854, %v2995
  %v2998 = vsub.f32 0.0, %v2997
  %v2999 = vmul.f32 %v2998, 1.442695
  %v3000 = vpow.pop %v2999
  %v3001 = vadd.f32 %v3000, 1.0
  %v3002 = vrcp.pop %v3001
  %v3003 = vmul.f32 1.0, %v3002
  %v3005 = vrot.slane %v2922, 6
  %v3007 = vadd.f32 %v1856, %v3005
  %v3008 = vsub.f32 0.0, %v3007
  %v3009 = vmul.f32 %v3008, 1.442695
  %v3010 = vpow.pop %v3009
  %v3011 = vadd.f32 %v3010, 1.0
  %v3012 = vrcp.pop %v3011
  %v3013 = vmul.f32 1.0, %v3012
  %v3014 = vadd.f32 %v2991, %v2143
  %v3016 = vrot.slane %v3014, 6
  %v3018 = vmul.f32 %v3003, %v3016
  %v3019 = vadd.f32 %v1930, %v3018
  %v3020 = vtanh.pop %v3019
  %v3021 = vsub.f32 1.0, %v3013
  %v3022 = vmul.f32 %v3021, %v3020
  %v3024 = vrot.slane %v2851, 6
  %v3026 = vmul.f32 %v3013, %v3024
  %v3027 = vadd.f32 %v3022, %v3026
  %3028 = vst [vmem:[#allocation2 + $0x8] sm:$0xc] %v3027
  %v3030 = vrot.slane %v3027, 2
  %3032 = vmatprep.subr.mxu0 %v1934
  %3033 = vmatpush1.msra.mxu0 %v1933
  %3034 = vmatprep.subr.mxu0 %v1937
  %3035 = vmatpush1.msra.mxu0 %v1936
  %3036 = vmatprep.subr.mxu0 %v1940
  %3037 = vmatpush1.msra.mxu0 %v1939
  %3038 = vmatprep.subr.mxu0 %v1943
  %3039 = vmatpush1.msra.mxu0 %v1942
  %3040 = vmatprep.subr.mxu0 %v1946
  %3041 = vmatpush1.msra.mxu0 %v1945
  %3042 = vmatprep.subr.mxu0 %v1949
  %3043 = vmatpush1.msra.mxu0 %v1948
  %3044 = vmatprep.subr.mxu0 %v1952
  %3045 = vmatpush1.msra.mxu0 %v1951
  %3046 = vmatprep.subr.mxu0 %v1955
  %3047 = vmatpush1.msra.mxu0 %v1954
  %3048 = vmatprep.subr.mxu0 %v1958
  %3049 = vmatpush1.msra.mxu0 %v1957
  %3050 = vmatprep.subr.mxu0 %v1961
  %3051 = vmatpush1.msra.mxu0 %v1960
  %3052 = vmatprep.subr.mxu0 %v1964
  %3053 = vmatpush1.msra.mxu0 %v1963
  %3054 = vmatprep.subr.mxu0 %v1967
  %3055 = vmatpush1.msra.mxu0 %v1966
  %3056 = vmatprep.subr.mxu0 %v1970
  %3057 = vmatpush1.msra.mxu0 %v1969
  %3058 = vmatprep.subr.mxu0 %v1973
  %3059 = vmatpush1.msra.mxu0 %v1972
  %3060 = vmatprep.subr.mxu0 %v1976
  %3061 = vmatpush1.msra.mxu0 %v1975
  %3062 = vmatprep.subr.mxu0 %v1979
  %3063 = vmatpush1.msra.mxu0 %v1978
  %3064 = vmatprep.subr.mxu0 0.0
  %3065 = vmatpush1.msra.mxu0 0.0
  %3066 = vmatprep.subr.mxu0 0.0
  %3067 = vmatpush1.msra.mxu0 0.0
  %3068 = vmatprep.subr.mxu0 0.0
  %3069 = vmatpush1.msra.mxu0 0.0
  %3070 = vmatprep.subr.mxu0 0.0
  %3071 = vmatpush1.msra.mxu0 0.0
  %3072 = vmatprep.subr.mxu0 0.0
  %3073 = vmatpush1.msra.mxu0 0.0
  %3074 = vmatprep.subr.mxu0 0.0
  %3075 = vmatpush1.msra.mxu0 0.0
  %3076 = vmatprep.subr.mxu0 0.0
  %3077 = vmatpush1.msra.mxu0 0.0
  %3078 = vmatprep.subr.mxu0 0.0
  %3079 = vmatpush1.msra.mxu0 0.0
  %3080 = vmatprep.subr.mxu0 0.0
  %3081 = vmatpush1.msra.mxu0 0.0
  %3082 = vmatprep.subr.mxu0 0.0
  %3083 = vmatpush1.msra.mxu0 0.0
  %3084 = vmatprep.subr.mxu0 0.0
  %3085 = vmatpush1.msra.mxu0 0.0
  %3086 = vmatprep.subr.mxu0 0.0
  %3087 = vmatpush1.msra.mxu0 0.0
  %3088 = vmatprep.subr.mxu0 0.0
  %3089 = vmatpush1.msra.mxu0 0.0
  %3090 = vmatprep.subr.mxu0 0.0
  %3091 = vmatpush1.msra.mxu0 0.0
  %3092 = vmatprep.subr.mxu0 0.0
  %3093 = vmatpush1.msra.mxu0 0.0
  %3094 = vmatprep.subr.mxu0 0.0
  %3095 = vmatpush1.msra.mxu0 0.0
  %3096 = vmatprep.mubr.f32.mxu0 0.0
  %3097 = vmatmul.mubr.f32.gmra.mrb[0].mxu0 %v3030
  %v3098 = vpop.f32.mrb[0].mxu0
  %v3099 = vadd.f32 0.0, %v3098
  %v3100 = vpop.f32.mrb[0].mxu0
  %v3101 = vadd.f32 0.0, %v3100
  %3102 = vdwg.mxu0
  %3103 = vmatprep.subr.mxu0 0.0
  %3104 = vmatpush1.msra.mxu0 %v1935
  %3105 = vmatprep.subr.mxu0 0.0
  %3106 = vmatpush1.msra.mxu0 %v1938
  %3107 = vmatprep.subr.mxu0 0.0
  %3108 = vmatpush1.msra.mxu0 %v1941
  %3109 = vmatprep.subr.mxu0 0.0
  %3110 = vmatpush1.msra.mxu0 %v1944
  %3111 = vmatprep.subr.mxu0 0.0
  %3112 = vmatpush1.msra.mxu0 %v1947
  %3113 = vmatprep.subr.mxu0 0.0
  %3114 = vmatpush1.msra.mxu0 %v1950
  %3115 = vmatprep.subr.mxu0 0.0
  %3116 = vmatpush1.msra.mxu0 %v1953
  %3117 = vmatprep.subr.mxu0 0.0
  %3118 = vmatpush1.msra.mxu0 %v1956
  %3119 = vmatprep.subr.mxu0 0.0
  %3120 = vmatpush1.msra.mxu0 %v1959
  %3121 = vmatprep.subr.mxu0 0.0
  %3122 = vmatpush1.msra.mxu0 %v1962
  %3123 = vmatprep.subr.mxu0 0.0
  %3124 = vmatpush1.msra.mxu0 %v1965
  %3125 = vmatprep.subr.mxu0 0.0
  %3126 = vmatpush1.msra.mxu0 %v1968
  %3127 = vmatprep.subr.mxu0 0.0
  %3128 = vmatpush1.msra.mxu0 %v1971
  %3129 = vmatprep.subr.mxu0 0.0
  %3130 = vmatpush1.msra.mxu0 %v1974
  %3131 = vmatprep.subr.mxu0 0.0
  %3132 = vmatpush1.msra.mxu0 %v1977
  %3133 = vmatprep.subr.mxu0 0.0
  %3134 = vmatpush1.msra.mxu0 %v1980
  %3135 = vmatprep.subr.mxu0 0.0
  %3136 = vmatpush1.msra.mxu0 0.0
  %3137 = vmatprep.subr.mxu0 0.0
  %3138 = vmatpush1.msra.mxu0 0.0
  %3139 = vmatprep.subr.mxu0 0.0
  %3140 = vmatpush1.msra.mxu0 0.0
  %3141 = vmatprep.subr.mxu0 0.0
  %3142 = vmatpush1.msra.mxu0 0.0
  %3143 = vmatprep.subr.mxu0 0.0
  %3144 = vmatpush1.msra.mxu0 0.0
  %3145 = vmatprep.subr.mxu0 0.0
  %3146 = vmatpush1.msra.mxu0 0.0
  %3147 = vmatprep.subr.mxu0 0.0
  %3148 = vmatpush1.msra.mxu0 0.0
  %3149 = vmatprep.subr.mxu0 0.0
  %3150 = vmatpush1.msra.mxu0 0.0
  %3151 = vmatprep.subr.mxu0 0.0
  %3152 = vmatpush1.msra.mxu0 0.0
  %3153 = vmatprep.subr.mxu0 0.0
  %3154 = vmatpush1.msra.mxu0 0.0
  %3155 = vmatprep.subr.mxu0 0.0
  %3156 = vmatpush1.msra.mxu0 0.0
  %3157 = vmatprep.subr.mxu0 0.0
  %3158 = vmatpush1.msra.mxu0 0.0
  %3159 = vmatprep.subr.mxu0 0.0
  %3160 = vmatpush1.msra.mxu0 0.0
  %3161 = vmatprep.subr.mxu0 0.0
  %3162 = vmatpush1.msra.mxu0 0.0
  %3163 = vmatprep.subr.mxu0 0.0
  %3164 = vmatpush1.msra.mxu0 0.0
  %3165 = vmatprep.subr.mxu0 0.0
  %3166 = vmatpush1.msra.mxu0 0.0
  %3167 = vmatprep.mubr.f32.mxu0 0.0
  %3168 = vmatmul.mubr.f32.gmra.mrb[0].mxu0 %v3030
  %v3169 = vpop.f32.mrb[0].mxu0
  %v3170 = vadd.f32 0.0, %v3169
  %v3171 = vpop.f32.mrb[0].mxu0
  %3172 = vdwg.mxu0
  %v3174 = vrot.slane %v3099, 4
  %v3176 = vadd.f32 %v1854, %v3174
  %v3177 = vsub.f32 0.0, %v3176
  %v3178 = vmul.f32 %v3177, 1.442695
  %v3179 = vpow.pop %v3178
  %v3180 = vadd.f32 %v3179, 1.0
  %v3181 = vrcp.pop %v3180
  %v3182 = vmul.f32 1.0, %v3181
  %v3184 = vrot.slane %v3101, 4
  %v3186 = vadd.f32 %v1856, %v3184
  %v3187 = vsub.f32 0.0, %v3186
  %v3188 = vmul.f32 %v3187, 1.442695
  %v3189 = vpow.pop %v3188
  %v3190 = vadd.f32 %v3189, 1.0
  %v3191 = vrcp.pop %v3190
  %v3192 = vmul.f32 1.0, %v3191
  %v3193 = vadd.f32 %v3170, %v2143
  %v3195 = vrot.slane %v3193, 4
  %v3197 = vmul.f32 %v3182, %v3195
  %v3198 = vadd.f32 %v1930, %v3197
  %v3199 = vtanh.pop %v3198
  %v3200 = vsub.f32 1.0, %v3192
  %v3201 = vmul.f32 %v3200, %v3199
  %v3202 = vrot.slane %v3027, 6
  %v3204 = vmul.f32 %v3192, %v3202
  %v3205 = vadd.f32 %v3201, %v3204
  %3206 = vst [vmem:[#allocation2 + $0x8] sm:$0x30] %v3205
  %v3208 = vrot.slane %v3205, 4
  %3210 = vmatprep.subr.mxu0 %v1934
  %3211 = vmatpush1.msra.mxu0 %v1933
  %3212 = vmatprep.subr.mxu0 %v1937
  %3213 = vmatpush1.msra.mxu0 %v1936
  %3214 = vmatprep.subr.mxu0 %v1940
  %3215 = vmatpush1.msra.mxu0 %v1939
  %3216 = vmatprep.subr.mxu0 %v1943
  %3217 = vmatpush1.msra.mxu0 %v1942
  %3218 = vmatprep.subr.mxu0 %v1946
  %3219 = vmatpush1.msra.mxu0 %v1945
  %3220 = vmatprep.subr.mxu0 %v1949
  %3221 = vmatpush1.msra.mxu0 %v1948
  %3222 = vmatprep.subr.mxu0 %v1952
  %3223 = vmatpush1.msra.mxu0 %v1951
  %3224 = vmatprep.subr.mxu0 %v1955
  %3225 = vmatpush1.msra.mxu0 %v1954
  %3226 = vmatprep.subr.mxu0 %v1958
  %3227 = vmatpush1.msra.mxu0 %v1957
  %3228 = vmatprep.subr.mxu0 %v1961
  %3229 = vmatpush1.msra.mxu0 %v1960
  %3230 = vmatprep.subr.mxu0 %v1964
  %3231 = vmatpush1.msra.mxu0 %v1963
  %3232 = vmatprep.subr.mxu0 %v1967
  %3233 = vmatpush1.msra.mxu0 %v1966
  %3234 = vmatprep.subr.mxu0 %v1970
  %3235 = vmatpush1.msra.mxu0 %v1969
  %3236 = vmatprep.subr.mxu0 %v1973
  %3237 = vmatpush1.msra.mxu0 %v1972
  %3238 = vmatprep.subr.mxu0 %v1976
  %3239 = vmatpush1.msra.mxu0 %v1975
  %3240 = vmatprep.subr.mxu0 %v1979
  %3241 = vmatpush1.msra.mxu0 %v1978
  %3242 = vmatprep.subr.mxu0 0.0
  %3243 = vmatpush1.msra.mxu0 0.0
  %3244 = vmatprep.subr.mxu0 0.0
  %3245 = vmatpush1.msra.mxu0 0.0
  %3246 = vmatprep.subr.mxu0 0.0
  %3247 = vmatpush1.msra.mxu0 0.0
  %3248 = vmatprep.subr.mxu0 0.0
  %3249 = vmatpush1.msra.mxu0 0.0
  %3250 = vmatprep.subr.mxu0 0.0
  %3251 = vmatpush1.msra.mxu0 0.0
  %3252 = vmatprep.subr.mxu0 0.0
  %3253 = vmatpush1.msra.mxu0 0.0
  %3254 = vmatprep.subr.mxu0 0.0
  %3255 = vmatpush1.msra.mxu0 0.0
  %3256 = vmatprep.subr.mxu0 0.0
  %3257 = vmatpush1.msra.mxu0 0.0
  %3258 = vmatprep.subr.mxu0 0.0
  %3259 = vmatpush1.msra.mxu0 0.0
  %3260 = vmatprep.subr.mxu0 0.0
  %3261 = vmatpush1.msra.mxu0 0.0
  %3262 = vmatprep.subr.mxu0 0.0
  %3263 = vmatpush1.msra.mxu0 0.0
  %3264 = vmatprep.subr.mxu0 0.0
  %3265 = vmatpush1.msra.mxu0 0.0
  %3266 = vmatprep.subr.mxu0 0.0
  %3267 = vmatpush1.msra.mxu0 0.0
  %3268 = vmatprep.subr.mxu0 0.0
  %3269 = vmatpush1.msra.mxu0 0.0
  %3270 = vmatprep.subr.mxu0 0.0
  %3271 = vmatpush1.msra.mxu0 0.0
  %3272 = vmatprep.subr.mxu0 0.0
  %3273 = vmatpush1.msra.mxu0 0.0
  %3274 = vmatprep.mubr.f32.mxu0 0.0
  %3275 = vmatmul.mubr.f32.gmra.mrb[0].mxu0 %v3208
  %v3276 = vpop.f32.mrb[0].mxu0
  %v3277 = vadd.f32 0.0, %v3276
  %v3278 = vpop.f32.mrb[0].mxu0
  %v3279 = vadd.f32 0.0, %v3278
  %3280 = vdwg.mxu0
  %3281 = vmatprep.subr.mxu0 0.0
  %3282 = vmatpush1.msra.mxu0 %v1935
  %3283 = vmatprep.subr.mxu0 0.0
  %3284 = vmatpush1.msra.mxu0 %v1938
  %3285 = vmatprep.subr.mxu0 0.0
  %3286 = vmatpush1.msra.mxu0 %v1941
  %3287 = vmatprep.subr.mxu0 0.0
  %3288 = vmatpush1.msra.mxu0 %v1944
  %3289 = vmatprep.subr.mxu0 0.0
  %3290 = vmatpush1.msra.mxu0 %v1947
  %3291 = vmatprep.subr.mxu0 0.0
  %3292 = vmatpush1.msra.mxu0 %v1950
  %3293 = vmatprep.subr.mxu0 0.0
  %3294 = vmatpush1.msra.mxu0 %v1953
  %3295 = vmatprep.subr.mxu0 0.0
  %3296 = vmatpush1.msra.mxu0 %v1956
  %3297 = vmatprep.subr.mxu0 0.0
  %3298 = vmatpush1.msra.mxu0 %v1959
  %3299 = vmatprep.subr.mxu0 0.0
  %3300 = vmatpush1.msra.mxu0 %v1962
  %3301 = vmatprep.subr.mxu0 0.0
  %3302 = vmatpush1.msra.mxu0 %v1965
  %3303 = vmatprep.subr.mxu0 0.0
  %3304 = vmatpush1.msra.mxu0 %v1968
  %3305 = vmatprep.subr.mxu0 0.0
  %3306 = vmatpush1.msra.mxu0 %v1971
  %3307 = vmatprep.subr.mxu0 0.0
  %3308 = vmatpush1.msra.mxu0 %v1974
  %3309 = vmatprep.subr.mxu0 0.0
  %3310 = vmatpush1.msra.mxu0 %v1977
  %3311 = vmatprep.subr.mxu0 0.0
  %3312 = vmatpush1.msra.mxu0 %v1980
  %3313 = vmatprep.subr.mxu0 0.0
  %3314 = vmatpush1.msra.mxu0 0.0
  %3315 = vmatprep.subr.mxu0 0.0
  %3316 = vmatpush1.msra.mxu0 0.0
  %3317 = vmatprep.subr.mxu0 0.0
  %3318 = vmatpush1.msra.mxu0 0.0
  %3319 = vmatprep.subr.mxu0 0.0
  %3320 = vmatpush1.msra.mxu0 0.0
  %3321 = vmatprep.subr.mxu0 0.0
  %3322 = vmatpush1.msra.mxu0 0.0
  %3323 = vmatprep.subr.mxu0 0.0
  %3324 = vmatpush1.msra.mxu0 0.0
  %3325 = vmatprep.subr.mxu0 0.0
  %3326 = vmatpush1.msra.mxu0 0.0
  %3327 = vmatprep.subr.mxu0 0.0
  %3328 = vmatpush1.msra.mxu0 0.0
  %3329 = vmatprep.subr.mxu0 0.0
  %3330 = vmatpush1.msra.mxu0 0.0
  %3331 = vmatprep.subr.mxu0 0.0
  %3332 = vmatpush1.msra.mxu0 0.0
  %3333 = vmatprep.subr.mxu0 0.0
  %3334 = vmatpush1.msra.mxu0 0.0
  %3335 = vmatprep.subr.mxu0 0.0
  %3336 = vmatpush1.msra.mxu0 0.0
  %3337 = vmatprep.subr.mxu0 0.0
  %3338 = vmatpush1.msra.mxu0 0.0
  %3339 = vmatprep.subr.mxu0 0.0
  %3340 = vmatpush1.msra.mxu0 0.0
  %3341 = vmatprep.subr.mxu0 0.0
  %3342 = vmatpush1.msra.mxu0 0.0
  %3343 = vmatprep.subr.mxu0 0.0
  %3344 = vmatpush1.msra.mxu0 0.0
  %3345 = vmatprep.mubr.f32.mxu0 0.0
  %3346 = vmatmul.mubr.f32.gmra.mrb[0].mxu0 %v3208
  %v3347 = vpop.f32.mrb[0].mxu0
  %v3348 = vadd.f32 0.0, %v3347
  %v3349 = vpop.f32.mrb[0].mxu0
  %3350 = vdwg.mxu0
  %v3352 = vrot.slane %v3277, 2
  %v3354 = vadd.f32 %v1854, %v3352
  %v3355 = vsub.f32 0.0, %v3354
  %v3356 = vmul.f32 %v3355, 1.442695
  %v3357 = vpow.pop %v3356
  %v3358 = vadd.f32 %v3357, 1.0
  %v3359 = vrcp.pop %v3358
  %v3360 = vmul.f32 1.0, %v3359
  %v3362 = vrot.slane %v3279, 2
  %v3364 = vadd.f32 %v1856, %v3362
  %v3365 = vsub.f32 0.0, %v3364
  %v3366 = vmul.f32 %v3365, 1.442695
  %v3367 = vpow.pop %v3366
  %v3368 = vadd.f32 %v3367, 1.0
  %v3369 = vrcp.pop %v3368
  %v3370 = vmul.f32 1.0, %v3369
  %v3371 = vadd.f32 %v3348, %v2143
  %v3373 = vrot.slane %v3371, 2
  %v3375 = vmul.f32 %v3360, %v3373
  %v3376 = vadd.f32 %v1930, %v3375
  %v3377 = vtanh.pop %v3376
  %v3378 = vsub.f32 1.0, %v3370
  %v3379 = vmul.f32 %v3378, %v3377
  %v3380 = vrot.slane %v3205, 6
  %v3382 = vmul.f32 %v3370, %v3380
  %v3383 = vadd.f32 %v3379, %v3382
  %3384 = vst [vmem:[#allocation2 + $0x8] sm:$0xc0] %v3383
  %s3385 = scalar_lea.vmem %s13, 2
  %3386 = vst [vmem:[%s3385 - $0x6] sm:$0xc0] %v3383
  %v3387 = vld [vmem:[#allocation2] sm:$0xff]
  %v3388 = vld [vmem:[#allocation2 + $0x8] sm:$0xff]
  %v3389 = vld [vmem:[%s10] sm:$0xff]
  %v3390 = vld [vmem:[%s10 + $0x8] sm:$0xff]
  %v3391 = vld [vmem:[%s10 + $0x10] sm:$0xff]
  %v3392 = vld [vmem:[%s10 + $0x18] sm:$0xff]
  %v3393 = vld [vmem:[%s10 + $0x20] sm:$0xff]
  %v3394 = vld [vmem:[%s10 + $0x28] sm:$0xff]
  %v3395 = vld [vmem:[%s10 + $0x30] sm:$0xff]
  %v3396 = vld [vmem:[%s10 + $0x38] sm:$0xff]
  %v3397 = vld [vmem:[%s10 + $0x40] sm:$0xff]
  %v3398 = vld [vmem:[%s10 + $0x48] sm:$0xff]
  %v3399 = vld [vmem:[%s10 + $0x50] sm:$0xff]
  %v3400 = vld [vmem:[%s10 + $0x58] sm:$0xff]
  %v3401 = vld [vmem:[%s10 + $0x60] sm:$0xff]
  %v3402 = vld [vmem:[%s10 + $0x68] sm:$0xff]
  %v3403 = vld [vmem:[%s10 + $0x70] sm:$0xff]
  %v3404 = vld [vmem:[%s10 + $0x78] sm:$0xff]
  %v3405 = vld [vmem:[%s11] sm:$0x1]
  %v3407 = vlaneseq
  %v3408 = vshrl.u32 %v3407, 7
  %v3409 = vsub.s32 0, %v3408
  %v3410 = vrot.slane %v3405, %v3409
  %3412 = vmatprep.subr.mxu0 0.0
  %3413 = vmatpush1.msra.mxu0 %v3389
  %3414 = vmatprep.subr.mxu0 0.0
  %3415 = vmatpush1.msra.mxu0 %v3390
  %3416 = vmatprep.subr.mxu0 0.0
  %3417 = vmatpush1.msra.mxu0 %v3391
  %3418 = vmatprep.subr.mxu0 0.0
  %3419 = vmatpush1.msra.mxu0 %v3392
  %3420 = vmatprep.subr.mxu0 0.0
  %3421 = vmatpush1.msra.mxu0 %v3393
  %3422 = vmatprep.subr.mxu0 0.0
  %3423 = vmatpush1.msra.mxu0 %v3394
  %3424 = vmatprep.subr.mxu0 0.0
  %3425 = vmatpush1.msra.mxu0 %v3395
  %3426 = vmatprep.subr.mxu0 0.0
  %3427 = vmatpush1.msra.mxu0 %v3396
  %3428 = vmatprep.subr.mxu0 0.0
  %3429 = vmatpush1.msra.mxu0 %v3397
  %3430 = vmatprep.subr.mxu0 0.0
  %3431 = vmatpush1.msra.mxu0 %v3398
  %3432 = vmatprep.subr.mxu0 0.0
  %3433 = vmatpush1.msra.mxu0 %v3399
  %3434 = vmatprep.subr.mxu0 0.0
  %3435 = vmatpush1.msra.mxu0 %v3400
  %3436 = vmatprep.subr.mxu0 0.0
  %3437 = vmatpush1.msra.mxu0 %v3401
  %3438 = vmatprep.subr.mxu0 0.0
  %3439 = vmatpush1.msra.mxu0 %v3402
  %3440 = vmatprep.subr.mxu0 0.0
  %3441 = vmatpush1.msra.mxu0 %v3403
  %3442 = vmatprep.subr.mxu0 0.0
  %3443 = vmatpush1.msra.mxu0 %v3404
  %3444 = vmatprep.subr.mxu0 0.0
  %3445 = vmatpush1.msra.mxu0 0.0
  %3446 = vmatprep.subr.mxu0 0.0
  %3447 = vmatpush1.msra.mxu0 0.0
  %3448 = vmatprep.subr.mxu0 0.0
  %3449 = vmatpush1.msra.mxu0 0.0
  %3450 = vmatprep.subr.mxu0 0.0
  %3451 = vmatpush1.msra.mxu0 0.0
  %3452 = vmatprep.subr.mxu0 0.0
  %3453 = vmatpush1.msra.mxu0 0.0
  %3454 = vmatprep.subr.mxu0 0.0
  %3455 = vmatpush1.msra.mxu0 0.0
  %3456 = vmatprep.subr.mxu0 0.0
  %3457 = vmatpush1.msra.mxu0 0.0
  %3458 = vmatprep.subr.mxu0 0.0
  %3459 = vmatpush1.msra.mxu0 0.0
  %3460 = vmatprep.subr.mxu0 0.0
  %3461 = vmatpush1.msra.mxu0 0.0
  %3462 = vmatprep.subr.mxu0 0.0
  %3463 = vmatpush1.msra.mxu0 0.0
  %3464 = vmatprep.subr.mxu0 0.0
  %3465 = vmatpush1.msra.mxu0 0.0
  %3466 = vmatprep.subr.mxu0 0.0
  %3467 = vmatpush1.msra.mxu0 0.0
  %3468 = vmatprep.subr.mxu0 0.0
  %3469 = vmatpush1.msra.mxu0 0.0
  %3470 = vmatprep.subr.mxu0 0.0
  %3471 = vmatpush1.msra.mxu0 0.0
  %3472 = vmatprep.subr.mxu0 0.0
  %3473 = vmatpush1.msra.mxu0 0.0
  %3474 = vmatprep.subr.mxu0 0.0
  %3475 = vmatpush1.msra.mxu0 0.0
  %3476 = vmatprep.mubr.f32.mxu0 0.0
  %3477 = vmatmul.mubr.f32.gmra.mrb[0].mxu0 %v3387
  %v3478 = vpop.f32.mrb[0].mxu0
  %v3479 = vadd.f32 %v3410, %v3478
  %v3480 = vpop.f32.mrb[0].mxu0
  %3481 = vmatprep.mubr.f32.mxu0 0.0
  %3482 = vmatmul.mubr.f32.gmra.mrb[0].mxu0 %v3388
  %v3483 = vpop.f32.mrb[0].mxu0
  %v3484 = vadd.f32 %v3410, %v3483
  %v3485 = vpop.f32.mrb[0].mxu0
  %3486 = vdwg.mxu0
  %3487 = vst [vmem:[%s12] sm:$0xff] %v3479
  %3488 = vst [vmem:[%s12 + $0x8] sm:$0xff] %v3484
  // Predicated region
  $region50: #{auxiliary_gru_forward.1} parent=0 // pred_check
    _
  $region51: #{auxiliary_gru_forward.1} parent=0 // pred_check_branch
    %3490 = sbr.rel (0) target = $region53
  $region52: #{auxiliary_gru_forward.1} parent=0 // pred_region
    _
  $region53: #{auxiliary_gru_forward.1} parent=0 // pred_fallthru
    _
  // Predicated region
  $region54: #{auxiliary_gru_forward.1} parent=0 // pred_check
    _
  $region55: #{auxiliary_gru_forward.1} parent=0 // pred_check_branch
    %3492 = sbr.rel (0) target = $region57
  $region56: #{auxiliary_gru_forward.1} parent=0 // pred_region
    _
  $region57: #{auxiliary_gru_forward.1} parent=0 // pred_fallthru
    _
  // Predicated region
  $region58: #{auxiliary_gru_forward.1} parent=0 // pred_check
    _
  $region59: #{auxiliary_gru_forward.1} parent=0 // pred_check_branch
    %3494 = sbr.rel (0) target = $region61
  $region60: #{auxiliary_gru_forward.1} parent=0 // pred_region
    _
  $region61: #{auxiliary_gru_forward.1} parent=0 // pred_fallthru
    _
  // Predicated region
  $region62: #{auxiliary_gru_forward.1} parent=0 // pred_check
    _
  $region63: #{auxiliary_gru_forward.1} parent=0 // pred_check_branch
    %3496 = sbr.rel (0) target = $region65
  $region64: #{auxiliary_gru_forward.1} parent=0 // pred_region
    _
  $region65: #{auxiliary_gru_forward.1} parent=0 // pred_fallthru
    _

</llo_original>
